<compile_context>
chip_gen: v5e
topology: v5e:2x2
jax: 0.10.0
libtpu: 0.0.40
codegen_flags: <defaults>
</compile_context>

<pallas_src>
import functools

import jax
import jax.numpy as jnp
from jax.experimental import pallas as pl
from jax.experimental.pallas import tpu as pltpu

# Logical (PyTorch) dims
D_IN = 784      # 784 % 8 == 0, kept unpadded (full-dim blocks)
D_HID = 400
LAT = 20

# Lane-aligned padded dims used for the weight matrices inside the kernel
D_HID_P = 512   # 4 * 128
LAT_P = 64      # mu|logvar packed side-by-side -> 128 lanes


def _round_up(x, m):
    return ((x + m - 1) // m) * m


def _cdiv(a, b):
    return -(-a // b)


def _vae_kernel(x_ref, eps_ref,
                w1_ref, b1_ref,
                w2_ref, b2_ref,
                w3_ref, b3_ref,
                w4_ref, b4_ref,
                recon_ref, mulv_ref):
    # ---- encode: h1 = relu(x @ W1 + b1) ------------------------------------
    # x_ref is already bf16; accumulate in f32 on the MXU.
    h1 = jnp.dot(x_ref[...], w1_ref[...],
                 preferred_element_type=jnp.float32) + b1_ref[...]
    h1 = jnp.maximum(h1, 0.0)                                     # (TB, 512) f32

    # ---- fused mu | logvar projection (single MXU pass, 128 lanes) ---------
    mulv = jnp.dot(h1.astype(jnp.bfloat16), w2_ref[...],
                   preferred_element_type=jnp.float32) + b2_ref[...]  # (TB, 128)
    mu = mulv[:, :LAT_P]
    logvar = mulv[:, LAT_P:]

    # ---- reparameterize: z = mu + eps * exp(0.5 * logvar) (f32 VPU/EUP) ----
    # Padded latent lanes: logvar==0 -> std==1, but eps==0 and mu==0 there,
    # so padded z lanes are exactly 0 (and w3's padded rows are 0 anyway).
    std = jnp.exp(0.5 * logvar)
    z = mu + eps_ref[...] * std                                   # (TB, 64) f32

    # ---- decode: h3 = relu(z @ W3 + b3); recon = sigmoid(h3 @ W4 + b4) -----
    h3 = jnp.dot(z.astype(jnp.bfloat16), w3_ref[...],
                 preferred_element_type=jnp.float32) + b3_ref[...]
    h3 = jnp.maximum(h3, 0.0)                                     # (TB, 512)

    logits = jnp.dot(h3.astype(jnp.bfloat16), w4_ref[...],
                     preferred_element_type=jnp.float32) + b4_ref[...]  # (TB, 784)
    # Exact sigmoid (HBM-bound kernel; divide costs nothing on wall clock).
    recon_ref[...] = (1.0 / (1.0 + jnp.exp(-logits))).astype(recon_ref.dtype)
    mulv_ref[...] = mulv


@functools.partial(jax.jit, static_argnames=("tb",))
def vae_forward(x_nchw, eps, kparams, tb=512):
    """Forward pass matching torch VAE.forward.

    x_nchw:  (B, 1, 28, 28) float32 (or bf16)
    eps:     (B, 20) float32 standard-normal noise (stand-in for randn_like)
    kparams: padded/fused bf16 kernel params from prepare_kernel_params().
    Returns (recon (B, 784) bf16, mu (B, 20) f32, logvar (B, 20) f32).
    """
    B = x_nchw.shape[0]
    x = x_nchw.reshape(B, D_IN).astype(jnp.bfloat16)   # x.view(-1, 784), bf16 stream

    # Batch tiling: at least 2 grid steps (v7x megacore sharding + pipelining),
    # TB derived from the step count so batch padding stays small.
    n_steps = max(2, _cdiv(B, tb))
    TB = _round_up(_cdiv(B, n_steps), 8)
    Bp = n_steps * TB

    if Bp != B:
        x = jnp.pad(x, ((0, Bp - B), (0, 0)))
    # eps padded to 64 lanes (tiny: 256 B/row). Padded lanes must stay zero.
    # TODO(synk): torch.randn_like is sampled outside the kernel (deterministic
    # eps input); in-kernel pltpu PRNG could remove this input stream entirely.
    eps_p = jnp.zeros((Bp, LAT_P), jnp.float32).at[:B, :LAT].set(eps)

    grid = (n_steps,)

    def row_spec(feat):
        return pl.BlockSpec((TB, feat), lambda i: (i, 0))

    def const_spec(shape):
        return pl.BlockSpec(shape, lambda i: (0, 0))   # VMEM-resident weights

    recon_p, mulv_p = pl.pallas_call(
        _vae_kernel,
        grid=grid,
        in_specs=[
            row_spec(D_IN),                    # x  (bf16, 784 lanes = full dim)
            row_spec(LAT_P),                   # eps (f32, 64 lanes = full dim)
            const_spec((D_IN, D_HID_P)),       # w1 (bf16)
            const_spec((1, D_HID_P)),          # b1 (f32)
            const_spec((D_HID_P, 2 * LAT_P)),  # w2 = [w21 | w22] fused (bf16)
            const_spec((1, 2 * LAT_P)),        # b2 = [b21 | b22] (f32)
            const_spec((LAT_P, D_HID_P)),      # w3 (bf16)
            const_spec((1, D_HID_P)),          # b3 (f32)
            const_spec((D_HID_P, D_IN)),       # w4 (bf16)
            const_spec((1, D_IN)),             # b4 (f32)
        ],
        out_specs=(row_spec(D_IN), row_spec(2 * LAT_P)),
        out_shape=(jax.ShapeDtypeStruct((Bp, D_IN), jnp.bfloat16),
                   jax.ShapeDtypeStruct((Bp, 2 * LAT_P), jnp.float32)),
        compiler_params=pltpu.CompilerParams(
            dimension_semantics=("parallel",),
            vmem_limit_bytes=48 << 20),
    )(x, eps_p,
      kparams["w1"], kparams["b1"],
      kparams["w2"], kparams["b2"],
      kparams["w3"], kparams["b3"],
      kparams["w4"], kparams["b4"])

    # Only batch-tail slicing remains (a no-op when B is already aligned);
    # a fused downstream consumer could take the padded outputs directly.
    recon = recon_p if Bp == B else recon_p[:B]
    mu = mulv_p[:B, :LAT]
    logvar = mulv_p[:B, LAT_P:LAT_P + LAT]
    return recon, mu, logvar


def init_params(key):
    """nn.Linear-style init (uniform +/- 1/sqrt(fan_in)), pre-transposed to
    (in_features, out_features), unpadded f32."""
    dims = {
        "1": (784, 400),
        "21": (400, 20),
        "22": (400, 20),
        "3": (20, 400),
        "4": (400, 784),
    }
    params = {}
    keys = jax.random.split(key, 2 * len(dims))
    for i, (name, (fan_in, fan_out)) in enumerate(dims.items()):
        bound = 1.0 / jnp.sqrt(fan_in)
        wk, bk = keys[2 * i], keys[2 * i + 1]
        params[f"w{name}"] = jax.random.uniform(
            wk, (fan_in, fan_out), jnp.float32, -bound, bound)
        params[f"b{name}"] = jax.random.uniform(
            bk, (1, fan_out), jnp.float32, -bound, bound)
    return params


def prepare_kernel_params(p):
    """Zero-pad weights to lane-aligned shapes, fuse fc21/fc22, cast to bf16.
    One-time prep cost; input (784) and output (784) feature dims stay unpadded."""
    def pad_to(a, shape):
        out = jnp.zeros(shape, jnp.float32)
        return out.at[:a.shape[0], :a.shape[1]].set(a)

    w2 = jnp.zeros((D_HID_P, 2 * LAT_P), jnp.float32)
    w2 = w2.at[:D_HID, :LAT].set(p["w21"]).at[:D_HID, LAT_P:LAT_P + LAT].set(p["w22"])
    b2 = jnp.zeros((1, 2 * LAT_P), jnp.float32)
    b2 = b2.at[:, :LAT].set(p["b21"]).at[:, LAT_P:LAT_P + LAT].set(p["b22"])

    return {
        "w1": pad_to(p["w1"], (D_IN, D_HID_P)).astype(jnp.bfloat16),   # (784, 512)
        "b1": pad_to(p["b1"], (1, D_HID_P)),
        "w2": w2.astype(jnp.bfloat16),                                 # (512, 128)
        "b2": b2,
        "w3": pad_to(p["w3"], (LAT_P, D_HID_P)).astype(jnp.bfloat16),  # (64, 512)
        "b3": pad_to(p["b3"], (1, D_HID_P)),
        "w4": pad_to(p["w4"], (D_HID_P, D_IN)).astype(jnp.bfloat16),   # (512, 784)
        "b4": p["b4"],                                                 # (1, 784)
    }


def vae_reference(x_nchw, eps, p):
    """Pure-JAX f32 reference matching the PyTorch module."""
    x = x_nchw.reshape(-1, D_IN)
    h1 = jax.nn.relu(x @ p["w1"] + p["b1"])
    mu = h1 @ p["w21"] + p["b21"]
    logvar = h1 @ p["w22"] + p["b22"]
    z = mu + eps * jnp.exp(0.5 * logvar)
    h3 = jax.nn.relu(z @ p["w3"] + p["b3"])
    recon = jax.nn.sigmoid(h3 @ p["w4"] + p["b4"])
    return recon, mu, logvar


if __name__ == "__main__":
    key = jax.random.PRNGKey(0)
    k_param, k_x, k_eps = jax.random.split(key, 3)

    B = 8
    x = jax.random.uniform(k_x, (B, 1, 28, 28), jnp.float32)   # MNIST-like NCHW
    eps = jax.random.normal(k_eps, (B, LAT), jnp.float32)      # reparam noise

    params = init_params(k_param)
    kparams = prepare_kernel_params(params)

    # n_steps >= 2, so this also exercises the multi-tile pipelined path.
    recon, mu, logvar = vae_forward(x, eps, kparams)
    jax.block_until_ready((recon, mu, logvar))

    assert recon.shape == (B, D_IN) and mu.shape == (B, LAT) and logvar.shape == (B, LAT)
    assert bool(jnp.all(jnp.isfinite(recon.astype(jnp.float32))))

    # Correctness vs. f32 reference (bf16 weights/x/recon -> loose tolerance).
    r_ref, mu_ref, lv_ref = vae_reference(x, eps, params)
    assert bool(jnp.allclose(recon.astype(jnp.float32), r_ref, atol=3e-2))
    assert bool(jnp.allclose(mu, mu_ref, atol=4e-2))
    assert bool(jnp.allclose(logvar, lv_ref, atol=4e-2))

    print("KERNEL_OK")
</pallas_src>

<mosaic_0001>
module attributes {stable_mosaic.version = 11 : i64} {
  func.func @_vae_kernel(%arg0: i32, %arg1: memref<8x784xbf16, #tpu.memory_space<vmem>>, %arg2: memref<8x64xf32, #tpu.memory_space<vmem>>, %arg3: memref<784x512xbf16, #tpu.memory_space<vmem>>, %arg4: memref<1x512xf32, #tpu.memory_space<vmem>>, %arg5: memref<512x128xbf16, #tpu.memory_space<vmem>>, %arg6: memref<1x128xf32, #tpu.memory_space<vmem>>, %arg7: memref<64x512xbf16, #tpu.memory_space<vmem>>, %arg8: memref<1x512xf32, #tpu.memory_space<vmem>>, %arg9: memref<512x784xbf16, #tpu.memory_space<vmem>>, %arg10: memref<1x784xf32, #tpu.memory_space<vmem>>, %arg11: memref<8x784xbf16, #tpu.memory_space<vmem>>, %arg12: memref<8x128xf32, #tpu.memory_space<vmem>>) attributes {dimension_semantics = [#tpu.dimension_semantics<parallel>], iteration_bounds = array<i64: 2>, scalar_prefetch = 0 : i64, scratch_operands = 0 : i64, tpu.core_type = #tpu.core_type<tc>, window_params = [{transform_indices = @transform_0, window_bounds = array<i64: 8, 784>}, {transform_indices = @transform_1, window_bounds = array<i64: 8, 64>}, {pipeline_mode = #tpu.pipeline_mode<synchronous>, transform_indices = @transform_2, window_bounds = array<i64: 784, 512>}, {pipeline_mode = #tpu.pipeline_mode<synchronous>, transform_indices = @transform_3, window_bounds = array<i64: 1, 512>}, {pipeline_mode = #tpu.pipeline_mode<synchronous>, transform_indices = @transform_4, window_bounds = array<i64: 512, 128>}, {pipeline_mode = #tpu.pipeline_mode<synchronous>, transform_indices = @transform_5, window_bounds = array<i64: 1, 128>}, {pipeline_mode = #tpu.pipeline_mode<synchronous>, transform_indices = @transform_6, window_bounds = array<i64: 64, 512>}, {pipeline_mode = #tpu.pipeline_mode<synchronous>, transform_indices = @transform_7, window_bounds = array<i64: 1, 512>}, {pipeline_mode = #tpu.pipeline_mode<synchronous>, transform_indices = @transform_8, window_bounds = array<i64: 512, 784>}, {pipeline_mode = #tpu.pipeline_mode<synchronous>, transform_indices = @transform_9, window_bounds = array<i64: 1, 784>}, {transform_indices = @transform_10, window_bounds = array<i64: 8, 784>}, {transform_indices = @transform_11, window_bounds = array<i64: 8, 128>}]} {
    %c0 = arith.constant 0 : index
    %c0_0 = arith.constant 0 : index
    %0 = vector.load %arg1[%c0, %c0_0] : memref<8x784xbf16, #tpu.memory_space<vmem>>, vector<8x784xbf16>
    %c0_1 = arith.constant 0 : index
    %c0_2 = arith.constant 0 : index
    %1 = vector.load %arg3[%c0_1, %c0_2] : memref<784x512xbf16, #tpu.memory_space<vmem>>, vector<784x512xbf16>
    %cst = arith.constant dense<0.000000e+00> : vector<8x512xf32>
    %2 = tpu.matmul %0, %1, %cst {dimension_numbers = #tpu.dot_dimension_numbers<[1], [0], [0], [1], [0, 0, 1, 1], [], []>} : vector<8x784xbf16>, vector<784x512xbf16>, vector<8x512xf32> -> vector<8x512xf32>
    %c0_3 = arith.constant 0 : index
    %c0_4 = arith.constant 0 : index
    %3 = vector.load %arg4[%c0_3, %c0_4] : memref<1x512xf32, #tpu.memory_space<vmem>>, vector<1x512xf32>
    %4 = vector.broadcast %3 : vector<1x512xf32> to vector<8x512xf32>
    %5 = arith.addf %2, %4 : vector<8x512xf32>
    %cst_5 = arith.constant 0.000000e+00 : f32
    %6 = vector.broadcast %cst_5 : f32 to vector<8x512xf32>
    %7 = arith.maximumf %5, %6 : vector<8x512xf32>
    %8 = arith.truncf %7 : vector<8x512xf32> to vector<8x512xbf16>
    %c0_6 = arith.constant 0 : index
    %c0_7 = arith.constant 0 : index
    %9 = vector.load %arg5[%c0_6, %c0_7] : memref<512x128xbf16, #tpu.memory_space<vmem>>, vector<512x128xbf16>
    %cst_8 = arith.constant dense<0.000000e+00> : vector<8x128xf32>
    %10 = tpu.matmul %8, %9, %cst_8 {dimension_numbers = #tpu.dot_dimension_numbers<[1], [0], [0], [1], [0, 0, 1, 1], [], []>} : vector<8x512xbf16>, vector<512x128xbf16>, vector<8x128xf32> -> vector<8x128xf32>
    %c0_9 = arith.constant 0 : index
    %c0_10 = arith.constant 0 : index
    %11 = vector.load %arg6[%c0_9, %c0_10] : memref<1x128xf32, #tpu.memory_space<vmem>>, vector<1x128xf32>
    %12 = vector.broadcast %11 : vector<1x128xf32> to vector<8x128xf32>
    %13 = arith.addf %10, %12 : vector<8x128xf32>
    %14 = vector.extract_strided_slice %13 {offsets = [0, 0], sizes = [8, 64], strides = [1, 1]} : vector<8x128xf32> to vector<8x64xf32>
    %15 = vector.extract_strided_slice %13 {offsets = [0, 64], sizes = [8, 64], strides = [1, 1]} : vector<8x128xf32> to vector<8x64xf32>
    %cst_11 = arith.constant 5.000000e-01 : f32
    %16 = vector.broadcast %cst_11 : f32 to vector<8x64xf32>
    %17 = arith.mulf %16, %15 : vector<8x64xf32>
    %18 = math.exp %17 : vector<8x64xf32>
    %c0_12 = arith.constant 0 : index
    %c0_13 = arith.constant 0 : index
    %19 = vector.load %arg2[%c0_12, %c0_13] : memref<8x64xf32, #tpu.memory_space<vmem>>, vector<8x64xf32>
    %20 = arith.mulf %19, %18 : vector<8x64xf32>
    %21 = arith.addf %14, %20 : vector<8x64xf32>
    %22 = arith.truncf %21 : vector<8x64xf32> to vector<8x64xbf16>
    %c0_14 = arith.constant 0 : index
    %c0_15 = arith.constant 0 : index
    %23 = vector.load %arg7[%c0_14, %c0_15] : memref<64x512xbf16, #tpu.memory_space<vmem>>, vector<64x512xbf16>
    %cst_16 = arith.constant dense<0.000000e+00> : vector<8x512xf32>
    %24 = tpu.matmul %22, %23, %cst_16 {dimension_numbers = #tpu.dot_dimension_numbers<[1], [0], [0], [1], [0, 0, 1, 1], [], []>} : vector<8x64xbf16>, vector<64x512xbf16>, vector<8x512xf32> -> vector<8x512xf32>
    %c0_17 = arith.constant 0 : index
    %c0_18 = arith.constant 0 : index
    %25 = vector.load %arg8[%c0_17, %c0_18] : memref<1x512xf32, #tpu.memory_space<vmem>>, vector<1x512xf32>
    %26 = vector.broadcast %25 : vector<1x512xf32> to vector<8x512xf32>
    %27 = arith.addf %24, %26 : vector<8x512xf32>
    %cst_19 = arith.constant 0.000000e+00 : f32
    %28 = vector.broadcast %cst_19 : f32 to vector<8x512xf32>
    %29 = arith.maximumf %27, %28 : vector<8x512xf32>
    %30 = arith.truncf %29 : vector<8x512xf32> to vector<8x512xbf16>
    %c0_20 = arith.constant 0 : index
    %c0_21 = arith.constant 0 : index
    %31 = vector.load %arg9[%c0_20, %c0_21] : memref<512x784xbf16, #tpu.memory_space<vmem>>, vector<512x784xbf16>
    %cst_22 = arith.constant dense<0.000000e+00> : vector<8x784xf32>
    %32 = tpu.matmul %30, %31, %cst_22 {dimension_numbers = #tpu.dot_dimension_numbers<[1], [0], [0], [1], [0, 0, 1, 1], [], []>} : vector<8x512xbf16>, vector<512x784xbf16>, vector<8x784xf32> -> vector<8x784xf32>
    %c0_23 = arith.constant 0 : index
    %c0_24 = arith.constant 0 : index
    %33 = vector.load %arg10[%c0_23, %c0_24] : memref<1x784xf32, #tpu.memory_space<vmem>>, vector<1x784xf32>
    %34 = vector.broadcast %33 : vector<1x784xf32> to vector<8x784xf32>
    %35 = arith.addf %32, %34 : vector<8x784xf32>
    %cst_25 = arith.constant 0.000000e+00 : f32
    %36 = vector.broadcast %cst_25 : f32 to vector<8x784xf32>
    %37 = arith.subf %36, %35 : vector<8x784xf32>
    %38 = math.exp %37 : vector<8x784xf32>
    %cst_26 = arith.constant 1.000000e+00 : f32
    %39 = vector.broadcast %cst_26 : f32 to vector<8x784xf32>
    %40 = arith.addf %39, %38 : vector<8x784xf32>
    %cst_27 = arith.constant 1.000000e+00 : f32
    %41 = vector.broadcast %cst_27 : f32 to vector<8x784xf32>
    %42 = arith.divf %41, %40 : vector<8x784xf32>
    %43 = arith.truncf %42 : vector<8x784xf32> to vector<8x784xbf16>
    %c0_28 = arith.constant 0 : index
    %c0_29 = arith.constant 0 : index
    %44 = vector.load %arg11[%c0_28, %c0_29] : memref<8x784xbf16, #tpu.memory_space<vmem>>, vector<8x784xbf16>
    tpu.vector_store %arg11[%c0_28, %c0_29], %43 {strides = array<i32>} : memref<8x784xbf16, #tpu.memory_space<vmem>>, vector<8x784xbf16>,
    %c0_30 = arith.constant 0 : index
    %c0_31 = arith.constant 0 : index
    %45 = vector.load %arg12[%c0_30, %c0_31] : memref<8x128xf32, #tpu.memory_space<vmem>>, vector<8x128xf32>
    tpu.vector_store %arg12[%c0_30, %c0_31], %13 {strides = array<i32>} : memref<8x128xf32, #tpu.memory_space<vmem>>, vector<8x128xf32>,
    return
  }
  func.func @transform_0(%arg0: i32) -> (i32, i32) {
    %c0_i32 = arith.constant 0 : i32
    %c0_i32_0 = arith.constant 0 : i32
    return %arg0, %c0_i32 : i32, i32
  }
  func.func @transform_1(%arg0: i32) -> (i32, i32) {
    %c0_i32 = arith.constant 0 : i32
    %c0_i32_0 = arith.constant 0 : i32
    return %arg0, %c0_i32 : i32, i32
  }
  func.func @transform_2(%arg0: i32) -> (i32, i32) {
    %c0_i32 = arith.constant 0 : i32
    %c0_i32_0 = arith.constant 0 : i32
    %c0_i32_1 = arith.constant 0 : i32
    return %c0_i32, %c0_i32_0 : i32, i32
  }
  func.func @transform_3(%arg0: i32) -> (i32, i32) {
    %c0_i32 = arith.constant 0 : i32
    %c0_i32_0 = arith.constant 0 : i32
    %c0_i32_1 = arith.constant 0 : i32
    return %c0_i32, %c0_i32_0 : i32, i32
  }
  func.func @transform_4(%arg0: i32) -> (i32, i32) {
    %c0_i32 = arith.constant 0 : i32
    %c0_i32_0 = arith.constant 0 : i32
    %c0_i32_1 = arith.constant 0 : i32
    return %c0_i32, %c0_i32_0 : i32, i32
  }
  func.func @transform_5(%arg0: i32) -> (i32, i32) {
    %c0_i32 = arith.constant 0 : i32
    %c0_i32_0 = arith.constant 0 : i32
    %c0_i32_1 = arith.constant 0 : i32
    return %c0_i32, %c0_i32_0 : i32, i32
  }
  func.func @transform_6(%arg0: i32) -> (i32, i32) {
    %c0_i32 = arith.constant 0 : i32
    %c0_i32_0 = arith.constant 0 : i32
    %c0_i32_1 = arith.constant 0 : i32
    return %c0_i32, %c0_i32_0 : i32, i32
  }
  func.func @transform_7(%arg0: i32) -> (i32, i32) {
    %c0_i32 = arith.constant 0 : i32
    %c0_i32_0 = arith.constant 0 : i32
    %c0_i32_1 = arith.constant 0 : i32
    return %c0_i32, %c0_i32_0 : i32, i32
  }
  func.func @transform_8(%arg0: i32) -> (i32, i32) {
    %c0_i32 = arith.constant 0 : i32
    %c0_i32_0 = arith.constant 0 : i32
    %c0_i32_1 = arith.constant 0 : i32
    return %c0_i32, %c0_i32_0 : i32, i32
  }
  func.func @transform_9(%arg0: i32) -> (i32, i32) {
    %c0_i32 = arith.constant 0 : i32
    %c0_i32_0 = arith.constant 0 : i32
    %c0_i32_1 = arith.constant 0 : i32
    return %c0_i32, %c0_i32_0 : i32, i32
  }
  func.func @transform_10(%arg0: i32) -> (i32, i32) {
    %c0_i32 = arith.constant 0 : i32
    %c0_i32_0 = arith.constant 0 : i32
    return %arg0, %c0_i32 : i32, i32
  }
  func.func @transform_11(%arg0: i32) -> (i32, i32) {
    %c0_i32 = arith.constant 0 : i32
    %c0_i32_0 = arith.constant 0 : i32
    return %arg0, %c0_i32 : i32, i32
  }
}

</mosaic_0001>

<llo_original>
// kernel: vae_forward.1
$region0: #{vae_forward.1}
  #allocation0 [shape = 'u32[]', space=smem, size = 0x4, offset = 0x4, fixed_abs, tag = 'smem constant byte address 0x4 - core index']
  #allocation1 [shape = 'u32[72,128]{1,0:T(1,128)}', space=vmem, size = 0x9000, scoped, tag = 'internal scratch']
  %s0 = inlined_call_operand.vmem [shape: bf16[16,784], index: 0, kind: input, shape index: {}]
  %s1 = inlined_call_operand.vmem [shape: f32[16,64], index: 1, kind: input, shape index: {}]
  %s2 = inlined_call_operand.vmem [shape: bf16[784,512], index: 2, kind: input, shape index: {}]
  %s3 = inlined_call_operand.vmem [shape: f32[1,512], index: 3, kind: input, shape index: {}]
  %s4 = inlined_call_operand.vmem [shape: bf16[512,128], index: 4, kind: input, shape index: {}]
  %s5 = inlined_call_operand.vmem [shape: f32[1,128], index: 5, kind: input, shape index: {}]
  %s6 = inlined_call_operand.vmem [shape: bf16[64,512], index: 6, kind: input, shape index: {}]
  %s7 = inlined_call_operand.vmem [shape: f32[1,512], index: 7, kind: input, shape index: {}]
  %s8 = inlined_call_operand.vmem [shape: bf16[512,784], index: 8, kind: input, shape index: {}]
  %s9 = inlined_call_operand.vmem [shape: f32[1,784], index: 9, kind: input, shape index: {}]
  %s10 = inlined_call_operand.vmem [shape: bf16[16,784], index: 10, kind: output, shape index: {0}]
  %s11 = inlined_call_operand.vmem [shape: f32[16,128], index: 11, kind: output, shape index: {1}]
  %12 = xla_tuple %s10, %s11
  %s13 = sld [smem:[#allocation0]]
  $region81: #{vae_forward.1} parent=0
    _
  %s15 = ssub.s32 1, %s13
  %s16 = scalar_select 0, %s15, %s13
  loop: start=0, step=1, limit=4
  $region2: #{vae_forward.1} parent=0 // loop_pre_header
    _
  $region3: #{vae_forward.1} parent=0 // loop_header
    %s18 = sphi 0, %s22
    %p19 = scmp.ge.s32.totalorder %s18, 4
    %s28 = sphi 0, %s30
    %s31 = sphi 0, %s28
    %s32 = sphi 0, %s31
    %s48 = sphi 0, %s32
    %s54 = sphi 0, %s56
    %s57 = sphi 0, %s54
    %s58 = sphi 0, %s57
    %s74 = sphi 0, %s58
    %s78 = sphi 0, %s78
    %s80 = sphi 0, %s78
    %s81 = sphi 0, %s80
    %s95 = sphi 0, %s81
    %s99 = sphi 0, %s99
    %s101 = sphi 0, %s99
    %s102 = sphi 0, %s101
    %s116 = sphi 0, %s102
    %s120 = sphi 0, %s120
    %s122 = sphi 0, %s120
    %s123 = sphi 0, %s122
    %s137 = sphi 0, %s123
    %s141 = sphi 0, %s141
    %s143 = sphi 0, %s141
    %s144 = sphi 0, %s143
    %s158 = sphi 0, %s144
    %s162 = sphi 0, %s162
    %s164 = sphi 0, %s162
    %s165 = sphi 0, %s164
    %s179 = sphi 0, %s165
    %s183 = sphi 0, %s183
    %s185 = sphi 0, %s183
    %s186 = sphi 0, %s185
    %s200 = sphi 0, %s186
    %s204 = sphi 0, %s204
    %s206 = sphi 0, %s204
    %s207 = sphi 0, %s206
    %s221 = sphi 0, %s207
    %s225 = sphi 0, %s225
    %s227 = sphi 0, %s225
    %s228 = sphi 0, %s227
    %s242 = sphi 0, %s228
    %s248 = sphi 0, %s250
    %s251 = sphi 0, %s248
    %s252 = sphi 0, %s251
    %s268 = sphi 0, %s252
    %s274 = sphi 0, %s276
    %s277 = sphi 0, %s274
    %s278 = sphi 0, %s277
    %s294 = sphi 0, %s278
  $region4: #{vae_forward.1} parent=0 // loop_header_branch
    %21 = sbr.rel (%p19) target = $region8
  $region5: #{vae_forward.1} parent=0 // loop_body
    %s23 = ssub.s32 %s18, 1
    %s24 = ssub.s32 %s18, 2
    %s25 = sadd.s32 %s18, 1
    %s26 = ssub.s32 %s18, %s25
    %p27 = scmp.eq.s32.totalorder %s26, 0
    %s29 = sadd.s32 %s28, 1
    %s30 = scalar_select %p27, %s28, %s29
    %p33 = pneg %p27
    %p34 = scmp.eq.s32.totalorder %s18, 1
    %p35 = por %p33, %p34
    %p36 = scmp.ne.s32.totalorder %s28, %s31
    %p37 = scmp.eq.s32.totalorder %s18, 0
    %p38 = por %p36, %p37
    %p39 = scmp.ne.s32.totalorder %s28, %s31
    %p40 = scmp.eq.s32.totalorder %s23, 1
    %p41 = por %p39, %p40
    %p42 = scmp.ne.s32.totalorder %s31, %s32
    %p43 = scmp.eq.s32.totalorder %s23, 0
    %p44 = por %p42, %p43
    %p45 = scmp.ne.s32.totalorder %s31, %s32
    %p46 = scmp.eq.s32.totalorder %s24, 1
    %p47 = por %p45, %p46
    %p49 = scmp.ne.s32.totalorder %s32, %s48
    %p50 = scmp.eq.s32.totalorder %s24, 0
    %p51 = por %p49, %p50
    %s52 = ssub.s32 %s18, %s25
    %p53 = scmp.eq.s32.totalorder %s52, 0
    %s55 = sadd.s32 %s54, 1
    %s56 = scalar_select %p53, %s54, %s55
    %p59 = pneg %p53
    %p60 = scmp.eq.s32.totalorder %s18, 1
    %p61 = por %p59, %p60
    %p62 = scmp.ne.s32.totalorder %s54, %s57
    %p63 = scmp.eq.s32.totalorder %s18, 0
    %p64 = por %p62, %p63
    %p65 = scmp.ne.s32.totalorder %s54, %s57
    %p66 = scmp.eq.s32.totalorder %s23, 1
    %p67 = por %p65, %p66
    %p68 = scmp.ne.s32.totalorder %s57, %s58
    %p69 = scmp.eq.s32.totalorder %s23, 0
    %p70 = por %p68, %p69
    %p71 = scmp.ne.s32.totalorder %s57, %s58
    %p72 = scmp.eq.s32.totalorder %s24, 1
    %p73 = por %p71, %p72
    %p75 = scmp.ne.s32.totalorder %s58, %s74
    %p76 = scmp.eq.s32.totalorder %s24, 0
    %p77 = por %p75, %p76
    %s79 = sadd.s32 %s78, 1
    %p82 = scmp.eq.s32.totalorder %s18, 1
    %p83 = scmp.ne.s32.totalorder %s78, %s80
    %p84 = scmp.eq.s32.totalorder %s18, 0
    %p85 = por %p83, %p84
    %p86 = scmp.ne.s32.totalorder %s78, %s80
    %p87 = scmp.eq.s32.totalorder %s23, 1
    %p88 = por %p86, %p87
    %p89 = scmp.ne.s32.totalorder %s80, %s81
    %p90 = scmp.eq.s32.totalorder %s23, 0
    %p91 = por %p89, %p90
    %p92 = scmp.ne.s32.totalorder %s80, %s81
    %p93 = scmp.eq.s32.totalorder %s24, 1
    %p94 = por %p92, %p93
    %p96 = scmp.ne.s32.totalorder %s81, %s95
    %p97 = scmp.eq.s32.totalorder %s24, 0
    %p98 = por %p96, %p97
    %s100 = sadd.s32 %s99, 1
    %p103 = scmp.eq.s32.totalorder %s18, 1
    %p104 = scmp.ne.s32.totalorder %s99, %s101
    %p105 = scmp.eq.s32.totalorder %s18, 0
    %p106 = por %p104, %p105
    %p107 = scmp.ne.s32.totalorder %s99, %s101
    %p108 = scmp.eq.s32.totalorder %s23, 1
    %p109 = por %p107, %p108
    %p110 = scmp.ne.s32.totalorder %s101, %s102
    %p111 = scmp.eq.s32.totalorder %s23, 0
    %p112 = por %p110, %p111
    %p113 = scmp.ne.s32.totalorder %s101, %s102
    %p114 = scmp.eq.s32.totalorder %s24, 1
    %p115 = por %p113, %p114
    %p117 = scmp.ne.s32.totalorder %s102, %s116
    %p118 = scmp.eq.s32.totalorder %s24, 0
    %p119 = por %p117, %p118
    %s121 = sadd.s32 %s120, 1
    %p124 = scmp.eq.s32.totalorder %s18, 1
    %p125 = scmp.ne.s32.totalorder %s120, %s122
    %p126 = scmp.eq.s32.totalorder %s18, 0
    %p127 = por %p125, %p126
    %p128 = scmp.ne.s32.totalorder %s120, %s122
    %p129 = scmp.eq.s32.totalorder %s23, 1
    %p130 = por %p128, %p129
    %p131 = scmp.ne.s32.totalorder %s122, %s123
    %p132 = scmp.eq.s32.totalorder %s23, 0
    %p133 = por %p131, %p132
    %p134 = scmp.ne.s32.totalorder %s122, %s123
    %p135 = scmp.eq.s32.totalorder %s24, 1
    %p136 = por %p134, %p135
    %p138 = scmp.ne.s32.totalorder %s123, %s137
    %p139 = scmp.eq.s32.totalorder %s24, 0
    %p140 = por %p138, %p139
    %s142 = sadd.s32 %s141, 1
    %p145 = scmp.eq.s32.totalorder %s18, 1
    %p146 = scmp.ne.s32.totalorder %s141, %s143
    %p147 = scmp.eq.s32.totalorder %s18, 0
    %p148 = por %p146, %p147
    %p149 = scmp.ne.s32.totalorder %s141, %s143
    %p150 = scmp.eq.s32.totalorder %s23, 1
    %p151 = por %p149, %p150
    %p152 = scmp.ne.s32.totalorder %s143, %s144
    %p153 = scmp.eq.s32.totalorder %s23, 0
    %p154 = por %p152, %p153
    %p155 = scmp.ne.s32.totalorder %s143, %s144
    %p156 = scmp.eq.s32.totalorder %s24, 1
    %p157 = por %p155, %p156
    %p159 = scmp.ne.s32.totalorder %s144, %s158
    %p160 = scmp.eq.s32.totalorder %s24, 0
    %p161 = por %p159, %p160
    %s163 = sadd.s32 %s162, 1
    %p166 = scmp.eq.s32.totalorder %s18, 1
    %p167 = scmp.ne.s32.totalorder %s162, %s164
    %p168 = scmp.eq.s32.totalorder %s18, 0
    %p169 = por %p167, %p168
    %p170 = scmp.ne.s32.totalorder %s162, %s164
    %p171 = scmp.eq.s32.totalorder %s23, 1
    %p172 = por %p170, %p171
    %p173 = scmp.ne.s32.totalorder %s164, %s165
    %p174 = scmp.eq.s32.totalorder %s23, 0
    %p175 = por %p173, %p174
    %p176 = scmp.ne.s32.totalorder %s164, %s165
    %p177 = scmp.eq.s32.totalorder %s24, 1
    %p178 = por %p176, %p177
    %p180 = scmp.ne.s32.totalorder %s165, %s179
    %p181 = scmp.eq.s32.totalorder %s24, 0
    %p182 = por %p180, %p181
    %s184 = sadd.s32 %s183, 1
    %p187 = scmp.eq.s32.totalorder %s18, 1
    %p188 = scmp.ne.s32.totalorder %s183, %s185
    %p189 = scmp.eq.s32.totalorder %s18, 0
    %p190 = por %p188, %p189
    %p191 = scmp.ne.s32.totalorder %s183, %s185
    %p192 = scmp.eq.s32.totalorder %s23, 1
    %p193 = por %p191, %p192
    %p194 = scmp.ne.s32.totalorder %s185, %s186
    %p195 = scmp.eq.s32.totalorder %s23, 0
    %p196 = por %p194, %p195
    %p197 = scmp.ne.s32.totalorder %s185, %s186
    %p198 = scmp.eq.s32.totalorder %s24, 1
    %p199 = por %p197, %p198
    %p201 = scmp.ne.s32.totalorder %s186, %s200
    %p202 = scmp.eq.s32.totalorder %s24, 0
    %p203 = por %p201, %p202
    %s205 = sadd.s32 %s204, 1
    %p208 = scmp.eq.s32.totalorder %s18, 1
    %p209 = scmp.ne.s32.totalorder %s204, %s206
    %p210 = scmp.eq.s32.totalorder %s18, 0
    %p211 = por %p209, %p210
    %p212 = scmp.ne.s32.totalorder %s204, %s206
    %p213 = scmp.eq.s32.totalorder %s23, 1
    %p214 = por %p212, %p213
    %p215 = scmp.ne.s32.totalorder %s206, %s207
    %p216 = scmp.eq.s32.totalorder %s23, 0
    %p217 = por %p215, %p216
    %p218 = scmp.ne.s32.totalorder %s206, %s207
    %p219 = scmp.eq.s32.totalorder %s24, 1
    %p220 = por %p218, %p219
    %p222 = scmp.ne.s32.totalorder %s207, %s221
    %p223 = scmp.eq.s32.totalorder %s24, 0
    %p224 = por %p222, %p223
    %s226 = sadd.s32 %s225, 1
    %p229 = scmp.eq.s32.totalorder %s18, 1
    %p230 = scmp.ne.s32.totalorder %s225, %s227
    %p231 = scmp.eq.s32.totalorder %s18, 0
    %p232 = por %p230, %p231
    %p233 = scmp.ne.s32.totalorder %s225, %s227
    %p234 = scmp.eq.s32.totalorder %s23, 1
    %p235 = por %p233, %p234
    %p236 = scmp.ne.s32.totalorder %s227, %s228
    %p237 = scmp.eq.s32.totalorder %s23, 0
    %p238 = por %p236, %p237
    %p239 = scmp.ne.s32.totalorder %s227, %s228
    %p240 = scmp.eq.s32.totalorder %s24, 1
    %p241 = por %p239, %p240
    %p243 = scmp.ne.s32.totalorder %s228, %s242
    %p244 = scmp.eq.s32.totalorder %s24, 0
    %p245 = por %p243, %p244
    %s246 = ssub.s32 %s18, %s25
    %p247 = scmp.eq.s32.totalorder %s246, 0
    %s249 = sadd.s32 %s248, 1
    %s250 = scalar_select %p247, %s248, %s249
    %p253 = pneg %p247
    %p254 = scmp.eq.s32.totalorder %s18, 1
    %p255 = por %p253, %p254
    %p256 = scmp.ne.s32.totalorder %s248, %s251
    %p257 = scmp.eq.s32.totalorder %s18, 0
    %p258 = por %p256, %p257
    %p259 = scmp.ne.s32.totalorder %s248, %s251
    %p260 = scmp.eq.s32.totalorder %s23, 1
    %p261 = por %p259, %p260
    %p262 = scmp.ne.s32.totalorder %s251, %s252
    %p263 = scmp.eq.s32.totalorder %s23, 0
    %p264 = por %p262, %p263
    %p265 = scmp.ne.s32.totalorder %s251, %s252
    %p266 = scmp.eq.s32.totalorder %s24, 1
    %p267 = por %p265, %p266
    %p269 = scmp.ne.s32.totalorder %s252, %s268
    %p270 = scmp.eq.s32.totalorder %s24, 0
    %p271 = por %p269, %p270
    %s272 = ssub.s32 %s18, %s25
    %p273 = scmp.eq.s32.totalorder %s272, 0
    %s275 = sadd.s32 %s274, 1
    %s276 = scalar_select %p273, %s274, %s275
    %p279 = pneg %p273
    %p280 = scmp.eq.s32.totalorder %s18, 1
    %p281 = por %p279, %p280
    %p282 = scmp.ne.s32.totalorder %s274, %s277
    %p283 = scmp.eq.s32.totalorder %s18, 0
    %p284 = por %p282, %p283
    %p285 = scmp.ne.s32.totalorder %s274, %s277
    %p286 = scmp.eq.s32.totalorder %s23, 1
    %p287 = por %p285, %p286
    %p288 = scmp.ne.s32.totalorder %s277, %s278
    %p289 = scmp.eq.s32.totalorder %s23, 0
    %p290 = por %p288, %p289
    %p291 = scmp.ne.s32.totalorder %s277, %s278
    %p292 = scmp.eq.s32.totalorder %s24, 1
    %p293 = por %p291, %p292
    %p295 = scmp.ne.s32.totalorder %s278, %s294
    %p296 = scmp.eq.s32.totalorder %s24, 0
    %p297 = por %p295, %p296
    %p298 = scmp.le.s32.totalorder 1, %s18
    %p299 = scmp.lt.s32.totalorder %s18, 3
    %p300 = pnand %p298, %p299
    %p301 = pneg %p300
    // Predicated region
    $region9: #{vae_forward.1} parent=5 // pred_check
      _
    $region10: #{vae_forward.1} parent=5 // pred_check_branch
      %303 = sbr.rel (%p300) target = $region12
    $region11: #{vae_forward.1} parent=5 // pred_region
      %s304 = ssub.s32 %s18, 1
      // Predicated region
      $region13: #{vae_forward.1} parent=11 // pred_check
        %p305 = pneg %p91
      $region14: #{vae_forward.1} parent=11 // pred_check_branch
        %307 = sbr.rel (%p305) target = $region16
      $region15: #{vae_forward.1} parent=11 // pred_region
        _
      $region16: #{vae_forward.1} parent=11 // pred_fallthru
        _
      // Predicated region
      $region17: #{vae_forward.1} parent=11 // pred_check
        %p308 = pneg %p112
      $region18: #{vae_forward.1} parent=11 // pred_check_branch
        %310 = sbr.rel (%p308) target = $region20
      $region19: #{vae_forward.1} parent=11 // pred_region
        _
      $region20: #{vae_forward.1} parent=11 // pred_fallthru
        _
      // Predicated region
      $region21: #{vae_forward.1} parent=11 // pred_check
        %p311 = pneg %p133
      $region22: #{vae_forward.1} parent=11 // pred_check_branch
        %313 = sbr.rel (%p311) target = $region24
      $region23: #{vae_forward.1} parent=11 // pred_region
        _
      $region24: #{vae_forward.1} parent=11 // pred_fallthru
        _
      // Predicated region
      $region25: #{vae_forward.1} parent=11 // pred_check
        %p314 = pneg %p154
      $region26: #{vae_forward.1} parent=11 // pred_check_branch
        %316 = sbr.rel (%p314) target = $region28
      $region27: #{vae_forward.1} parent=11 // pred_region
        _
      $region28: #{vae_forward.1} parent=11 // pred_fallthru
        _
      // Predicated region
      $region29: #{vae_forward.1} parent=11 // pred_check
        %p317 = pneg %p175
      $region30: #{vae_forward.1} parent=11 // pred_check_branch
        %319 = sbr.rel (%p317) target = $region32
      $region31: #{vae_forward.1} parent=11 // pred_region
        _
      $region32: #{vae_forward.1} parent=11 // pred_fallthru
        _
      // Predicated region
      $region33: #{vae_forward.1} parent=11 // pred_check
        %p320 = pneg %p196
      $region34: #{vae_forward.1} parent=11 // pred_check_branch
        %322 = sbr.rel (%p320) target = $region36
      $region35: #{vae_forward.1} parent=11 // pred_region
        _
      $region36: #{vae_forward.1} parent=11 // pred_fallthru
        _
      // Predicated region
      $region37: #{vae_forward.1} parent=11 // pred_check
        %p323 = pneg %p217
      $region38: #{vae_forward.1} parent=11 // pred_check_branch
        %325 = sbr.rel (%p323) target = $region40
      $region39: #{vae_forward.1} parent=11 // pred_region
        _
      $region40: #{vae_forward.1} parent=11 // pred_fallthru
        _
      // Predicated region
      $region41: #{vae_forward.1} parent=11 // pred_check
        %p326 = pneg %p238
      $region42: #{vae_forward.1} parent=11 // pred_check_branch
        %328 = sbr.rel (%p326) target = $region44
      $region43: #{vae_forward.1} parent=11 // pred_region
        _
      $region44: #{vae_forward.1} parent=11 // pred_fallthru
        _
    $region12: #{vae_forward.1} parent=5 // pred_fallthru
      _
    %p329 = scmp.lt.s32.totalorder %s18, 2
    // Predicated region
    $region45: #{vae_forward.1} parent=5 // pred_check
      %p330 = pneg %p329
    $region46: #{vae_forward.1} parent=5 // pred_check_branch
      %332 = sbr.rel (%p330) target = $region48
    $region47: #{vae_forward.1} parent=5 // pred_region
      // Predicated region
      $region49: #{vae_forward.1} parent=47 // pred_check
        %p333 = pneg %p38
      $region50: #{vae_forward.1} parent=47 // pred_check_branch
        %335 = sbr.rel (%p333) target = $region52
      $region51: #{vae_forward.1} parent=47 // pred_region
        %p336 = scmp.lt.s32.totalorder %s18, 1
        %s337 = scalar_select %p336, %s18, 1
        %s338 = smul.addr %s337, 7
        %s339 = smul.addr %s338, 4
        %s340 = scalar_lea.vmem %s0, %s339
      $region52: #{vae_forward.1} parent=47 // pred_fallthru
        _
      // Predicated region
      $region53: #{vae_forward.1} parent=47 // pred_check
        %p341 = pneg %p64
      $region54: #{vae_forward.1} parent=47 // pred_check_branch
        %343 = sbr.rel (%p341) target = $region56
      $region55: #{vae_forward.1} parent=47 // pred_region
        %p344 = scmp.lt.s32.totalorder %s18, 1
        %s345 = scalar_select %p344, %s18, 1
        %s346 = smul.addr %s345, 8
        %s347 = scalar_lea.vmem %s1, %s346
      $region56: #{vae_forward.1} parent=47 // pred_fallthru
        _
    $region48: #{vae_forward.1} parent=5 // pred_fallthru
      _
    %p348 = scmp.le.s32.totalorder 1, %s18
    %p349 = scmp.lt.s32.totalorder %s18, 3
    %p350 = pnand %p348, %p349
    %p351 = pneg %p350
    // Predicated region
    $region57: #{vae_forward.1} parent=5 // pred_check
      _
    $region58: #{vae_forward.1} parent=5 // pred_check_branch
      %353 = sbr.rel (%p350) target = $region60
    $region59: #{vae_forward.1} parent=5 // pred_region
      %s354 = ssub.s32 %s18, 1
      %p355 = scmp.lt.s32.totalorder %s23, 1
      %s356 = scalar_select %p355, %s23, 1
      %s357 = smul.addr %s356, 7
      %s358 = smul.addr %s357, 4
      %s359 = scalar_lea.vmem %s0, %s358
      %p360 = pneg %p44
      %p361 = pneg %p41
      %p362 = scmp.lt.s32.totalorder %s23, 1
      %s363 = scalar_select %p362, %s23, 1
      %s364 = smul.addr %s363, 8
      %s365 = scalar_lea.vmem %s1, %s364
      %p366 = pneg %p70
      %p367 = pneg %p67
      %p368 = pneg %p91
      %p369 = pneg %p88
      %p370 = pneg %p112
      %p371 = pneg %p109
      %p372 = pneg %p133
      %p373 = pneg %p130
      %p374 = pneg %p154
      %p375 = pneg %p151
      %p376 = pneg %p175
      %p377 = pneg %p172
      %p378 = pneg %p196
      %p379 = pneg %p193
      %p380 = pneg %p217
      %p381 = pneg %p214
      %p382 = pneg %p238
      %p383 = pneg %p235
      %p384 = pneg %p264
      %p385 = pneg %p261
      %p386 = scmp.lt.s32.totalorder %s23, 1
      %s387 = scalar_select %p386, %s23, 1
      %s388 = smul.addr %s387, 7
      %s389 = smul.addr %s388, 4
      %s390 = scalar_lea.vmem %s10, %s389
      %p391 = pneg %p290
      %p392 = pneg %p287
      %p393 = scmp.lt.s32.totalorder %s23, 1
      %s394 = scalar_select %p393, %s23, 1
      %s395 = smul.addr %s394, 8
      %s396 = scalar_lea.vmem %s11, %s395
      %p397 = scmp.lt.s32.totalorder %s23, 1
      %s398 = scalar_select %p397, %s23, 1
      %s399 = smul.addr %s398, 7
      %s400 = smul.addr %s399, 4
      %s401 = scalar_lea.vmem %s0, %s400
      %p402 = scmp.lt.s32.totalorder %s23, 1
      %s403 = scalar_select %p402, %s23, 1
      %s404 = smul.addr %s403, 8
      %s405 = scalar_lea.vmem %s1, %s404
      %p406 = scmp.lt.s32.totalorder %s23, 1
      %s407 = scalar_select %p406, %s23, 1
      %s408 = smul.addr %s407, 7
      %s409 = smul.addr %s408, 4
      %s410 = scalar_lea.vmem %s10, %s409
      %p411 = scmp.lt.s32.totalorder %s23, 1
      %s412 = scalar_select %p411, %s23, 1
      %s413 = smul.addr %s412, 8
      %s414 = scalar_lea.vmem %s11, %s413
      %v416 = vld [vmem:[%s401] sm:$0xff]
      %v417 = vld [vmem:[%s401 + $0x8] sm:$0xff]
      %v418 = vld [vmem:[%s401 + $0x10] sm:$0xff]
      %v419 = vld [vmem:[%s401 + $0x18] sm:$0xf]
      %v420 = vld [vmem:[%s2] sm:$0xff]
      %v421 = vld [vmem:[%s2 + $0x8] sm:$0xff]
      %v422 = vld [vmem:[%s2 + $0x10] sm:$0xff]
      %v423 = vld [vmem:[%s2 + $0x18] sm:$0xff]
      %v424 = vld [vmem:[%s2 + $0x20] sm:$0xff]
      %v425 = vld [vmem:[%s2 + $0x28] sm:$0xff]
      %v426 = vld [vmem:[%s2 + $0x30] sm:$0xff]
      %v427 = vld [vmem:[%s2 + $0x38] sm:$0xff]
      %v428 = vld [vmem:[%s2 + $0x40] sm:$0xff]
      %v429 = vld [vmem:[%s2 + $0x48] sm:$0xff]
      %v430 = vld [vmem:[%s2 + $0x50] sm:$0xff]
      %v431 = vld [vmem:[%s2 + $0x58] sm:$0xff]
      %v432 = vld [vmem:[%s2 + $0x60] sm:$0xff]
      %v433 = vld [vmem:[%s2 + $0x68] sm:$0xff]
      %v434 = vld [vmem:[%s2 + $0x70] sm:$0xff]
      %v435 = vld [vmem:[%s2 + $0x78] sm:$0xff]
      %v436 = vld [vmem:[%s2 + $0x80] sm:$0xff]
      %v437 = vld [vmem:[%s2 + $0x88] sm:$0xff]
      %v438 = vld [vmem:[%s2 + $0x90] sm:$0xff]
      %v439 = vld [vmem:[%s2 + $0x98] sm:$0xff]
      %v440 = vld [vmem:[%s2 + $0xa0] sm:$0xff]
      %v441 = vld [vmem:[%s2 + $0xa8] sm:$0xff]
      %v442 = vld [vmem:[%s2 + $0xb0] sm:$0xff]
      %v443 = vld [vmem:[%s2 + $0xb8] sm:$0xff]
      %v444 = vld [vmem:[%s2 + $0xc0] sm:$0xff]
      %v445 = vld [vmem:[%s2 + $0xc8] sm:$0xff]
      %v446 = vld [vmem:[%s2 + $0xd0] sm:$0xff]
      %v447 = vld [vmem:[%s2 + $0xd8] sm:$0xff]
      %v448 = vld [vmem:[%s2 + $0xe0] sm:$0xff]
      %v449 = vld [vmem:[%s2 + $0xe8] sm:$0xff]
      %v450 = vld [vmem:[%s2 + $0xf0] sm:$0xff]
      %v451 = vld [vmem:[%s2 + $0xf8] sm:$0xff]
      %v452 = vld [vmem:[%s2 + $0x100] sm:$0xff]
      %v453 = vld [vmem:[%s2 + $0x108] sm:$0xff]
      %v454 = vld [vmem:[%s2 + $0x110] sm:$0xff]
      %v455 = vld [vmem:[%s2 + $0x118] sm:$0xff]
      %v456 = vld [vmem:[%s2 + $0x120] sm:$0xff]
      %v457 = vld [vmem:[%s2 + $0x128] sm:$0xff]
      %v458 = vld [vmem:[%s2 + $0x130] sm:$0xff]
      %v459 = vld [vmem:[%s2 + $0x138] sm:$0xff]
      %v460 = vld [vmem:[%s2 + $0x140] sm:$0xff]
      %v461 = vld [vmem:[%s2 + $0x148] sm:$0xff]
      %v462 = vld [vmem:[%s2 + $0x150] sm:$0xff]
      %v463 = vld [vmem:[%s2 + $0x158] sm:$0xff]
      %v464 = vld [vmem:[%s2 + $0x160] sm:$0xff]
      %v465 = vld [vmem:[%s2 + $0x168] sm:$0xff]
      %v466 = vld [vmem:[%s2 + $0x170] sm:$0xff]
      %v467 = vld [vmem:[%s2 + $0x178] sm:$0xff]
      %v468 = vld [vmem:[%s2 + $0x180] sm:$0xff]
      %v469 = vld [vmem:[%s2 + $0x188] sm:$0xff]
      %v470 = vld [vmem:[%s2 + $0x190] sm:$0xff]
      %v471 = vld [vmem:[%s2 + $0x198] sm:$0xff]
      %v472 = vld [vmem:[%s2 + $0x1a0] sm:$0xff]
      %v473 = vld [vmem:[%s2 + $0x1a8] sm:$0xff]
      %v474 = vld [vmem:[%s2 + $0x1b0] sm:$0xff]
      %v475 = vld [vmem:[%s2 + $0x1b8] sm:$0xff]
      %v476 = vld [vmem:[%s2 + $0x1c0] sm:$0xff]
      %v477 = vld [vmem:[%s2 + $0x1c8] sm:$0xff]
      %v478 = vld [vmem:[%s2 + $0x1d0] sm:$0xff]
      %v479 = vld [vmem:[%s2 + $0x1d8] sm:$0xff]
      %v480 = vld [vmem:[%s2 + $0x1e0] sm:$0xff]
      %v481 = vld [vmem:[%s2 + $0x1e8] sm:$0xff]
      %v482 = vld [vmem:[%s2 + $0x1f0] sm:$0xff]
      %v483 = vld [vmem:[%s2 + $0x1f8] sm:$0xff]
      %v484 = vld [vmem:[%s2 + $0x200] sm:$0xff]
      %v485 = vld [vmem:[%s2 + $0x208] sm:$0xff]
      %v486 = vld [vmem:[%s2 + $0x210] sm:$0xff]
      %v487 = vld [vmem:[%s2 + $0x218] sm:$0xff]
      %v488 = vld [vmem:[%s2 + $0x220] sm:$0xff]
      %v489 = vld [vmem:[%s2 + $0x228] sm:$0xff]
      %v490 = vld [vmem:[%s2 + $0x230] sm:$0xff]
      %v491 = vld [vmem:[%s2 + $0x238] sm:$0xff]
      %v492 = vld [vmem:[%s2 + $0x240] sm:$0xff]
      %v493 = vld [vmem:[%s2 + $0x248] sm:$0xff]
      %v494 = vld [vmem:[%s2 + $0x250] sm:$0xff]
      %v495 = vld [vmem:[%s2 + $0x258] sm:$0xff]
      %v496 = vld [vmem:[%s2 + $0x260] sm:$0xff]
      %v497 = vld [vmem:[%s2 + $0x268] sm:$0xff]
      %v498 = vld [vmem:[%s2 + $0x270] sm:$0xff]
      %v499 = vld [vmem:[%s2 + $0x278] sm:$0xff]
      %v500 = vld [vmem:[%s2 + $0x280] sm:$0xff]
      %v501 = vld [vmem:[%s2 + $0x288] sm:$0xff]
      %v502 = vld [vmem:[%s2 + $0x290] sm:$0xff]
      %v503 = vld [vmem:[%s2 + $0x298] sm:$0xff]
      %v504 = vld [vmem:[%s2 + $0x2a0] sm:$0xff]
      %v505 = vld [vmem:[%s2 + $0x2a8] sm:$0xff]
      %v506 = vld [vmem:[%s2 + $0x2b0] sm:$0xff]
      %v507 = vld [vmem:[%s2 + $0x2b8] sm:$0xff]
      %v508 = vld [vmem:[%s2 + $0x2c0] sm:$0xff]
      %v509 = vld [vmem:[%s2 + $0x2c8] sm:$0xff]
      %v510 = vld [vmem:[%s2 + $0x2d0] sm:$0xff]
      %v511 = vld [vmem:[%s2 + $0x2d8] sm:$0xff]
      %v512 = vld [vmem:[%s2 + $0x2e0] sm:$0xff]
      %v513 = vld [vmem:[%s2 + $0x2e8] sm:$0xff]
      %v514 = vld [vmem:[%s2 + $0x2f0] sm:$0xff]
      %v515 = vld [vmem:[%s2 + $0x2f8] sm:$0xff]
      %v516 = vld [vmem:[%s2 + $0x300] sm:$0xff]
      %v517 = vld [vmem:[%s2 + $0x308] sm:$0xff]
      %v518 = vld [vmem:[%s2 + $0x310] sm:$0xff]
      %v519 = vld [vmem:[%s2 + $0x318] sm:$0xff]
      %v520 = vld [vmem:[%s2 + $0x320] sm:$0xff]
      %v521 = vld [vmem:[%s2 + $0x328] sm:$0xff]
      %v522 = vld [vmem:[%s2 + $0x330] sm:$0xff]
      %v523 = vld [vmem:[%s2 + $0x338] sm:$0xff]
      %v524 = vld [vmem:[%s2 + $0x340] sm:$0xff]
      %v525 = vld [vmem:[%s2 + $0x348] sm:$0xff]
      %v526 = vld [vmem:[%s2 + $0x350] sm:$0xff]
      %v527 = vld [vmem:[%s2 + $0x358] sm:$0xff]
      %v528 = vld [vmem:[%s2 + $0x360] sm:$0xff]
      %v529 = vld [vmem:[%s2 + $0x368] sm:$0xff]
      %v530 = vld [vmem:[%s2 + $0x370] sm:$0xff]
      %v531 = vld [vmem:[%s2 + $0x378] sm:$0xff]
      %v532 = vld [vmem:[%s2 + $0x380] sm:$0xff]
      %v533 = vld [vmem:[%s2 + $0x388] sm:$0xff]
      %v534 = vld [vmem:[%s2 + $0x390] sm:$0xff]
      %v535 = vld [vmem:[%s2 + $0x398] sm:$0xff]
      %v536 = vld [vmem:[%s2 + $0x3a0] sm:$0xff]
      %v537 = vld [vmem:[%s2 + $0x3a8] sm:$0xff]
      %v538 = vld [vmem:[%s2 + $0x3b0] sm:$0xff]
      %v539 = vld [vmem:[%s2 + $0x3b8] sm:$0xff]
      %v540 = vld [vmem:[%s2 + $0x3c0] sm:$0xff]
      %v541 = vld [vmem:[%s2 + $0x3c8] sm:$0xff]
      %v542 = vld [vmem:[%s2 + $0x3d0] sm:$0xff]
      %v543 = vld [vmem:[%s2 + $0x3d8] sm:$0xff]
      %v544 = vld [vmem:[%s2 + $0x3e0] sm:$0xff]
      %v545 = vld [vmem:[%s2 + $0x3e8] sm:$0xff]
      %v546 = vld [vmem:[%s2 + $0x3f0] sm:$0xff]
      %v547 = vld [vmem:[%s2 + $0x3f8] sm:$0xff]
      %v548 = vld [vmem:[%s2 + $0x400] sm:$0xff]
      %v549 = vld [vmem:[%s2 + $0x408] sm:$0xff]
      %v550 = vld [vmem:[%s2 + $0x410] sm:$0xff]
      %v551 = vld [vmem:[%s2 + $0x418] sm:$0xff]
      %v552 = vld [vmem:[%s2 + $0x420] sm:$0xff]
      %v553 = vld [vmem:[%s2 + $0x428] sm:$0xff]
      %v554 = vld [vmem:[%s2 + $0x430] sm:$0xff]
      %v555 = vld [vmem:[%s2 + $0x438] sm:$0xff]
      %v556 = vld [vmem:[%s2 + $0x440] sm:$0xff]
      %v557 = vld [vmem:[%s2 + $0x448] sm:$0xff]
      %v558 = vld [vmem:[%s2 + $0x450] sm:$0xff]
      %v559 = vld [vmem:[%s2 + $0x458] sm:$0xff]
      %v560 = vld [vmem:[%s2 + $0x460] sm:$0xff]
      %v561 = vld [vmem:[%s2 + $0x468] sm:$0xff]
      %v562 = vld [vmem:[%s2 + $0x470] sm:$0xff]
      %v563 = vld [vmem:[%s2 + $0x478] sm:$0xff]
      %v564 = vld [vmem:[%s2 + $0x480] sm:$0xff]
      %v565 = vld [vmem:[%s2 + $0x488] sm:$0xff]
      %v566 = vld [vmem:[%s2 + $0x490] sm:$0xff]
      %v567 = vld [vmem:[%s2 + $0x498] sm:$0xff]
      %v568 = vld [vmem:[%s2 + $0x4a0] sm:$0xff]
      %v569 = vld [vmem:[%s2 + $0x4a8] sm:$0xff]
      %v570 = vld [vmem:[%s2 + $0x4b0] sm:$0xff]
      %v571 = vld [vmem:[%s2 + $0x4b8] sm:$0xff]
      %v572 = vld [vmem:[%s2 + $0x4c0] sm:$0xff]
      %v573 = vld [vmem:[%s2 + $0x4c8] sm:$0xff]
      %v574 = vld [vmem:[%s2 + $0x4d0] sm:$0xff]
      %v575 = vld [vmem:[%s2 + $0x4d8] sm:$0xff]
      %v576 = vld [vmem:[%s2 + $0x4e0] sm:$0xff]
      %v577 = vld [vmem:[%s2 + $0x4e8] sm:$0xff]
      %v578 = vld [vmem:[%s2 + $0x4f0] sm:$0xff]
      %v579 = vld [vmem:[%s2 + $0x4f8] sm:$0xff]
      %v580 = vld [vmem:[%s2 + $0x500] sm:$0xff]
      %v581 = vld [vmem:[%s2 + $0x508] sm:$0xff]
      %v582 = vld [vmem:[%s2 + $0x510] sm:$0xff]
      %v583 = vld [vmem:[%s2 + $0x518] sm:$0xff]
      %v584 = vld [vmem:[%s2 + $0x520] sm:$0xff]
      %v585 = vld [vmem:[%s2 + $0x528] sm:$0xff]
      %v586 = vld [vmem:[%s2 + $0x530] sm:$0xff]
      %v587 = vld [vmem:[%s2 + $0x538] sm:$0xff]
      %v588 = vld [vmem:[%s2 + $0x540] sm:$0xff]
      %v589 = vld [vmem:[%s2 + $0x548] sm:$0xff]
      %v590 = vld [vmem:[%s2 + $0x550] sm:$0xff]
      %v591 = vld [vmem:[%s2 + $0x558] sm:$0xff]
      %v592 = vld [vmem:[%s2 + $0x560] sm:$0xff]
      %v593 = vld [vmem:[%s2 + $0x568] sm:$0xff]
      %v594 = vld [vmem:[%s2 + $0x570] sm:$0xff]
      %v595 = vld [vmem:[%s2 + $0x578] sm:$0xff]
      %v596 = vld [vmem:[%s2 + $0x580] sm:$0xff]
      %v597 = vld [vmem:[%s2 + $0x588] sm:$0xff]
      %v598 = vld [vmem:[%s2 + $0x590] sm:$0xff]
      %v599 = vld [vmem:[%s2 + $0x598] sm:$0xff]
      %v600 = vld [vmem:[%s2 + $0x5a0] sm:$0xff]
      %v601 = vld [vmem:[%s2 + $0x5a8] sm:$0xff]
      %v602 = vld [vmem:[%s2 + $0x5b0] sm:$0xff]
      %v603 = vld [vmem:[%s2 + $0x5b8] sm:$0xff]
      %v604 = vld [vmem:[%s2 + $0x5c0] sm:$0xff]
      %v605 = vld [vmem:[%s2 + $0x5c8] sm:$0xff]
      %v606 = vld [vmem:[%s2 + $0x5d0] sm:$0xff]
      %v607 = vld [vmem:[%s2 + $0x5d8] sm:$0xff]
      %v608 = vld [vmem:[%s2 + $0x5e0] sm:$0xff]
      %v609 = vld [vmem:[%s2 + $0x5e8] sm:$0xff]
      %v610 = vld [vmem:[%s2 + $0x5f0] sm:$0xff]
      %v611 = vld [vmem:[%s2 + $0x5f8] sm:$0xff]
      %v612 = vld [vmem:[%s2 + $0x600] sm:$0xff]
      %v613 = vld [vmem:[%s2 + $0x608] sm:$0xff]
      %v614 = vld [vmem:[%s2 + $0x610] sm:$0xff]
      %v615 = vld [vmem:[%s2 + $0x618] sm:$0xff]
      %v616 = vld [vmem:[%s3] sm:$0xf]
      %v618 = vperm.slane %v616, 0
      %v619 = vperm.slane %v616, 1
      %v620 = vperm.slane %v616, 2
      %v621 = vperm.slane %v616, 3
      %v630 = vunpack.c.l.b16 %v416
      %v631 = vunpack.c.h.b16 %v416
      %v632 = vunpack.c.l.b16 %v417
      %v633 = vunpack.c.h.b16 %v417
      %v634 = vunpack.c.l.b16 %v418
      %v635 = vunpack.c.h.b16 %v418
      %v636 = vunpack.c.l.b16 %v419
      %v637 = vpack.c.b16 %v630, %v630
      %v638 = vpack.c.b16 %v631, %v631
      %v639 = vpack.c.b16 %v632, %v632
      %v640 = vpack.c.b16 %v633, %v633
      %v641 = vpack.c.b16 %v634, %v634
      %v642 = vpack.c.b16 %v635, %v635
      %v643 = vpack.c.b16 %v636, %v636
      %v846 = vunpack.c.l.b16 %v420
      %v847 = vunpack.c.h.b16 %v420
      %v848 = vunpack.c.l.b16 %v421
      %v849 = vunpack.c.h.b16 %v421
      %v850 = vunpack.c.l.b16 %v422
      %v851 = vunpack.c.h.b16 %v422
      %v852 = vunpack.c.l.b16 %v423
      %v853 = vunpack.c.h.b16 %v423
      %v854 = vunpack.c.l.b16 %v424
      %v855 = vunpack.c.h.b16 %v424
      %v856 = vunpack.c.l.b16 %v425
      %v857 = vunpack.c.h.b16 %v425
      %v858 = vunpack.c.l.b16 %v426
      %v859 = vunpack.c.h.b16 %v426
      %v860 = vunpack.c.l.b16 %v427
      %v861 = vunpack.c.h.b16 %v427
      %v862 = vunpack.c.l.b16 %v428
      %v863 = vunpack.c.h.b16 %v428
      %v864 = vunpack.c.l.b16 %v429
      %v865 = vunpack.c.h.b16 %v429
      %v866 = vunpack.c.l.b16 %v430
      %v867 = vunpack.c.h.b16 %v430
      %v868 = vunpack.c.l.b16 %v431
      %v869 = vunpack.c.h.b16 %v431
      %v870 = vunpack.c.l.b16 %v432
      %v871 = vunpack.c.h.b16 %v432
      %v872 = vunpack.c.l.b16 %v433
      %v873 = vunpack.c.h.b16 %v433
      %v874 = vunpack.c.l.b16 %v434
      %v875 = vunpack.c.h.b16 %v434
      %v876 = vunpack.c.l.b16 %v435
      %v877 = vunpack.c.h.b16 %v435
      %v878 = vunpack.c.l.b16 %v436
      %v879 = vunpack.c.h.b16 %v436
      %v880 = vunpack.c.l.b16 %v437
      %v881 = vunpack.c.h.b16 %v437
      %v882 = vunpack.c.l.b16 %v438
      %v883 = vunpack.c.h.b16 %v438
      %v884 = vunpack.c.l.b16 %v439
      %v885 = vunpack.c.h.b16 %v439
      %v886 = vunpack.c.l.b16 %v440
      %v887 = vunpack.c.h.b16 %v440
      %v888 = vunpack.c.l.b16 %v441
      %v889 = vunpack.c.h.b16 %v441
      %v890 = vunpack.c.l.b16 %v442
      %v891 = vunpack.c.h.b16 %v442
      %v892 = vunpack.c.l.b16 %v443
      %v893 = vunpack.c.h.b16 %v443
      %v894 = vunpack.c.l.b16 %v444
      %v895 = vunpack.c.h.b16 %v444
      %v896 = vunpack.c.l.b16 %v445
      %v897 = vunpack.c.h.b16 %v445
      %v898 = vunpack.c.l.b16 %v446
      %v899 = vunpack.c.h.b16 %v446
      %v900 = vunpack.c.l.b16 %v447
      %v901 = vunpack.c.h.b16 %v447
      %v902 = vunpack.c.l.b16 %v448
      %v903 = vunpack.c.h.b16 %v448
      %v904 = vunpack.c.l.b16 %v449
      %v905 = vunpack.c.h.b16 %v449
      %v906 = vunpack.c.l.b16 %v450
      %v907 = vunpack.c.h.b16 %v450
      %v908 = vunpack.c.l.b16 %v451
      %v909 = vunpack.c.h.b16 %v451
      %v910 = vunpack.c.l.b16 %v452
      %v911 = vunpack.c.h.b16 %v452
      %v912 = vunpack.c.l.b16 %v453
      %v913 = vunpack.c.h.b16 %v453
      %v914 = vunpack.c.l.b16 %v454
      %v915 = vunpack.c.h.b16 %v454
      %v916 = vunpack.c.l.b16 %v455
      %v917 = vunpack.c.h.b16 %v455
      %v918 = vunpack.c.l.b16 %v456
      %v919 = vunpack.c.h.b16 %v456
      %v920 = vunpack.c.l.b16 %v457
      %v921 = vunpack.c.h.b16 %v457
      %v922 = vunpack.c.l.b16 %v458
      %v923 = vunpack.c.h.b16 %v458
      %v924 = vunpack.c.l.b16 %v459
      %v925 = vunpack.c.h.b16 %v459
      %v926 = vunpack.c.l.b16 %v460
      %v927 = vunpack.c.h.b16 %v460
      %v928 = vunpack.c.l.b16 %v461
      %v929 = vunpack.c.h.b16 %v461
      %v930 = vunpack.c.l.b16 %v462
      %v931 = vunpack.c.h.b16 %v462
      %v932 = vunpack.c.l.b16 %v463
      %v933 = vunpack.c.h.b16 %v463
      %v934 = vunpack.c.l.b16 %v464
      %v935 = vunpack.c.h.b16 %v464
      %v936 = vunpack.c.l.b16 %v465
      %v937 = vunpack.c.h.b16 %v465
      %v938 = vunpack.c.l.b16 %v466
      %v939 = vunpack.c.h.b16 %v466
      %v940 = vunpack.c.l.b16 %v467
      %v941 = vunpack.c.h.b16 %v467
      %v942 = vunpack.c.l.b16 %v468
      %v943 = vunpack.c.h.b16 %v468
      %v944 = vunpack.c.l.b16 %v469
      %v945 = vunpack.c.h.b16 %v469
      %v946 = vunpack.c.l.b16 %v470
      %v947 = vunpack.c.h.b16 %v470
      %v948 = vunpack.c.l.b16 %v471
      %v949 = vunpack.c.h.b16 %v471
      %v950 = vunpack.c.l.b16 %v472
      %v951 = vunpack.c.h.b16 %v472
      %v952 = vunpack.c.l.b16 %v473
      %v953 = vunpack.c.h.b16 %v473
      %v954 = vunpack.c.l.b16 %v474
      %v955 = vunpack.c.h.b16 %v474
      %v956 = vunpack.c.l.b16 %v475
      %v957 = vunpack.c.h.b16 %v475
      %v958 = vunpack.c.l.b16 %v476
      %v959 = vunpack.c.h.b16 %v476
      %v960 = vunpack.c.l.b16 %v477
      %v961 = vunpack.c.h.b16 %v477
      %v962 = vunpack.c.l.b16 %v478
      %v963 = vunpack.c.h.b16 %v478
      %v964 = vunpack.c.l.b16 %v479
      %v965 = vunpack.c.h.b16 %v479
      %v966 = vunpack.c.l.b16 %v480
      %v967 = vunpack.c.h.b16 %v480
      %v968 = vunpack.c.l.b16 %v481
      %v969 = vunpack.c.h.b16 %v481
      %v970 = vunpack.c.l.b16 %v482
      %v971 = vunpack.c.h.b16 %v482
      %v972 = vunpack.c.l.b16 %v483
      %v973 = vunpack.c.h.b16 %v483
      %v974 = vunpack.c.l.b16 %v484
      %v975 = vunpack.c.h.b16 %v484
      %v976 = vunpack.c.l.b16 %v485
      %v977 = vunpack.c.h.b16 %v485
      %v978 = vunpack.c.l.b16 %v486
      %v979 = vunpack.c.h.b16 %v486
      %v980 = vunpack.c.l.b16 %v487
      %v981 = vunpack.c.h.b16 %v487
      %v982 = vunpack.c.l.b16 %v488
      %v983 = vunpack.c.h.b16 %v488
      %v984 = vunpack.c.l.b16 %v489
      %v985 = vunpack.c.h.b16 %v489
      %v986 = vunpack.c.l.b16 %v490
      %v987 = vunpack.c.h.b16 %v490
      %v988 = vunpack.c.l.b16 %v491
      %v989 = vunpack.c.h.b16 %v491
      %v990 = vunpack.c.l.b16 %v492
      %v991 = vunpack.c.h.b16 %v492
      %v992 = vunpack.c.l.b16 %v493
      %v993 = vunpack.c.h.b16 %v493
      %v994 = vunpack.c.l.b16 %v494
      %v995 = vunpack.c.h.b16 %v494
      %v996 = vunpack.c.l.b16 %v495
      %v997 = vunpack.c.h.b16 %v495
      %v998 = vunpack.c.l.b16 %v496
      %v999 = vunpack.c.h.b16 %v496
      %v1000 = vunpack.c.l.b16 %v497
      %v1001 = vunpack.c.h.b16 %v497
      %v1002 = vunpack.c.l.b16 %v498
      %v1003 = vunpack.c.h.b16 %v498
      %v1004 = vunpack.c.l.b16 %v499
      %v1005 = vunpack.c.h.b16 %v499
      %v1006 = vunpack.c.l.b16 %v500
      %v1007 = vunpack.c.h.b16 %v500
      %v1008 = vunpack.c.l.b16 %v501
      %v1009 = vunpack.c.h.b16 %v501
      %v1010 = vunpack.c.l.b16 %v502
      %v1011 = vunpack.c.h.b16 %v502
      %v1012 = vunpack.c.l.b16 %v503
      %v1013 = vunpack.c.h.b16 %v503
      %v1014 = vunpack.c.l.b16 %v504
      %v1015 = vunpack.c.h.b16 %v504
      %v1016 = vunpack.c.l.b16 %v505
      %v1017 = vunpack.c.h.b16 %v505
      %v1018 = vunpack.c.l.b16 %v506
      %v1019 = vunpack.c.h.b16 %v506
      %v1020 = vunpack.c.l.b16 %v507
      %v1021 = vunpack.c.h.b16 %v507
      %v1022 = vunpack.c.l.b16 %v508
      %v1023 = vunpack.c.h.b16 %v508
      %v1024 = vunpack.c.l.b16 %v509
      %v1025 = vunpack.c.h.b16 %v509
      %v1026 = vunpack.c.l.b16 %v510
      %v1027 = vunpack.c.h.b16 %v510
      %v1028 = vunpack.c.l.b16 %v511
      %v1029 = vunpack.c.h.b16 %v511
      %v1030 = vunpack.c.l.b16 %v512
      %v1031 = vunpack.c.h.b16 %v512
      %v1032 = vunpack.c.l.b16 %v513
      %v1033 = vunpack.c.h.b16 %v513
      %v1034 = vunpack.c.l.b16 %v514
      %v1035 = vunpack.c.h.b16 %v514
      %v1036 = vunpack.c.l.b16 %v515
      %v1037 = vunpack.c.h.b16 %v515
      %v1038 = vunpack.c.l.b16 %v516
      %v1039 = vunpack.c.h.b16 %v516
      %v1040 = vunpack.c.l.b16 %v517
      %v1041 = vunpack.c.h.b16 %v517
      %v1042 = vunpack.c.l.b16 %v518
      %v1043 = vunpack.c.h.b16 %v518
      %v1044 = vunpack.c.l.b16 %v519
      %v1045 = vunpack.c.h.b16 %v519
      %v1046 = vunpack.c.l.b16 %v520
      %v1047 = vunpack.c.h.b16 %v520
      %v1048 = vunpack.c.l.b16 %v521
      %v1049 = vunpack.c.h.b16 %v521
      %v1050 = vunpack.c.l.b16 %v522
      %v1051 = vunpack.c.h.b16 %v522
      %v1052 = vunpack.c.l.b16 %v523
      %v1053 = vunpack.c.h.b16 %v523
      %v1054 = vunpack.c.l.b16 %v524
      %v1055 = vunpack.c.h.b16 %v524
      %v1056 = vunpack.c.l.b16 %v525
      %v1057 = vunpack.c.h.b16 %v525
      %v1058 = vunpack.c.l.b16 %v526
      %v1059 = vunpack.c.h.b16 %v526
      %v1060 = vunpack.c.l.b16 %v527
      %v1061 = vunpack.c.h.b16 %v527
      %v1062 = vunpack.c.l.b16 %v528
      %v1063 = vunpack.c.h.b16 %v528
      %v1064 = vunpack.c.l.b16 %v529
      %v1065 = vunpack.c.h.b16 %v529
      %v1066 = vunpack.c.l.b16 %v530
      %v1067 = vunpack.c.h.b16 %v530
      %v1068 = vunpack.c.l.b16 %v531
      %v1069 = vunpack.c.h.b16 %v531
      %v1070 = vunpack.c.l.b16 %v532
      %v1071 = vunpack.c.h.b16 %v532
      %v1072 = vunpack.c.l.b16 %v533
      %v1073 = vunpack.c.h.b16 %v533
      %v1074 = vunpack.c.l.b16 %v534
      %v1075 = vunpack.c.h.b16 %v534
      %v1076 = vunpack.c.l.b16 %v535
      %v1077 = vunpack.c.h.b16 %v535
      %v1078 = vunpack.c.l.b16 %v536
      %v1079 = vunpack.c.h.b16 %v536
      %v1080 = vunpack.c.l.b16 %v537
      %v1081 = vunpack.c.h.b16 %v537
      %v1082 = vunpack.c.l.b16 %v538
      %v1083 = vunpack.c.h.b16 %v538
      %v1084 = vunpack.c.l.b16 %v539
      %v1085 = vunpack.c.h.b16 %v539
      %v1086 = vunpack.c.l.b16 %v540
      %v1087 = vunpack.c.h.b16 %v540
      %v1088 = vunpack.c.l.b16 %v541
      %v1089 = vunpack.c.h.b16 %v541
      %v1090 = vunpack.c.l.b16 %v542
      %v1091 = vunpack.c.h.b16 %v542
      %v1092 = vunpack.c.l.b16 %v543
      %v1093 = vunpack.c.h.b16 %v543
      %v1094 = vunpack.c.l.b16 %v544
      %v1095 = vunpack.c.h.b16 %v544
      %v1096 = vunpack.c.l.b16 %v545
      %v1097 = vunpack.c.h.b16 %v545
      %v1098 = vunpack.c.l.b16 %v546
      %v1099 = vunpack.c.h.b16 %v546
      %v1100 = vunpack.c.l.b16 %v547
      %v1101 = vunpack.c.h.b16 %v547
      %v1102 = vunpack.c.l.b16 %v548
      %v1103 = vunpack.c.h.b16 %v548
      %v1104 = vunpack.c.l.b16 %v549
      %v1105 = vunpack.c.h.b16 %v549
      %v1106 = vunpack.c.l.b16 %v550
      %v1107 = vunpack.c.h.b16 %v550
      %v1108 = vunpack.c.l.b16 %v551
      %v1109 = vunpack.c.h.b16 %v551
      %v1110 = vunpack.c.l.b16 %v552
      %v1111 = vunpack.c.h.b16 %v552
      %v1112 = vunpack.c.l.b16 %v553
      %v1113 = vunpack.c.h.b16 %v553
      %v1114 = vunpack.c.l.b16 %v554
      %v1115 = vunpack.c.h.b16 %v554
      %v1116 = vunpack.c.l.b16 %v555
      %v1117 = vunpack.c.h.b16 %v555
      %v1118 = vunpack.c.l.b16 %v556
      %v1119 = vunpack.c.h.b16 %v556
      %v1120 = vunpack.c.l.b16 %v557
      %v1121 = vunpack.c.h.b16 %v557
      %v1122 = vunpack.c.l.b16 %v558
      %v1123 = vunpack.c.h.b16 %v558
      %v1124 = vunpack.c.l.b16 %v559
      %v1125 = vunpack.c.h.b16 %v559
      %v1126 = vunpack.c.l.b16 %v560
      %v1127 = vunpack.c.h.b16 %v560
      %v1128 = vunpack.c.l.b16 %v561
      %v1129 = vunpack.c.h.b16 %v561
      %v1130 = vunpack.c.l.b16 %v562
      %v1131 = vunpack.c.h.b16 %v562
      %v1132 = vunpack.c.l.b16 %v563
      %v1133 = vunpack.c.h.b16 %v563
      %v1134 = vunpack.c.l.b16 %v564
      %v1135 = vunpack.c.h.b16 %v564
      %v1136 = vunpack.c.l.b16 %v565
      %v1137 = vunpack.c.h.b16 %v565
      %v1138 = vunpack.c.l.b16 %v566
      %v1139 = vunpack.c.h.b16 %v566
      %v1140 = vunpack.c.l.b16 %v567
      %v1141 = vunpack.c.h.b16 %v567
      %v1142 = vunpack.c.l.b16 %v568
      %v1143 = vunpack.c.h.b16 %v568
      %v1144 = vunpack.c.l.b16 %v569
      %v1145 = vunpack.c.h.b16 %v569
      %v1146 = vunpack.c.l.b16 %v570
      %v1147 = vunpack.c.h.b16 %v570
      %v1148 = vunpack.c.l.b16 %v571
      %v1149 = vunpack.c.h.b16 %v571
      %v1150 = vunpack.c.l.b16 %v572
      %v1151 = vunpack.c.h.b16 %v572
      %v1152 = vunpack.c.l.b16 %v573
      %v1153 = vunpack.c.h.b16 %v573
      %v1154 = vunpack.c.l.b16 %v574
      %v1155 = vunpack.c.h.b16 %v574
      %v1156 = vunpack.c.l.b16 %v575
      %v1157 = vunpack.c.h.b16 %v575
      %v1158 = vunpack.c.l.b16 %v576
      %v1159 = vunpack.c.h.b16 %v576
      %v1160 = vunpack.c.l.b16 %v577
      %v1161 = vunpack.c.h.b16 %v577
      %v1162 = vunpack.c.l.b16 %v578
      %v1163 = vunpack.c.h.b16 %v578
      %v1164 = vunpack.c.l.b16 %v579
      %v1165 = vunpack.c.h.b16 %v579
      %v1166 = vunpack.c.l.b16 %v580
      %v1167 = vunpack.c.h.b16 %v580
      %v1168 = vunpack.c.l.b16 %v581
      %v1169 = vunpack.c.h.b16 %v581
      %v1170 = vunpack.c.l.b16 %v582
      %v1171 = vunpack.c.h.b16 %v582
      %v1172 = vunpack.c.l.b16 %v583
      %v1173 = vunpack.c.h.b16 %v583
      %v1174 = vunpack.c.l.b16 %v584
      %v1175 = vunpack.c.h.b16 %v584
      %v1176 = vunpack.c.l.b16 %v585
      %v1177 = vunpack.c.h.b16 %v585
      %v1178 = vunpack.c.l.b16 %v586
      %v1179 = vunpack.c.h.b16 %v586
      %v1180 = vunpack.c.l.b16 %v587
      %v1181 = vunpack.c.h.b16 %v587
      %v1182 = vunpack.c.l.b16 %v588
      %v1183 = vunpack.c.h.b16 %v588
      %v1184 = vunpack.c.l.b16 %v589
      %v1185 = vunpack.c.h.b16 %v589
      %v1186 = vunpack.c.l.b16 %v590
      %v1187 = vunpack.c.h.b16 %v590
      %v1188 = vunpack.c.l.b16 %v591
      %v1189 = vunpack.c.h.b16 %v591
      %v1190 = vunpack.c.l.b16 %v592
      %v1191 = vunpack.c.h.b16 %v592
      %v1192 = vunpack.c.l.b16 %v593
      %v1193 = vunpack.c.h.b16 %v593
      %v1194 = vunpack.c.l.b16 %v594
      %v1195 = vunpack.c.h.b16 %v594
      %v1196 = vunpack.c.l.b16 %v595
      %v1197 = vunpack.c.h.b16 %v595
      %v1198 = vunpack.c.l.b16 %v596
      %v1199 = vunpack.c.h.b16 %v596
      %v1200 = vunpack.c.l.b16 %v597
      %v1201 = vunpack.c.h.b16 %v597
      %v1202 = vunpack.c.l.b16 %v598
      %v1203 = vunpack.c.h.b16 %v598
      %v1204 = vunpack.c.l.b16 %v599
      %v1205 = vunpack.c.h.b16 %v599
      %v1206 = vunpack.c.l.b16 %v600
      %v1207 = vunpack.c.h.b16 %v600
      %v1208 = vunpack.c.l.b16 %v601
      %v1209 = vunpack.c.h.b16 %v601
      %v1210 = vunpack.c.l.b16 %v602
      %v1211 = vunpack.c.h.b16 %v602
      %v1212 = vunpack.c.l.b16 %v603
      %v1213 = vunpack.c.h.b16 %v603
      %v1214 = vunpack.c.l.b16 %v604
      %v1215 = vunpack.c.h.b16 %v604
      %v1216 = vunpack.c.l.b16 %v605
      %v1217 = vunpack.c.h.b16 %v605
      %v1218 = vunpack.c.l.b16 %v606
      %v1219 = vunpack.c.h.b16 %v606
      %v1220 = vunpack.c.l.b16 %v607
      %v1221 = vunpack.c.h.b16 %v607
      %v1222 = vunpack.c.l.b16 %v608
      %v1223 = vunpack.c.h.b16 %v608
      %v1224 = vunpack.c.l.b16 %v609
      %v1225 = vunpack.c.h.b16 %v609
      %v1226 = vunpack.c.l.b16 %v610
      %v1227 = vunpack.c.h.b16 %v610
      %v1228 = vunpack.c.l.b16 %v611
      %v1229 = vunpack.c.h.b16 %v611
      %v1230 = vunpack.c.l.b16 %v612
      %v1231 = vunpack.c.h.b16 %v612
      %v1232 = vunpack.c.l.b16 %v613
      %v1233 = vunpack.c.h.b16 %v613
      %v1234 = vunpack.c.l.b16 %v614
      %v1235 = vunpack.c.h.b16 %v614
      %v1236 = vunpack.c.l.b16 %v615
      %v1237 = vunpack.c.h.b16 %v615
      %v1238 = vpack.c.b16 %v850, %v846
      %v1239 = vpack.c.b16 %v851, %v847
      %v1240 = vpack.c.b16 %v852, %v848
      %v1241 = vpack.c.b16 %v853, %v849
      %v1242 = vpack.c.b16 %v858, %v854
      %v1243 = vpack.c.b16 %v859, %v855
      %v1244 = vpack.c.b16 %v860, %v856
      %v1245 = vpack.c.b16 %v861, %v857
      %v1246 = vpack.c.b16 %v866, %v862
      %v1247 = vpack.c.b16 %v867, %v863
      %v1248 = vpack.c.b16 %v868, %v864
      %v1249 = vpack.c.b16 %v869, %v865
      %v1250 = vpack.c.b16 %v874, %v870
      %v1251 = vpack.c.b16 %v875, %v871
      %v1252 = vpack.c.b16 %v876, %v872
      %v1253 = vpack.c.b16 %v877, %v873
      %v1254 = vpack.c.b16 %v882, %v878
      %v1255 = vpack.c.b16 %v883, %v879
      %v1256 = vpack.c.b16 %v884, %v880
      %v1257 = vpack.c.b16 %v885, %v881
      %v1258 = vpack.c.b16 %v890, %v886
      %v1259 = vpack.c.b16 %v891, %v887
      %v1260 = vpack.c.b16 %v892, %v888
      %v1261 = vpack.c.b16 %v893, %v889
      %v1262 = vpack.c.b16 %v898, %v894
      %v1263 = vpack.c.b16 %v899, %v895
      %v1264 = vpack.c.b16 %v900, %v896
      %v1265 = vpack.c.b16 %v901, %v897
      %v1266 = vpack.c.b16 %v906, %v902
      %v1267 = vpack.c.b16 %v907, %v903
      %v1268 = vpack.c.b16 %v908, %v904
      %v1269 = vpack.c.b16 %v909, %v905
      %v1270 = vpack.c.b16 %v914, %v910
      %v1271 = vpack.c.b16 %v915, %v911
      %v1272 = vpack.c.b16 %v916, %v912
      %v1273 = vpack.c.b16 %v917, %v913
      %v1274 = vpack.c.b16 %v922, %v918
      %v1275 = vpack.c.b16 %v923, %v919
      %v1276 = vpack.c.b16 %v924, %v920
      %v1277 = vpack.c.b16 %v925, %v921
      %v1278 = vpack.c.b16 %v930, %v926
      %v1279 = vpack.c.b16 %v931, %v927
      %v1280 = vpack.c.b16 %v932, %v928
      %v1281 = vpack.c.b16 %v933, %v929
      %v1282 = vpack.c.b16 %v938, %v934
      %v1283 = vpack.c.b16 %v939, %v935
      %v1284 = vpack.c.b16 %v940, %v936
      %v1285 = vpack.c.b16 %v941, %v937
      %v1286 = vpack.c.b16 %v946, %v942
      %v1287 = vpack.c.b16 %v947, %v943
      %v1288 = vpack.c.b16 %v948, %v944
      %v1289 = vpack.c.b16 %v949, %v945
      %v1290 = vpack.c.b16 %v954, %v950
      %v1291 = vpack.c.b16 %v955, %v951
      %v1292 = vpack.c.b16 %v956, %v952
      %v1293 = vpack.c.b16 %v957, %v953
      %v1294 = vpack.c.b16 %v962, %v958
      %v1295 = vpack.c.b16 %v963, %v959
      %v1296 = vpack.c.b16 %v964, %v960
      %v1297 = vpack.c.b16 %v965, %v961
      %v1298 = vpack.c.b16 %v970, %v966
      %v1299 = vpack.c.b16 %v971, %v967
      %v1300 = vpack.c.b16 %v972, %v968
      %v1301 = vpack.c.b16 %v973, %v969
      %v1302 = vpack.c.b16 %v978, %v974
      %v1303 = vpack.c.b16 %v979, %v975
      %v1304 = vpack.c.b16 %v980, %v976
      %v1305 = vpack.c.b16 %v981, %v977
      %v1306 = vpack.c.b16 %v986, %v982
      %v1307 = vpack.c.b16 %v987, %v983
      %v1308 = vpack.c.b16 %v988, %v984
      %v1309 = vpack.c.b16 %v989, %v985
      %v1310 = vpack.c.b16 %v994, %v990
      %v1311 = vpack.c.b16 %v995, %v991
      %v1312 = vpack.c.b16 %v996, %v992
      %v1313 = vpack.c.b16 %v997, %v993
      %v1314 = vpack.c.b16 %v1002, %v998
      %v1315 = vpack.c.b16 %v1003, %v999
      %v1316 = vpack.c.b16 %v1004, %v1000
      %v1317 = vpack.c.b16 %v1005, %v1001
      %v1318 = vpack.c.b16 %v1010, %v1006
      %v1319 = vpack.c.b16 %v1011, %v1007
      %v1320 = vpack.c.b16 %v1012, %v1008
      %v1321 = vpack.c.b16 %v1013, %v1009
      %v1322 = vpack.c.b16 %v1018, %v1014
      %v1323 = vpack.c.b16 %v1019, %v1015
      %v1324 = vpack.c.b16 %v1020, %v1016
      %v1325 = vpack.c.b16 %v1021, %v1017
      %v1326 = vpack.c.b16 %v1026, %v1022
      %v1327 = vpack.c.b16 %v1027, %v1023
      %v1328 = vpack.c.b16 %v1028, %v1024
      %v1329 = vpack.c.b16 %v1029, %v1025
      %v1330 = vpack.c.b16 %v1034, %v1030
      %v1331 = vpack.c.b16 %v1035, %v1031
      %v1332 = vpack.c.b16 %v1036, %v1032
      %v1333 = vpack.c.b16 %v1037, %v1033
      %v1334 = vpack.c.b16 %v1042, %v1038
      %v1335 = vpack.c.b16 %v1043, %v1039
      %v1336 = vpack.c.b16 %v1044, %v1040
      %v1337 = vpack.c.b16 %v1045, %v1041
      %v1338 = vpack.c.b16 %v1050, %v1046
      %v1339 = vpack.c.b16 %v1051, %v1047
      %v1340 = vpack.c.b16 %v1052, %v1048
      %v1341 = vpack.c.b16 %v1053, %v1049
      %v1342 = vpack.c.b16 %v1058, %v1054
      %v1343 = vpack.c.b16 %v1059, %v1055
      %v1344 = vpack.c.b16 %v1060, %v1056
      %v1345 = vpack.c.b16 %v1061, %v1057
      %v1346 = vpack.c.b16 %v1066, %v1062
      %v1347 = vpack.c.b16 %v1067, %v1063
      %v1348 = vpack.c.b16 %v1068, %v1064
      %v1349 = vpack.c.b16 %v1069, %v1065
      %v1350 = vpack.c.b16 %v1074, %v1070
      %v1351 = vpack.c.b16 %v1075, %v1071
      %v1352 = vpack.c.b16 %v1076, %v1072
      %v1353 = vpack.c.b16 %v1077, %v1073
      %v1354 = vpack.c.b16 %v1082, %v1078
      %v1355 = vpack.c.b16 %v1083, %v1079
      %v1356 = vpack.c.b16 %v1084, %v1080
      %v1357 = vpack.c.b16 %v1085, %v1081
      %v1358 = vpack.c.b16 %v1090, %v1086
      %v1359 = vpack.c.b16 %v1091, %v1087
      %v1360 = vpack.c.b16 %v1092, %v1088
      %v1361 = vpack.c.b16 %v1093, %v1089
      %v1362 = vpack.c.b16 %v1098, %v1094
      %v1363 = vpack.c.b16 %v1099, %v1095
      %v1364 = vpack.c.b16 %v1100, %v1096
      %v1365 = vpack.c.b16 %v1101, %v1097
      %v1366 = vpack.c.b16 %v1106, %v1102
      %v1367 = vpack.c.b16 %v1107, %v1103
      %v1368 = vpack.c.b16 %v1108, %v1104
      %v1369 = vpack.c.b16 %v1109, %v1105
      %v1370 = vpack.c.b16 %v1114, %v1110
      %v1371 = vpack.c.b16 %v1115, %v1111
      %v1372 = vpack.c.b16 %v1116, %v1112
      %v1373 = vpack.c.b16 %v1117, %v1113
      %v1374 = vpack.c.b16 %v1122, %v1118
      %v1375 = vpack.c.b16 %v1123, %v1119
      %v1376 = vpack.c.b16 %v1124, %v1120
      %v1377 = vpack.c.b16 %v1125, %v1121
      %v1378 = vpack.c.b16 %v1130, %v1126
      %v1379 = vpack.c.b16 %v1131, %v1127
      %v1380 = vpack.c.b16 %v1132, %v1128
      %v1381 = vpack.c.b16 %v1133, %v1129
      %v1382 = vpack.c.b16 %v1138, %v1134
      %v1383 = vpack.c.b16 %v1139, %v1135
      %v1384 = vpack.c.b16 %v1140, %v1136
      %v1385 = vpack.c.b16 %v1141, %v1137
      %v1386 = vpack.c.b16 %v1146, %v1142
      %v1387 = vpack.c.b16 %v1147, %v1143
      %v1388 = vpack.c.b16 %v1148, %v1144
      %v1389 = vpack.c.b16 %v1149, %v1145
      %v1390 = vpack.c.b16 %v1154, %v1150
      %v1391 = vpack.c.b16 %v1155, %v1151
      %v1392 = vpack.c.b16 %v1156, %v1152
      %v1393 = vpack.c.b16 %v1157, %v1153
      %v1394 = vpack.c.b16 %v1162, %v1158
      %v1395 = vpack.c.b16 %v1163, %v1159
      %v1396 = vpack.c.b16 %v1164, %v1160
      %v1397 = vpack.c.b16 %v1165, %v1161
      %v1398 = vpack.c.b16 %v1170, %v1166
      %v1399 = vpack.c.b16 %v1171, %v1167
      %v1400 = vpack.c.b16 %v1172, %v1168
      %v1401 = vpack.c.b16 %v1173, %v1169
      %v1402 = vpack.c.b16 %v1178, %v1174
      %v1403 = vpack.c.b16 %v1179, %v1175
      %v1404 = vpack.c.b16 %v1180, %v1176
      %v1405 = vpack.c.b16 %v1181, %v1177
      %v1406 = vpack.c.b16 %v1186, %v1182
      %v1407 = vpack.c.b16 %v1187, %v1183
      %v1408 = vpack.c.b16 %v1188, %v1184
      %v1409 = vpack.c.b16 %v1189, %v1185
      %v1410 = vpack.c.b16 %v1194, %v1190
      %v1411 = vpack.c.b16 %v1195, %v1191
      %v1412 = vpack.c.b16 %v1196, %v1192
      %v1413 = vpack.c.b16 %v1197, %v1193
      %v1414 = vpack.c.b16 %v1202, %v1198
      %v1415 = vpack.c.b16 %v1203, %v1199
      %v1416 = vpack.c.b16 %v1204, %v1200
      %v1417 = vpack.c.b16 %v1205, %v1201
      %v1418 = vpack.c.b16 %v1210, %v1206
      %v1419 = vpack.c.b16 %v1211, %v1207
      %v1420 = vpack.c.b16 %v1212, %v1208
      %v1421 = vpack.c.b16 %v1213, %v1209
      %v1422 = vpack.c.b16 %v1218, %v1214
      %v1423 = vpack.c.b16 %v1219, %v1215
      %v1424 = vpack.c.b16 %v1220, %v1216
      %v1425 = vpack.c.b16 %v1221, %v1217
      %v1426 = vpack.c.b16 %v1226, %v1222
      %v1427 = vpack.c.b16 %v1227, %v1223
      %v1428 = vpack.c.b16 %v1228, %v1224
      %v1429 = vpack.c.b16 %v1229, %v1225
      %v1430 = vpack.c.b16 %v1234, %v1230
      %v1431 = vpack.c.b16 %v1235, %v1231
      %v1432 = vpack.c.b16 %v1236, %v1232
      %v1433 = vpack.c.b16 %v1237, %v1233
      %vm1630 = vcmask 130048
      %v1632 = vsel %vm1630, %v643, 0
      %1634 = vmatpush.bf16.msra.mxu0 %v1266
      %1635 = vmatpush.bf16.msra.mxu0 %v1262
      %1636 = vmatpush.bf16.msra.mxu0 %v1258
      %1637 = vmatpush.bf16.msra.mxu0 %v1254
      %1638 = vmatpush.bf16.msra.mxu0 %v1250
      %1639 = vmatpush.bf16.msra.mxu0 %v1246
      %1640 = vmatpush.bf16.msra.mxu0 %v1242
      %1641 = vmatpush.bf16.msra.mxu0 %v1238
      %1642 = vmatmul.bf16.gmra.mxu0 %v637
      %v1643 = vpop.f32.mrf.mxu0
      %v1644 = vadd.f32 %v618, %v1643
      %v1645 = vpop.f32.mrf.mxu0
      %1646 = vdwg.mxu0
      %1647 = vmatpush.bf16.msra.mxu0 %v1298
      %1648 = vmatpush.bf16.msra.mxu0 %v1294
      %1649 = vmatpush.bf16.msra.mxu0 %v1290
      %1650 = vmatpush.bf16.msra.mxu0 %v1286
      %1651 = vmatpush.bf16.msra.mxu0 %v1282
      %1652 = vmatpush.bf16.msra.mxu0 %v1278
      %1653 = vmatpush.bf16.msra.mxu0 %v1274
      %1654 = vmatpush.bf16.msra.mxu0 %v1270
      %1655 = vmatmul.bf16.gmra.mxu0 %v638
      %v1656 = vpop.f32.mrf.mxu0
      %v1657 = vadd.f32 %v1644, %v1656
      %v1658 = vpop.f32.mrf.mxu0
      %1659 = vdwg.mxu0
      %1660 = vmatpush.bf16.msra.mxu0 %v1330
      %1661 = vmatpush.bf16.msra.mxu0 %v1326
      %1662 = vmatpush.bf16.msra.mxu0 %v1322
      %1663 = vmatpush.bf16.msra.mxu0 %v1318
      %1664 = vmatpush.bf16.msra.mxu0 %v1314
      %1665 = vmatpush.bf16.msra.mxu0 %v1310
      %1666 = vmatpush.bf16.msra.mxu0 %v1306
      %1667 = vmatpush.bf16.msra.mxu0 %v1302
      %1668 = vmatmul.bf16.gmra.mxu0 %v639
      %v1669 = vpop.f32.mrf.mxu0
      %v1670 = vadd.f32 %v1657, %v1669
      %v1671 = vpop.f32.mrf.mxu0
      %1672 = vdwg.mxu0
      %1673 = vmatpush.bf16.msra.mxu0 %v1362
      %1674 = vmatpush.bf16.msra.mxu0 %v1358
      %1675 = vmatpush.bf16.msra.mxu0 %v1354
      %1676 = vmatpush.bf16.msra.mxu0 %v1350
      %1677 = vmatpush.bf16.msra.mxu0 %v1346
      %1678 = vmatpush.bf16.msra.mxu0 %v1342
      %1679 = vmatpush.bf16.msra.mxu0 %v1338
      %1680 = vmatpush.bf16.msra.mxu0 %v1334
      %1681 = vmatmul.bf16.gmra.mxu0 %v640
      %v1682 = vpop.f32.mrf.mxu0
      %v1683 = vadd.f32 %v1670, %v1682
      %v1684 = vpop.f32.mrf.mxu0
      %1685 = vdwg.mxu0
      %1686 = vmatpush.bf16.msra.mxu0 %v1394
      %1687 = vmatpush.bf16.msra.mxu0 %v1390
      %1688 = vmatpush.bf16.msra.mxu0 %v1386
      %1689 = vmatpush.bf16.msra.mxu0 %v1382
      %1690 = vmatpush.bf16.msra.mxu0 %v1378
      %1691 = vmatpush.bf16.msra.mxu0 %v1374
      %1692 = vmatpush.bf16.msra.mxu0 %v1370
      %1693 = vmatpush.bf16.msra.mxu0 %v1366
      %1694 = vmatmul.bf16.gmra.mxu0 %v641
      %v1695 = vpop.f32.mrf.mxu0
      %v1696 = vadd.f32 %v1683, %v1695
      %v1697 = vpop.f32.mrf.mxu0
      %1698 = vdwg.mxu0
      %1699 = vmatpush.bf16.msra.mxu0 %v1426
      %1700 = vmatpush.bf16.msra.mxu0 %v1422
      %1701 = vmatpush.bf16.msra.mxu0 %v1418
      %1702 = vmatpush.bf16.msra.mxu0 %v1414
      %1703 = vmatpush.bf16.msra.mxu0 %v1410
      %1704 = vmatpush.bf16.msra.mxu0 %v1406
      %1705 = vmatpush.bf16.msra.mxu0 %v1402
      %1706 = vmatpush.bf16.msra.mxu0 %v1398
      %1707 = vmatmul.bf16.gmra.mxu0 %v642
      %v1708 = vpop.f32.mrf.mxu0
      %v1709 = vadd.f32 %v1696, %v1708
      %v1710 = vpop.f32.mrf.mxu0
      %1711 = vdwg.mxu0
      %1712 = vmatpush.bf16.msra.mxu0 0
      %1713 = vmatpush.bf16.msra.mxu0 0
      %1714 = vmatpush.bf16.msra.mxu0 0
      %1715 = vmatpush.bf16.msra.mxu0 0
      %1716 = vmatpush.bf16.msra.mxu0 0
      %1717 = vmatpush.bf16.msra.mxu0 0
      %1718 = vmatpush.bf16.msra.mxu0 0
      %1719 = vmatpush.bf16.msra.mxu0 %v1430
      %1720 = vmatmul.bf16.gmra.mxu0 %v1632
      %v1721 = vpop.f32.mrf.mxu0
      %v1722 = vadd.f32 %v1709, %v1721
      %v1723 = vpop.f32.mrf.mxu0
      %1724 = vdwg.mxu0
      %1725 = vmatpush.bf16.msra.mxu0 %v1267
      %1726 = vmatpush.bf16.msra.mxu0 %v1263
      %1727 = vmatpush.bf16.msra.mxu0 %v1259
      %1728 = vmatpush.bf16.msra.mxu0 %v1255
      %1729 = vmatpush.bf16.msra.mxu0 %v1251
      %1730 = vmatpush.bf16.msra.mxu0 %v1247
      %1731 = vmatpush.bf16.msra.mxu0 %v1243
      %1732 = vmatpush.bf16.msra.mxu0 %v1239
      %1733 = vmatmul.bf16.gmra.mxu0 %v637
      %v1734 = vpop.f32.mrf.mxu0
      %v1735 = vadd.f32 %v619, %v1734
      %v1736 = vpop.f32.mrf.mxu0
      %1737 = vdwg.mxu0
      %1738 = vmatpush.bf16.msra.mxu0 %v1299
      %1739 = vmatpush.bf16.msra.mxu0 %v1295
      %1740 = vmatpush.bf16.msra.mxu0 %v1291
      %1741 = vmatpush.bf16.msra.mxu0 %v1287
      %1742 = vmatpush.bf16.msra.mxu0 %v1283
      %1743 = vmatpush.bf16.msra.mxu0 %v1279
      %1744 = vmatpush.bf16.msra.mxu0 %v1275
      %1745 = vmatpush.bf16.msra.mxu0 %v1271
      %1746 = vmatmul.bf16.gmra.mxu0 %v638
      %v1747 = vpop.f32.mrf.mxu0
      %v1748 = vadd.f32 %v1735, %v1747
      %v1749 = vpop.f32.mrf.mxu0
      %1750 = vdwg.mxu0
      %1751 = vmatpush.bf16.msra.mxu0 %v1331
      %1752 = vmatpush.bf16.msra.mxu0 %v1327
      %1753 = vmatpush.bf16.msra.mxu0 %v1323
      %1754 = vmatpush.bf16.msra.mxu0 %v1319
      %1755 = vmatpush.bf16.msra.mxu0 %v1315
      %1756 = vmatpush.bf16.msra.mxu0 %v1311
      %1757 = vmatpush.bf16.msra.mxu0 %v1307
      %1758 = vmatpush.bf16.msra.mxu0 %v1303
      %1759 = vmatmul.bf16.gmra.mxu0 %v639
      %v1760 = vpop.f32.mrf.mxu0
      %v1761 = vadd.f32 %v1748, %v1760
      %v1762 = vpop.f32.mrf.mxu0
      %1763 = vdwg.mxu0
      %1764 = vmatpush.bf16.msra.mxu0 %v1363
      %1765 = vmatpush.bf16.msra.mxu0 %v1359
      %1766 = vmatpush.bf16.msra.mxu0 %v1355
      %1767 = vmatpush.bf16.msra.mxu0 %v1351
      %1768 = vmatpush.bf16.msra.mxu0 %v1347
      %1769 = vmatpush.bf16.msra.mxu0 %v1343
      %1770 = vmatpush.bf16.msra.mxu0 %v1339
      %1771 = vmatpush.bf16.msra.mxu0 %v1335
      %1772 = vmatmul.bf16.gmra.mxu0 %v640
      %v1773 = vpop.f32.mrf.mxu0
      %v1774 = vadd.f32 %v1761, %v1773
      %v1775 = vpop.f32.mrf.mxu0
      %1776 = vdwg.mxu0
      %1777 = vmatpush.bf16.msra.mxu0 %v1395
      %1778 = vmatpush.bf16.msra.mxu0 %v1391
      %1779 = vmatpush.bf16.msra.mxu0 %v1387
      %1780 = vmatpush.bf16.msra.mxu0 %v1383
      %1781 = vmatpush.bf16.msra.mxu0 %v1379
      %1782 = vmatpush.bf16.msra.mxu0 %v1375
      %1783 = vmatpush.bf16.msra.mxu0 %v1371
      %1784 = vmatpush.bf16.msra.mxu0 %v1367
      %1785 = vmatmul.bf16.gmra.mxu0 %v641
      %v1786 = vpop.f32.mrf.mxu0
      %v1787 = vadd.f32 %v1774, %v1786
      %v1788 = vpop.f32.mrf.mxu0
      %1789 = vdwg.mxu0
      %1790 = vmatpush.bf16.msra.mxu0 %v1427
      %1791 = vmatpush.bf16.msra.mxu0 %v1423
      %1792 = vmatpush.bf16.msra.mxu0 %v1419
      %1793 = vmatpush.bf16.msra.mxu0 %v1415
      %1794 = vmatpush.bf16.msra.mxu0 %v1411
      %1795 = vmatpush.bf16.msra.mxu0 %v1407
      %1796 = vmatpush.bf16.msra.mxu0 %v1403
      %1797 = vmatpush.bf16.msra.mxu0 %v1399
      %1798 = vmatmul.bf16.gmra.mxu0 %v642
      %v1799 = vpop.f32.mrf.mxu0
      %v1800 = vadd.f32 %v1787, %v1799
      %v1801 = vpop.f32.mrf.mxu0
      %1802 = vdwg.mxu0
      %1803 = vmatpush.bf16.msra.mxu0 0
      %1804 = vmatpush.bf16.msra.mxu0 0
      %1805 = vmatpush.bf16.msra.mxu0 0
      %1806 = vmatpush.bf16.msra.mxu0 0
      %1807 = vmatpush.bf16.msra.mxu0 0
      %1808 = vmatpush.bf16.msra.mxu0 0
      %1809 = vmatpush.bf16.msra.mxu0 0
      %1810 = vmatpush.bf16.msra.mxu0 %v1431
      %1811 = vmatmul.bf16.gmra.mxu0 %v1632
      %v1812 = vpop.f32.mrf.mxu0
      %v1813 = vadd.f32 %v1800, %v1812
      %v1814 = vpop.f32.mrf.mxu0
      %1815 = vdwg.mxu0
      %1816 = vmatpush.bf16.msra.mxu0 %v1268
      %1817 = vmatpush.bf16.msra.mxu0 %v1264
      %1818 = vmatpush.bf16.msra.mxu0 %v1260
      %1819 = vmatpush.bf16.msra.mxu0 %v1256
      %1820 = vmatpush.bf16.msra.mxu0 %v1252
      %1821 = vmatpush.bf16.msra.mxu0 %v1248
      %1822 = vmatpush.bf16.msra.mxu0 %v1244
      %1823 = vmatpush.bf16.msra.mxu0 %v1240
      %1824 = vmatmul.bf16.gmra.mxu0 %v637
      %v1825 = vpop.f32.mrf.mxu0
      %v1826 = vadd.f32 %v620, %v1825
      %v1827 = vpop.f32.mrf.mxu0
      %1828 = vdwg.mxu0
      %1829 = vmatpush.bf16.msra.mxu0 %v1300
      %1830 = vmatpush.bf16.msra.mxu0 %v1296
      %1831 = vmatpush.bf16.msra.mxu0 %v1292
      %1832 = vmatpush.bf16.msra.mxu0 %v1288
      %1833 = vmatpush.bf16.msra.mxu0 %v1284
      %1834 = vmatpush.bf16.msra.mxu0 %v1280
      %1835 = vmatpush.bf16.msra.mxu0 %v1276
      %1836 = vmatpush.bf16.msra.mxu0 %v1272
      %1837 = vmatmul.bf16.gmra.mxu0 %v638
      %v1838 = vpop.f32.mrf.mxu0
      %v1839 = vadd.f32 %v1826, %v1838
      %v1840 = vpop.f32.mrf.mxu0
      %1841 = vdwg.mxu0
      %1842 = vmatpush.bf16.msra.mxu0 %v1332
      %1843 = vmatpush.bf16.msra.mxu0 %v1328
      %1844 = vmatpush.bf16.msra.mxu0 %v1324
      %1845 = vmatpush.bf16.msra.mxu0 %v1320
      %1846 = vmatpush.bf16.msra.mxu0 %v1316
      %1847 = vmatpush.bf16.msra.mxu0 %v1312
      %1848 = vmatpush.bf16.msra.mxu0 %v1308
      %1849 = vmatpush.bf16.msra.mxu0 %v1304
      %1850 = vmatmul.bf16.gmra.mxu0 %v639
      %v1851 = vpop.f32.mrf.mxu0
      %v1852 = vadd.f32 %v1839, %v1851
      %v1853 = vpop.f32.mrf.mxu0
      %1854 = vdwg.mxu0
      %1855 = vmatpush.bf16.msra.mxu0 %v1364
      %1856 = vmatpush.bf16.msra.mxu0 %v1360
      %1857 = vmatpush.bf16.msra.mxu0 %v1356
      %1858 = vmatpush.bf16.msra.mxu0 %v1352
      %1859 = vmatpush.bf16.msra.mxu0 %v1348
      %1860 = vmatpush.bf16.msra.mxu0 %v1344
      %1861 = vmatpush.bf16.msra.mxu0 %v1340
      %1862 = vmatpush.bf16.msra.mxu0 %v1336
      %1863 = vmatmul.bf16.gmra.mxu0 %v640
      %v1864 = vpop.f32.mrf.mxu0
      %v1865 = vadd.f32 %v1852, %v1864
      %v1866 = vpop.f32.mrf.mxu0
      %1867 = vdwg.mxu0
      %1868 = vmatpush.bf16.msra.mxu0 %v1396
      %1869 = vmatpush.bf16.msra.mxu0 %v1392
      %1870 = vmatpush.bf16.msra.mxu0 %v1388
      %1871 = vmatpush.bf16.msra.mxu0 %v1384
      %1872 = vmatpush.bf16.msra.mxu0 %v1380
      %1873 = vmatpush.bf16.msra.mxu0 %v1376
      %1874 = vmatpush.bf16.msra.mxu0 %v1372
      %1875 = vmatpush.bf16.msra.mxu0 %v1368
      %1876 = vmatmul.bf16.gmra.mxu0 %v641
      %v1877 = vpop.f32.mrf.mxu0
      %v1878 = vadd.f32 %v1865, %v1877
      %v1879 = vpop.f32.mrf.mxu0
      %1880 = vdwg.mxu0
      %1881 = vmatpush.bf16.msra.mxu0 %v1428
      %1882 = vmatpush.bf16.msra.mxu0 %v1424
      %1883 = vmatpush.bf16.msra.mxu0 %v1420
      %1884 = vmatpush.bf16.msra.mxu0 %v1416
      %1885 = vmatpush.bf16.msra.mxu0 %v1412
      %1886 = vmatpush.bf16.msra.mxu0 %v1408
      %1887 = vmatpush.bf16.msra.mxu0 %v1404
      %1888 = vmatpush.bf16.msra.mxu0 %v1400
      %1889 = vmatmul.bf16.gmra.mxu0 %v642
      %v1890 = vpop.f32.mrf.mxu0
      %v1891 = vadd.f32 %v1878, %v1890
      %v1892 = vpop.f32.mrf.mxu0
      %1893 = vdwg.mxu0
      %1894 = vmatpush.bf16.msra.mxu0 0
      %1895 = vmatpush.bf16.msra.mxu0 0
      %1896 = vmatpush.bf16.msra.mxu0 0
      %1897 = vmatpush.bf16.msra.mxu0 0
      %1898 = vmatpush.bf16.msra.mxu0 0
      %1899 = vmatpush.bf16.msra.mxu0 0
      %1900 = vmatpush.bf16.msra.mxu0 0
      %1901 = vmatpush.bf16.msra.mxu0 %v1432
      %1902 = vmatmul.bf16.gmra.mxu0 %v1632
      %v1903 = vpop.f32.mrf.mxu0
      %v1904 = vadd.f32 %v1891, %v1903
      %v1905 = vpop.f32.mrf.mxu0
      %1906 = vdwg.mxu0
      %1907 = vmatpush.bf16.msra.mxu0 %v1269
      %1908 = vmatpush.bf16.msra.mxu0 %v1265
      %1909 = vmatpush.bf16.msra.mxu0 %v1261
      %1910 = vmatpush.bf16.msra.mxu0 %v1257
      %1911 = vmatpush.bf16.msra.mxu0 %v1253
      %1912 = vmatpush.bf16.msra.mxu0 %v1249
      %1913 = vmatpush.bf16.msra.mxu0 %v1245
      %1914 = vmatpush.bf16.msra.mxu0 %v1241
      %1915 = vmatmul.bf16.gmra.mxu0 %v637
      %v1916 = vpop.f32.mrf.mxu0
      %v1917 = vadd.f32 %v621, %v1916
      %v1918 = vpop.f32.mrf.mxu0
      %1919 = vdwg.mxu0
      %1920 = vmatpush.bf16.msra.mxu0 %v1301
      %1921 = vmatpush.bf16.msra.mxu0 %v1297
      %1922 = vmatpush.bf16.msra.mxu0 %v1293
      %1923 = vmatpush.bf16.msra.mxu0 %v1289
      %1924 = vmatpush.bf16.msra.mxu0 %v1285
      %1925 = vmatpush.bf16.msra.mxu0 %v1281
      %1926 = vmatpush.bf16.msra.mxu0 %v1277
      %1927 = vmatpush.bf16.msra.mxu0 %v1273
      %1928 = vmatmul.bf16.gmra.mxu0 %v638
      %v1929 = vpop.f32.mrf.mxu0
      %v1930 = vadd.f32 %v1917, %v1929
      %v1931 = vpop.f32.mrf.mxu0
      %1932 = vdwg.mxu0
      %1933 = vmatpush.bf16.msra.mxu0 %v1333
      %1934 = vmatpush.bf16.msra.mxu0 %v1329
      %1935 = vmatpush.bf16.msra.mxu0 %v1325
      %1936 = vmatpush.bf16.msra.mxu0 %v1321
      %1937 = vmatpush.bf16.msra.mxu0 %v1317
      %1938 = vmatpush.bf16.msra.mxu0 %v1313
      %1939 = vmatpush.bf16.msra.mxu0 %v1309
      %1940 = vmatpush.bf16.msra.mxu0 %v1305
      %1941 = vmatmul.bf16.gmra.mxu0 %v639
      %v1942 = vpop.f32.mrf.mxu0
      %v1943 = vadd.f32 %v1930, %v1942
      %v1944 = vpop.f32.mrf.mxu0
      %1945 = vdwg.mxu0
      %1946 = vmatpush.bf16.msra.mxu0 %v1365
      %1947 = vmatpush.bf16.msra.mxu0 %v1361
      %1948 = vmatpush.bf16.msra.mxu0 %v1357
      %1949 = vmatpush.bf16.msra.mxu0 %v1353
      %1950 = vmatpush.bf16.msra.mxu0 %v1349
      %1951 = vmatpush.bf16.msra.mxu0 %v1345
      %1952 = vmatpush.bf16.msra.mxu0 %v1341
      %1953 = vmatpush.bf16.msra.mxu0 %v1337
      %1954 = vmatmul.bf16.gmra.mxu0 %v640
      %v1955 = vpop.f32.mrf.mxu0
      %v1956 = vadd.f32 %v1943, %v1955
      %v1957 = vpop.f32.mrf.mxu0
      %1958 = vdwg.mxu0
      %1959 = vmatpush.bf16.msra.mxu0 %v1397
      %1960 = vmatpush.bf16.msra.mxu0 %v1393
      %1961 = vmatpush.bf16.msra.mxu0 %v1389
      %1962 = vmatpush.bf16.msra.mxu0 %v1385
      %1963 = vmatpush.bf16.msra.mxu0 %v1381
      %1964 = vmatpush.bf16.msra.mxu0 %v1377
      %1965 = vmatpush.bf16.msra.mxu0 %v1373
      %1966 = vmatpush.bf16.msra.mxu0 %v1369
      %1967 = vmatmul.bf16.gmra.mxu0 %v641
      %v1968 = vpop.f32.mrf.mxu0
      %v1969 = vadd.f32 %v1956, %v1968
      %v1970 = vpop.f32.mrf.mxu0
      %1971 = vdwg.mxu0
      %1972 = vmatpush.bf16.msra.mxu0 %v1429
      %1973 = vmatpush.bf16.msra.mxu0 %v1425
      %1974 = vmatpush.bf16.msra.mxu0 %v1421
      %1975 = vmatpush.bf16.msra.mxu0 %v1417
      %1976 = vmatpush.bf16.msra.mxu0 %v1413
      %1977 = vmatpush.bf16.msra.mxu0 %v1409
      %1978 = vmatpush.bf16.msra.mxu0 %v1405
      %1979 = vmatpush.bf16.msra.mxu0 %v1401
      %1980 = vmatmul.bf16.gmra.mxu0 %v642
      %v1981 = vpop.f32.mrf.mxu0
      %v1982 = vadd.f32 %v1969, %v1981
      %v1983 = vpop.f32.mrf.mxu0
      %1984 = vdwg.mxu0
      %1985 = vmatpush.bf16.msra.mxu0 0
      %1986 = vmatpush.bf16.msra.mxu0 0
      %1987 = vmatpush.bf16.msra.mxu0 0
      %1988 = vmatpush.bf16.msra.mxu0 0
      %1989 = vmatpush.bf16.msra.mxu0 0
      %1990 = vmatpush.bf16.msra.mxu0 0
      %1991 = vmatpush.bf16.msra.mxu0 0
      %1992 = vmatpush.bf16.msra.mxu0 %v1433
      %1993 = vmatmul.bf16.gmra.mxu0 %v1632
      %v1994 = vpop.f32.mrf.mxu0
      %v1995 = vadd.f32 %v1982, %v1994
      %v1996 = vpop.f32.mrf.mxu0
      %1997 = vdwg.mxu0
      %v1998 = vmax.f32 %v1722, 0.0
      %v1999 = vmax.f32 %v1813, 0.0
      %v2000 = vmax.f32 %v1904, 0.0
      %v2001 = vmax.f32 %v1995, 0.0
      %v2002 = vpack.c.bf16 %v1998, %v1998
      %v2003 = vpack.c.bf16 %v1999, %v1999
      %v2004 = vpack.c.bf16 %v2000, %v2000
      %v2005 = vpack.c.bf16 %v2001, %v2001
      %v2006 = vld [vmem:[%s4] sm:$0xf]
      %v2007 = vld [vmem:[%s4 + $0x4] sm:$0xf]
      %v2008 = vld [vmem:[%s4 + $0x8] sm:$0xf]
      %v2009 = vld [vmem:[%s4 + $0xc] sm:$0xf]
      %v2010 = vld [vmem:[%s4 + $0x10] sm:$0xf]
      %v2011 = vld [vmem:[%s4 + $0x14] sm:$0xf]
      %v2012 = vld [vmem:[%s4 + $0x18] sm:$0xf]
      %v2013 = vld [vmem:[%s4 + $0x1c] sm:$0xf]
      %v2014 = vld [vmem:[%s4 + $0x20] sm:$0xf]
      %v2015 = vld [vmem:[%s4 + $0x24] sm:$0xf]
      %v2016 = vld [vmem:[%s4 + $0x28] sm:$0xf]
      %v2017 = vld [vmem:[%s4 + $0x2c] sm:$0xf]
      %v2018 = vld [vmem:[%s4 + $0x30] sm:$0xf]
      %v2019 = vld [vmem:[%s4 + $0x34] sm:$0xf]
      %v2020 = vld [vmem:[%s4 + $0x38] sm:$0xf]
      %v2021 = vld [vmem:[%s4 + $0x3c] sm:$0xf]
      %v2022 = vld [vmem:[%s4 + $0x40] sm:$0xf]
      %v2023 = vld [vmem:[%s4 + $0x44] sm:$0xf]
      %v2024 = vld [vmem:[%s4 + $0x48] sm:$0xf]
      %v2025 = vld [vmem:[%s4 + $0x4c] sm:$0xf]
      %v2026 = vld [vmem:[%s4 + $0x50] sm:$0xf]
      %v2027 = vld [vmem:[%s4 + $0x54] sm:$0xf]
      %v2028 = vld [vmem:[%s4 + $0x58] sm:$0xf]
      %v2029 = vld [vmem:[%s4 + $0x5c] sm:$0xf]
      %v2030 = vld [vmem:[%s4 + $0x60] sm:$0xf]
      %v2031 = vld [vmem:[%s4 + $0x64] sm:$0xf]
      %v2032 = vld [vmem:[%s4 + $0x68] sm:$0xf]
      %v2033 = vld [vmem:[%s4 + $0x6c] sm:$0xf]
      %v2034 = vld [vmem:[%s4 + $0x70] sm:$0xf]
      %v2035 = vld [vmem:[%s4 + $0x74] sm:$0xf]
      %v2036 = vld [vmem:[%s4 + $0x78] sm:$0xf]
      %v2037 = vld [vmem:[%s4 + $0x7c] sm:$0xf]
      %v2038 = vld [vmem:[%s4 + $0x80] sm:$0xf]
      %v2039 = vld [vmem:[%s4 + $0x84] sm:$0xf]
      %v2040 = vld [vmem:[%s4 + $0x88] sm:$0xf]
      %v2041 = vld [vmem:[%s4 + $0x8c] sm:$0xf]
      %v2042 = vld [vmem:[%s4 + $0x90] sm:$0xf]
      %v2043 = vld [vmem:[%s4 + $0x94] sm:$0xf]
      %v2044 = vld [vmem:[%s4 + $0x98] sm:$0xf]
      %v2045 = vld [vmem:[%s4 + $0x9c] sm:$0xf]
      %v2046 = vld [vmem:[%s4 + $0xa0] sm:$0xf]
      %v2047 = vld [vmem:[%s4 + $0xa4] sm:$0xf]
      %v2048 = vld [vmem:[%s4 + $0xa8] sm:$0xf]
      %v2049 = vld [vmem:[%s4 + $0xac] sm:$0xf]
      %v2050 = vld [vmem:[%s4 + $0xb0] sm:$0xf]
      %v2051 = vld [vmem:[%s4 + $0xb4] sm:$0xf]
      %v2052 = vld [vmem:[%s4 + $0xb8] sm:$0xf]
      %v2053 = vld [vmem:[%s4 + $0xbc] sm:$0xf]
      %v2054 = vld [vmem:[%s4 + $0xc0] sm:$0xf]
      %v2055 = vld [vmem:[%s4 + $0xc4] sm:$0xf]
      %v2056 = vld [vmem:[%s4 + $0xc8] sm:$0xf]
      %v2057 = vld [vmem:[%s4 + $0xcc] sm:$0xf]
      %v2058 = vld [vmem:[%s4 + $0xd0] sm:$0xf]
      %v2059 = vld [vmem:[%s4 + $0xd4] sm:$0xf]
      %v2060 = vld [vmem:[%s4 + $0xd8] sm:$0xf]
      %v2061 = vld [vmem:[%s4 + $0xdc] sm:$0xf]
      %v2062 = vld [vmem:[%s4 + $0xe0] sm:$0xf]
      %v2063 = vld [vmem:[%s4 + $0xe4] sm:$0xf]
      %v2064 = vld [vmem:[%s4 + $0xe8] sm:$0xf]
      %v2065 = vld [vmem:[%s4 + $0xec] sm:$0xf]
      %v2066 = vld [vmem:[%s4 + $0xf0] sm:$0xf]
      %v2067 = vld [vmem:[%s4 + $0xf4] sm:$0xf]
      %v2068 = vld [vmem:[%s4 + $0xf8] sm:$0xf]
      %v2069 = vld [vmem:[%s4 + $0xfc] sm:$0xf]
      %v2070 = vld [vmem:[%s5] sm:$0x1]
      %v2072 = vperm.slane %v2070, 0
      %v2138 = vunpack.c.l.b16 %v2006
      %v2139 = vunpack.c.l.b16 %v2007
      %v2140 = vunpack.c.l.b16 %v2008
      %v2141 = vunpack.c.l.b16 %v2009
      %v2142 = vunpack.c.l.b16 %v2010
      %v2143 = vunpack.c.l.b16 %v2011
      %v2144 = vunpack.c.l.b16 %v2012
      %v2145 = vunpack.c.l.b16 %v2013
      %v2146 = vunpack.c.l.b16 %v2014
      %v2147 = vunpack.c.l.b16 %v2015
      %v2148 = vunpack.c.l.b16 %v2016
      %v2149 = vunpack.c.l.b16 %v2017
      %v2150 = vunpack.c.l.b16 %v2018
      %v2151 = vunpack.c.l.b16 %v2019
      %v2152 = vunpack.c.l.b16 %v2020
      %v2153 = vunpack.c.l.b16 %v2021
      %v2154 = vunpack.c.l.b16 %v2022
      %v2155 = vunpack.c.l.b16 %v2023
      %v2156 = vunpack.c.l.b16 %v2024
      %v2157 = vunpack.c.l.b16 %v2025
      %v2158 = vunpack.c.l.b16 %v2026
      %v2159 = vunpack.c.l.b16 %v2027
      %v2160 = vunpack.c.l.b16 %v2028
      %v2161 = vunpack.c.l.b16 %v2029
      %v2162 = vunpack.c.l.b16 %v2030
      %v2163 = vunpack.c.l.b16 %v2031
      %v2164 = vunpack.c.l.b16 %v2032
      %v2165 = vunpack.c.l.b16 %v2033
      %v2166 = vunpack.c.l.b16 %v2034
      %v2167 = vunpack.c.l.b16 %v2035
      %v2168 = vunpack.c.l.b16 %v2036
      %v2169 = vunpack.c.l.b16 %v2037
      %v2170 = vunpack.c.l.b16 %v2038
      %v2171 = vunpack.c.l.b16 %v2039
      %v2172 = vunpack.c.l.b16 %v2040
      %v2173 = vunpack.c.l.b16 %v2041
      %v2174 = vunpack.c.l.b16 %v2042
      %v2175 = vunpack.c.l.b16 %v2043
      %v2176 = vunpack.c.l.b16 %v2044
      %v2177 = vunpack.c.l.b16 %v2045
      %v2178 = vunpack.c.l.b16 %v2046
      %v2179 = vunpack.c.l.b16 %v2047
      %v2180 = vunpack.c.l.b16 %v2048
      %v2181 = vunpack.c.l.b16 %v2049
      %v2182 = vunpack.c.l.b16 %v2050
      %v2183 = vunpack.c.l.b16 %v2051
      %v2184 = vunpack.c.l.b16 %v2052
      %v2185 = vunpack.c.l.b16 %v2053
      %v2186 = vunpack.c.l.b16 %v2054
      %v2187 = vunpack.c.l.b16 %v2055
      %v2188 = vunpack.c.l.b16 %v2056
      %v2189 = vunpack.c.l.b16 %v2057
      %v2190 = vunpack.c.l.b16 %v2058
      %v2191 = vunpack.c.l.b16 %v2059
      %v2192 = vunpack.c.l.b16 %v2060
      %v2193 = vunpack.c.l.b16 %v2061
      %v2194 = vunpack.c.l.b16 %v2062
      %v2195 = vunpack.c.l.b16 %v2063
      %v2196 = vunpack.c.l.b16 %v2064
      %v2197 = vunpack.c.l.b16 %v2065
      %v2198 = vunpack.c.l.b16 %v2066
      %v2199 = vunpack.c.l.b16 %v2067
      %v2200 = vunpack.c.l.b16 %v2068
      %v2201 = vunpack.c.l.b16 %v2069
      %v2202 = vpack.c.b16 %v2139, %v2138
      %v2203 = vpack.c.b16 %v2141, %v2140
      %v2204 = vpack.c.b16 %v2143, %v2142
      %v2205 = vpack.c.b16 %v2145, %v2144
      %v2206 = vpack.c.b16 %v2147, %v2146
      %v2207 = vpack.c.b16 %v2149, %v2148
      %v2208 = vpack.c.b16 %v2151, %v2150
      %v2209 = vpack.c.b16 %v2153, %v2152
      %v2210 = vpack.c.b16 %v2155, %v2154
      %v2211 = vpack.c.b16 %v2157, %v2156
      %v2212 = vpack.c.b16 %v2159, %v2158
      %v2213 = vpack.c.b16 %v2161, %v2160
      %v2214 = vpack.c.b16 %v2163, %v2162
      %v2215 = vpack.c.b16 %v2165, %v2164
      %v2216 = vpack.c.b16 %v2167, %v2166
      %v2217 = vpack.c.b16 %v2169, %v2168
      %v2218 = vpack.c.b16 %v2171, %v2170
      %v2219 = vpack.c.b16 %v2173, %v2172
      %v2220 = vpack.c.b16 %v2175, %v2174
      %v2221 = vpack.c.b16 %v2177, %v2176
      %v2222 = vpack.c.b16 %v2179, %v2178
      %v2223 = vpack.c.b16 %v2181, %v2180
      %v2224 = vpack.c.b16 %v2183, %v2182
      %v2225 = vpack.c.b16 %v2185, %v2184
      %v2226 = vpack.c.b16 %v2187, %v2186
      %v2227 = vpack.c.b16 %v2189, %v2188
      %v2228 = vpack.c.b16 %v2191, %v2190
      %v2229 = vpack.c.b16 %v2193, %v2192
      %v2230 = vpack.c.b16 %v2195, %v2194
      %v2231 = vpack.c.b16 %v2197, %v2196
      %v2232 = vpack.c.b16 %v2199, %v2198
      %v2233 = vpack.c.b16 %v2201, %v2200
      %2266 = vmatpush.bf16.msra.mxu0 %v2209
      %2267 = vmatpush.bf16.msra.mxu0 %v2208
      %2268 = vmatpush.bf16.msra.mxu0 %v2207
      %2269 = vmatpush.bf16.msra.mxu0 %v2206
      %2270 = vmatpush.bf16.msra.mxu0 %v2205
      %2271 = vmatpush.bf16.msra.mxu0 %v2204
      %2272 = vmatpush.bf16.msra.mxu0 %v2203
      %2273 = vmatpush.bf16.msra.mxu0 %v2202
      %2274 = vmatmul.bf16.gmra.mxu0 %v2002
      %v2275 = vpop.f32.mrf.mxu0
      %v2276 = vadd.f32 %v2072, %v2275
      %v2277 = vpop.f32.mrf.mxu0
      %2278 = vdwg.mxu0
      %2279 = vmatpush.bf16.msra.mxu0 %v2217
      %2280 = vmatpush.bf16.msra.mxu0 %v2216
      %2281 = vmatpush.bf16.msra.mxu0 %v2215
      %2282 = vmatpush.bf16.msra.mxu0 %v2214
      %2283 = vmatpush.bf16.msra.mxu0 %v2213
      %2284 = vmatpush.bf16.msra.mxu0 %v2212
      %2285 = vmatpush.bf16.msra.mxu0 %v2211
      %2286 = vmatpush.bf16.msra.mxu0 %v2210
      %2287 = vmatmul.bf16.gmra.mxu0 %v2003
      %v2288 = vpop.f32.mrf.mxu0
      %v2289 = vadd.f32 %v2276, %v2288
      %v2290 = vpop.f32.mrf.mxu0
      %2291 = vdwg.mxu0
      %2292 = vmatpush.bf16.msra.mxu0 %v2225
      %2293 = vmatpush.bf16.msra.mxu0 %v2224
      %2294 = vmatpush.bf16.msra.mxu0 %v2223
      %2295 = vmatpush.bf16.msra.mxu0 %v2222
      %2296 = vmatpush.bf16.msra.mxu0 %v2221
      %2297 = vmatpush.bf16.msra.mxu0 %v2220
      %2298 = vmatpush.bf16.msra.mxu0 %v2219
      %2299 = vmatpush.bf16.msra.mxu0 %v2218
      %2300 = vmatmul.bf16.gmra.mxu0 %v2004
      %v2301 = vpop.f32.mrf.mxu0
      %v2302 = vadd.f32 %v2289, %v2301
      %v2303 = vpop.f32.mrf.mxu0
      %2304 = vdwg.mxu0
      %2305 = vmatpush.bf16.msra.mxu0 %v2233
      %2306 = vmatpush.bf16.msra.mxu0 %v2232
      %2307 = vmatpush.bf16.msra.mxu0 %v2231
      %2308 = vmatpush.bf16.msra.mxu0 %v2230
      %2309 = vmatpush.bf16.msra.mxu0 %v2229
      %2310 = vmatpush.bf16.msra.mxu0 %v2228
      %2311 = vmatpush.bf16.msra.mxu0 %v2227
      %2312 = vmatpush.bf16.msra.mxu0 %v2226
      %2313 = vmatmul.bf16.gmra.mxu0 %v2005
      %v2314 = vpop.f32.mrf.mxu0
      %v2315 = vadd.f32 %v2302, %v2314
      %v2316 = vpop.f32.mrf.mxu0
      %2317 = vdwg.mxu0
      %v2318 = vmul.f32 %v2315, 0.5
      %v2319 = vmul.f32 %v2318, 1.442695
      %v2320 = vpow.pop %v2319
      %v2321 = vld [vmem:[%s405] sm:$0xff]
      %2323 = vrot.lane.b32.xlu0 %v2320, 64
      %v2324 = vpop.permute.xlu0 %2323
      %v2326 = vmul.f32 %v2321, %v2324
      %v2327 = vadd.f32 %v2315, %v2326
      %v2328 = vpack.c.bf16 %v2327, %v2327
      %v2329 = vld [vmem:[%s6] sm:$0xff]
      %v2330 = vld [vmem:[%s6 + $0x8] sm:$0xff]
      %v2331 = vld [vmem:[%s6 + $0x10] sm:$0xff]
      %v2332 = vld [vmem:[%s6 + $0x18] sm:$0xff]
      %v2333 = vld [vmem:[%s6 + $0x20] sm:$0xff]
      %v2334 = vld [vmem:[%s6 + $0x28] sm:$0xff]
      %v2335 = vld [vmem:[%s6 + $0x30] sm:$0xff]
      %v2336 = vld [vmem:[%s6 + $0x38] sm:$0xff]
      %v2337 = vld [vmem:[%s6 + $0x40] sm:$0xff]
      %v2338 = vld [vmem:[%s6 + $0x48] sm:$0xff]
      %v2339 = vld [vmem:[%s6 + $0x50] sm:$0xff]
      %v2340 = vld [vmem:[%s6 + $0x58] sm:$0xff]
      %v2341 = vld [vmem:[%s6 + $0x60] sm:$0xff]
      %v2342 = vld [vmem:[%s6 + $0x68] sm:$0xff]
      %v2343 = vld [vmem:[%s6 + $0x70] sm:$0xff]
      %v2344 = vld [vmem:[%s6 + $0x78] sm:$0xff]
      %v2345 = vld [vmem:[%s7] sm:$0xf]
      %v2347 = vperm.slane %v2345, 0
      %v2348 = vperm.slane %v2345, 1
      %v2349 = vperm.slane %v2345, 2
      %v2350 = vperm.slane %v2345, 3
      %v2371 = vunpack.c.l.b16 %v2329
      %v2372 = vunpack.c.h.b16 %v2329
      %v2373 = vunpack.c.l.b16 %v2330
      %v2374 = vunpack.c.h.b16 %v2330
      %v2375 = vunpack.c.l.b16 %v2331
      %v2376 = vunpack.c.h.b16 %v2331
      %v2377 = vunpack.c.l.b16 %v2332
      %v2378 = vunpack.c.h.b16 %v2332
      %v2379 = vunpack.c.l.b16 %v2333
      %v2380 = vunpack.c.h.b16 %v2333
      %v2381 = vunpack.c.l.b16 %v2334
      %v2382 = vunpack.c.h.b16 %v2334
      %v2383 = vunpack.c.l.b16 %v2335
      %v2384 = vunpack.c.h.b16 %v2335
      %v2385 = vunpack.c.l.b16 %v2336
      %v2386 = vunpack.c.h.b16 %v2336
      %v2387 = vunpack.c.l.b16 %v2337
      %v2388 = vunpack.c.h.b16 %v2337
      %v2389 = vunpack.c.l.b16 %v2338
      %v2390 = vunpack.c.h.b16 %v2338
      %v2391 = vunpack.c.l.b16 %v2339
      %v2392 = vunpack.c.h.b16 %v2339
      %v2393 = vunpack.c.l.b16 %v2340
      %v2394 = vunpack.c.h.b16 %v2340
      %v2395 = vunpack.c.l.b16 %v2341
      %v2396 = vunpack.c.h.b16 %v2341
      %v2397 = vunpack.c.l.b16 %v2342
      %v2398 = vunpack.c.h.b16 %v2342
      %v2399 = vunpack.c.l.b16 %v2343
      %v2400 = vunpack.c.h.b16 %v2343
      %v2401 = vunpack.c.l.b16 %v2344
      %v2402 = vunpack.c.h.b16 %v2344
      %v2403 = vpack.c.b16 %v2375, %v2371
      %v2404 = vpack.c.b16 %v2376, %v2372
      %v2405 = vpack.c.b16 %v2377, %v2373
      %v2406 = vpack.c.b16 %v2378, %v2374
      %v2407 = vpack.c.b16 %v2383, %v2379
      %v2408 = vpack.c.b16 %v2384, %v2380
      %v2409 = vpack.c.b16 %v2385, %v2381
      %v2410 = vpack.c.b16 %v2386, %v2382
      %v2411 = vpack.c.b16 %v2391, %v2387
      %v2412 = vpack.c.b16 %v2392, %v2388
      %v2413 = vpack.c.b16 %v2393, %v2389
      %v2414 = vpack.c.b16 %v2394, %v2390
      %v2415 = vpack.c.b16 %v2399, %v2395
      %v2416 = vpack.c.b16 %v2400, %v2396
      %v2417 = vpack.c.b16 %v2401, %v2397
      %v2418 = vpack.c.b16 %v2402, %v2398
      %vm2435 = vcmask 523264
      %v2437 = vsel %vm2435, %v2328, 0
      %2439 = vmatpush.bf16.msra.mxu0 0
      %2440 = vmatpush.bf16.msra.mxu0 0
      %2441 = vmatpush.bf16.msra.mxu0 0
      %2442 = vmatpush.bf16.msra.mxu0 0
      %2443 = vmatpush.bf16.msra.mxu0 %v2415
      %2444 = vmatpush.bf16.msra.mxu0 %v2411
      %2445 = vmatpush.bf16.msra.mxu0 %v2407
      %2446 = vmatpush.bf16.msra.mxu0 %v2403
      %2447 = vmatmul.bf16.gmra.mxu0 %v2437
      %v2448 = vpop.f32.mrf.mxu0
      %v2449 = vadd.f32 %v2347, %v2448
      %v2450 = vpop.f32.mrf.mxu0
      %2451 = vdwg.mxu0
      %2452 = vmatpush.bf16.msra.mxu0 0
      %2453 = vmatpush.bf16.msra.mxu0 0
      %2454 = vmatpush.bf16.msra.mxu0 0
      %2455 = vmatpush.bf16.msra.mxu0 0
      %2456 = vmatpush.bf16.msra.mxu0 %v2416
      %2457 = vmatpush.bf16.msra.mxu0 %v2412
      %2458 = vmatpush.bf16.msra.mxu0 %v2408
      %2459 = vmatpush.bf16.msra.mxu0 %v2404
      %2460 = vmatmul.bf16.gmra.mxu0 %v2437
      %v2461 = vpop.f32.mrf.mxu0
      %v2462 = vadd.f32 %v2348, %v2461
      %v2463 = vpop.f32.mrf.mxu0
      %2464 = vdwg.mxu0
      %2465 = vmatpush.bf16.msra.mxu0 0
      %2466 = vmatpush.bf16.msra.mxu0 0
      %2467 = vmatpush.bf16.msra.mxu0 0
      %2468 = vmatpush.bf16.msra.mxu0 0
      %2469 = vmatpush.bf16.msra.mxu0 %v2417
      %2470 = vmatpush.bf16.msra.mxu0 %v2413
      %2471 = vmatpush.bf16.msra.mxu0 %v2409
      %2472 = vmatpush.bf16.msra.mxu0 %v2405
      %2473 = vmatmul.bf16.gmra.mxu0 %v2437
      %v2474 = vpop.f32.mrf.mxu0
      %v2475 = vadd.f32 %v2349, %v2474
      %v2476 = vpop.f32.mrf.mxu0
      %2477 = vdwg.mxu0
      %2478 = vmatpush.bf16.msra.mxu0 0
      %2479 = vmatpush.bf16.msra.mxu0 0
      %2480 = vmatpush.bf16.msra.mxu0 0
      %2481 = vmatpush.bf16.msra.mxu0 0
      %2482 = vmatpush.bf16.msra.mxu0 %v2418
      %2483 = vmatpush.bf16.msra.mxu0 %v2414
      %2484 = vmatpush.bf16.msra.mxu0 %v2410
      %2485 = vmatpush.bf16.msra.mxu0 %v2406
      %2486 = vmatmul.bf16.gmra.mxu0 %v2437
      %v2487 = vpop.f32.mrf.mxu0
      %v2488 = vadd.f32 %v2350, %v2487
      %v2489 = vpop.f32.mrf.mxu0
      %2490 = vdwg.mxu0
      %v2491 = vmax.f32 %v2449, 0.0
      %v2492 = vmax.f32 %v2462, 0.0
      %v2493 = vmax.f32 %v2475, 0.0
      %v2494 = vmax.f32 %v2488, 0.0
      %v2495 = vpack.c.bf16 %v2491, %v2491
      %v2496 = vpack.c.bf16 %v2492, %v2492
      %v2497 = vpack.c.bf16 %v2493, %v2493
      %v2498 = vpack.c.bf16 %v2494, %v2494
      %v2499 = vld [vmem:[%s8] sm:$0xff]
      %v2500 = vld [vmem:[%s8 + $0x8] sm:$0xff]
      %v2501 = vld [vmem:[%s8 + $0x10] sm:$0xff]
      %v2502 = vld [vmem:[%s8 + $0x18] sm:$0xf]
      %v2503 = vld [vmem:[%s8 + $0x1c] sm:$0xff]
      %v2504 = vld [vmem:[%s8 + $0x24] sm:$0xff]
      %v2505 = vld [vmem:[%s8 + $0x2c] sm:$0xff]
      %v2506 = vld [vmem:[%s8 + $0x34] sm:$0xf]
      %v2507 = vld [vmem:[%s8 + $0x38] sm:$0xff]
      %v2508 = vld [vmem:[%s8 + $0x40] sm:$0xff]
      %v2509 = vld [vmem:[%s8 + $0x48] sm:$0xff]
      %v2510 = vld [vmem:[%s8 + $0x50] sm:$0xf]
      %v2511 = vld [vmem:[%s8 + $0x54] sm:$0xff]
      %v2512 = vld [vmem:[%s8 + $0x5c] sm:$0xff]
      %v2513 = vld [vmem:[%s8 + $0x64] sm:$0xff]
      %v2514 = vld [vmem:[%s8 + $0x6c] sm:$0xf]
      %v2515 = vld [vmem:[%s8 + $0x70] sm:$0xff]
      %v2516 = vld [vmem:[%s8 + $0x78] sm:$0xff]
      %v2517 = vld [vmem:[%s8 + $0x80] sm:$0xff]
      %v2518 = vld [vmem:[%s8 + $0x88] sm:$0xf]
      %v2519 = vld [vmem:[%s8 + $0x8c] sm:$0xff]
      %v2520 = vld [vmem:[%s8 + $0x94] sm:$0xff]
      %v2521 = vld [vmem:[%s8 + $0x9c] sm:$0xff]
      %v2522 = vld [vmem:[%s8 + $0xa4] sm:$0xf]
      %v2523 = vld [vmem:[%s8 + $0xa8] sm:$0xff]
      %v2524 = vld [vmem:[%s8 + $0xb0] sm:$0xff]
      %v2525 = vld [vmem:[%s8 + $0xb8] sm:$0xff]
      %v2526 = vld [vmem:[%s8 + $0xc0] sm:$0xf]
      %v2527 = vld [vmem:[%s8 + $0xc4] sm:$0xff]
      %v2528 = vld [vmem:[%s8 + $0xcc] sm:$0xff]
      %v2529 = vld [vmem:[%s8 + $0xd4] sm:$0xff]
      %v2530 = vld [vmem:[%s8 + $0xdc] sm:$0xf]
      %v2531 = vld [vmem:[%s8 + $0xe0] sm:$0xff]
      %v2532 = vld [vmem:[%s8 + $0xe8] sm:$0xff]
      %v2533 = vld [vmem:[%s8 + $0xf0] sm:$0xff]
      %v2534 = vld [vmem:[%s8 + $0xf8] sm:$0xf]
      %v2535 = vld [vmem:[%s8 + $0xfc] sm:$0xff]
      %v2536 = vld [vmem:[%s8 + $0x104] sm:$0xff]
      %v2537 = vld [vmem:[%s8 + $0x10c] sm:$0xff]
      %v2538 = vld [vmem:[%s8 + $0x114] sm:$0xf]
      %v2539 = vld [vmem:[%s8 + $0x118] sm:$0xff]
      %v2540 = vld [vmem:[%s8 + $0x120] sm:$0xff]
      %v2541 = vld [vmem:[%s8 + $0x128] sm:$0xff]
      %v2542 = vld [vmem:[%s8 + $0x130] sm:$0xf]
      %v2543 = vld [vmem:[%s8 + $0x134] sm:$0xff]
      %v2544 = vld [vmem:[%s8 + $0x13c] sm:$0xff]
      %v2545 = vld [vmem:[%s8 + $0x144] sm:$0xff]
      %v2546 = vld [vmem:[%s8 + $0x14c] sm:$0xf]
      %v2547 = vld [vmem:[%s8 + $0x150] sm:$0xff]
      %v2548 = vld [vmem:[%s8 + $0x158] sm:$0xff]
      %v2549 = vld [vmem:[%s8 + $0x160] sm:$0xff]
      %v2550 = vld [vmem:[%s8 + $0x168] sm:$0xf]
      %v2551 = vld [vmem:[%s8 + $0x16c] sm:$0xff]
      %v2552 = vld [vmem:[%s8 + $0x174] sm:$0xff]
      %v2553 = vld [vmem:[%s8 + $0x17c] sm:$0xff]
      %v2554 = vld [vmem:[%s8 + $0x184] sm:$0xf]
      %v2555 = vld [vmem:[%s8 + $0x188] sm:$0xff]
      %v2556 = vld [vmem:[%s8 + $0x190] sm:$0xff]
      %v2557 = vld [vmem:[%s8 + $0x198] sm:$0xff]
      %v2558 = vld [vmem:[%s8 + $0x1a0] sm:$0xf]
      %v2559 = vld [vmem:[%s8 + $0x1a4] sm:$0xff]
      %v2560 = vld [vmem:[%s8 + $0x1ac] sm:$0xff]
      %v2561 = vld [vmem:[%s8 + $0x1b4] sm:$0xff]
      %v2562 = vld [vmem:[%s8 + $0x1bc] sm:$0xf]
      %v2563 = vld [vmem:[%s8 + $0x1c0] sm:$0xff]
      %v2564 = vld [vmem:[%s8 + $0x1c8] sm:$0xff]
      %v2565 = vld [vmem:[%s8 + $0x1d0] sm:$0xff]
      %v2566 = vld [vmem:[%s8 + $0x1d8] sm:$0xf]
      %v2567 = vld [vmem:[%s8 + $0x1dc] sm:$0xff]
      %v2568 = vld [vmem:[%s8 + $0x1e4] sm:$0xff]
      %v2569 = vld [vmem:[%s8 + $0x1ec] sm:$0xff]
      %v2570 = vld [vmem:[%s8 + $0x1f4] sm:$0xf]
      %v2571 = vld [vmem:[%s8 + $0x1f8] sm:$0xff]
      %v2572 = vld [vmem:[%s8 + $0x200] sm:$0xff]
      %v2573 = vld [vmem:[%s8 + $0x208] sm:$0xff]
      %v2574 = vld [vmem:[%s8 + $0x210] sm:$0xf]
      %v2575 = vld [vmem:[%s8 + $0x214] sm:$0xff]
      %v2576 = vld [vmem:[%s8 + $0x21c] sm:$0xff]
      %v2577 = vld [vmem:[%s8 + $0x224] sm:$0xff]
      %v2578 = vld [vmem:[%s8 + $0x22c] sm:$0xf]
      %v2579 = vld [vmem:[%s8 + $0x230] sm:$0xff]
      %v2580 = vld [vmem:[%s8 + $0x238] sm:$0xff]
      %v2581 = vld [vmem:[%s8 + $0x240] sm:$0xff]
      %v2582 = vld [vmem:[%s8 + $0x248] sm:$0xf]
      %v2583 = vld [vmem:[%s8 + $0x24c] sm:$0xff]
      %v2584 = vld [vmem:[%s8 + $0x254] sm:$0xff]
      %v2585 = vld [vmem:[%s8 + $0x25c] sm:$0xff]
      %v2586 = vld [vmem:[%s8 + $0x264] sm:$0xf]
      %v2587 = vld [vmem:[%s8 + $0x268] sm:$0xff]
      %v2588 = vld [vmem:[%s8 + $0x270] sm:$0xff]
      %v2589 = vld [vmem:[%s8 + $0x278] sm:$0xff]
      %v2590 = vld [vmem:[%s8 + $0x280] sm:$0xf]
      %v2591 = vld [vmem:[%s8 + $0x284] sm:$0xff]
      %v2592 = vld [vmem:[%s8 + $0x28c] sm:$0xff]
      %v2593 = vld [vmem:[%s8 + $0x294] sm:$0xff]
      %v2594 = vld [vmem:[%s8 + $0x29c] sm:$0xf]
      %v2595 = vld [vmem:[%s8 + $0x2a0] sm:$0xff]
      %v2596 = vld [vmem:[%s8 + $0x2a8] sm:$0xff]
      %v2597 = vld [vmem:[%s8 + $0x2b0] sm:$0xff]
      %v2598 = vld [vmem:[%s8 + $0x2b8] sm:$0xf]
      %v2599 = vld [vmem:[%s8 + $0x2bc] sm:$0xff]
      %v2600 = vld [vmem:[%s8 + $0x2c4] sm:$0xff]
      %v2601 = vld [vmem:[%s8 + $0x2cc] sm:$0xff]
      %v2602 = vld [vmem:[%s8 + $0x2d4] sm:$0xf]
      %v2603 = vld [vmem:[%s8 + $0x2d8] sm:$0xff]
      %v2604 = vld [vmem:[%s8 + $0x2e0] sm:$0xff]
      %v2605 = vld [vmem:[%s8 + $0x2e8] sm:$0xff]
      %v2606 = vld [vmem:[%s8 + $0x2f0] sm:$0xf]
      %v2607 = vld [vmem:[%s8 + $0x2f4] sm:$0xff]
      %v2608 = vld [vmem:[%s8 + $0x2fc] sm:$0xff]
      %v2609 = vld [vmem:[%s8 + $0x304] sm:$0xff]
      %v2610 = vld [vmem:[%s8 + $0x30c] sm:$0xf]
      %v2611 = vld [vmem:[%s8 + $0x310] sm:$0xff]
      %v2612 = vld [vmem:[%s8 + $0x318] sm:$0xff]
      %v2613 = vld [vmem:[%s8 + $0x320] sm:$0xff]
      %v2614 = vld [vmem:[%s8 + $0x328] sm:$0xf]
      %v2615 = vld [vmem:[%s8 + $0x32c] sm:$0xff]
      %v2616 = vld [vmem:[%s8 + $0x334] sm:$0xff]
      %v2617 = vld [vmem:[%s8 + $0x33c] sm:$0xff]
      %v2618 = vld [vmem:[%s8 + $0x344] sm:$0xf]
      %v2619 = vld [vmem:[%s8 + $0x348] sm:$0xff]
      %v2620 = vld [vmem:[%s8 + $0x350] sm:$0xff]
      %v2621 = vld [vmem:[%s8 + $0x358] sm:$0xff]
      %v2622 = vld [vmem:[%s8 + $0x360] sm:$0xf]
      %v2623 = vld [vmem:[%s8 + $0x364] sm:$0xff]
      %v2624 = vld [vmem:[%s8 + $0x36c] sm:$0xff]
      %v2625 = vld [vmem:[%s8 + $0x374] sm:$0xff]
      %v2626 = vld [vmem:[%s8 + $0x37c] sm:$0xf]
      %v2627 = vld [vmem:[%s8 + $0x380] sm:$0xff]
      %v2628 = vld [vmem:[%s8 + $0x388] sm:$0xff]
      %v2629 = vld [vmem:[%s8 + $0x390] sm:$0xff]
      %v2630 = vld [vmem:[%s8 + $0x398] sm:$0xf]
      %v2631 = vld [vmem:[%s8 + $0x39c] sm:$0xff]
      %v2632 = vld [vmem:[%s8 + $0x3a4] sm:$0xff]
      %v2633 = vld [vmem:[%s8 + $0x3ac] sm:$0xff]
      %v2634 = vld [vmem:[%s8 + $0x3b4] sm:$0xf]
      %v2635 = vld [vmem:[%s8 + $0x3b8] sm:$0xff]
      %v2636 = vld [vmem:[%s8 + $0x3c0] sm:$0xff]
      %v2637 = vld [vmem:[%s8 + $0x3c8] sm:$0xff]
      %v2638 = vld [vmem:[%s8 + $0x3d0] sm:$0xf]
      %v2639 = vld [vmem:[%s8 + $0x3d4] sm:$0xff]
      %v2640 = vld [vmem:[%s8 + $0x3dc] sm:$0xff]
      %v2641 = vld [vmem:[%s8 + $0x3e4] sm:$0xff]
      %v2642 = vld [vmem:[%s8 + $0x3ec] sm:$0xf]
      %v2643 = vld [vmem:[%s8 + $0x3f0] sm:$0xff]
      %v2644 = vld [vmem:[%s8 + $0x3f8] sm:$0xff]
      %v2645 = vld [vmem:[%s8 + $0x400] sm:$0xff]
      %v2646 = vld [vmem:[%s8 + $0x408] sm:$0xf]
      %v2647 = vld [vmem:[%s8 + $0x40c] sm:$0xff]
      %v2648 = vld [vmem:[%s8 + $0x414] sm:$0xff]
      %v2649 = vld [vmem:[%s8 + $0x41c] sm:$0xff]
      %v2650 = vld [vmem:[%s8 + $0x424] sm:$0xf]
      %v2651 = vld [vmem:[%s8 + $0x428] sm:$0xff]
      %v2652 = vld [vmem:[%s8 + $0x430] sm:$0xff]
      %v2653 = vld [vmem:[%s8 + $0x438] sm:$0xff]
      %v2654 = vld [vmem:[%s8 + $0x440] sm:$0xf]
      %v2655 = vld [vmem:[%s8 + $0x444] sm:$0xff]
      %v2656 = vld [vmem:[%s8 + $0x44c] sm:$0xff]
      %v2657 = vld [vmem:[%s8 + $0x454] sm:$0xff]
      %v2658 = vld [vmem:[%s8 + $0x45c] sm:$0xf]
      %v2659 = vld [vmem:[%s8 + $0x460] sm:$0xff]
      %v2660 = vld [vmem:[%s8 + $0x468] sm:$0xff]
      %v2661 = vld [vmem:[%s8 + $0x470] sm:$0xff]
      %v2662 = vld [vmem:[%s8 + $0x478] sm:$0xf]
      %v2663 = vld [vmem:[%s8 + $0x47c] sm:$0xff]
      %v2664 = vld [vmem:[%s8 + $0x484] sm:$0xff]
      %v2665 = vld [vmem:[%s8 + $0x48c] sm:$0xff]
      %v2666 = vld [vmem:[%s8 + $0x494] sm:$0xf]
      %v2667 = vld [vmem:[%s8 + $0x498] sm:$0xff]
      %v2668 = vld [vmem:[%s8 + $0x4a0] sm:$0xff]
      %v2669 = vld [vmem:[%s8 + $0x4a8] sm:$0xff]
      %v2670 = vld [vmem:[%s8 + $0x4b0] sm:$0xf]
      %v2671 = vld [vmem:[%s8 + $0x4b4] sm:$0xff]
      %v2672 = vld [vmem:[%s8 + $0x4bc] sm:$0xff]
      %v2673 = vld [vmem:[%s8 + $0x4c4] sm:$0xff]
      %v2674 = vld [vmem:[%s8 + $0x4cc] sm:$0xf]
      %v2675 = vld [vmem:[%s8 + $0x4d0] sm:$0xff]
      %v2676 = vld [vmem:[%s8 + $0x4d8] sm:$0xff]
      %v2677 = vld [vmem:[%s8 + $0x4e0] sm:$0xff]
      %v2678 = vld [vmem:[%s8 + $0x4e8] sm:$0xf]
      %v2679 = vld [vmem:[%s8 + $0x4ec] sm:$0xff]
      %v2680 = vld [vmem:[%s8 + $0x4f4] sm:$0xff]
      %v2681 = vld [vmem:[%s8 + $0x4fc] sm:$0xff]
      %v2682 = vld [vmem:[%s8 + $0x504] sm:$0xf]
      %v2683 = vld [vmem:[%s8 + $0x508] sm:$0xff]
      %v2684 = vld [vmem:[%s8 + $0x510] sm:$0xff]
      %v2685 = vld [vmem:[%s8 + $0x518] sm:$0xff]
      %v2686 = vld [vmem:[%s8 + $0x520] sm:$0xf]
      %v2687 = vld [vmem:[%s8 + $0x524] sm:$0xff]
      %v2688 = vld [vmem:[%s8 + $0x52c] sm:$0xff]
      %v2689 = vld [vmem:[%s8 + $0x534] sm:$0xff]
      %v2690 = vld [vmem:[%s8 + $0x53c] sm:$0xf]
      %v2691 = vld [vmem:[%s8 + $0x540] sm:$0xff]
      %v2692 = vld [vmem:[%s8 + $0x548] sm:$0xff]
      %v2693 = vld [vmem:[%s8 + $0x550] sm:$0xff]
      %v2694 = vld [vmem:[%s8 + $0x558] sm:$0xf]
      %v2695 = vld [vmem:[%s8 + $0x55c] sm:$0xff]
      %v2696 = vld [vmem:[%s8 + $0x564] sm:$0xff]
      %v2697 = vld [vmem:[%s8 + $0x56c] sm:$0xff]
      %v2698 = vld [vmem:[%s8 + $0x574] sm:$0xf]
      %v2699 = vld [vmem:[%s8 + $0x578] sm:$0xff]
      %v2700 = vld [vmem:[%s8 + $0x580] sm:$0xff]
      %v2701 = vld [vmem:[%s8 + $0x588] sm:$0xff]
      %v2702 = vld [vmem:[%s8 + $0x590] sm:$0xf]
      %v2703 = vld [vmem:[%s8 + $0x594] sm:$0xff]
      %v2704 = vld [vmem:[%s8 + $0x59c] sm:$0xff]
      %v2705 = vld [vmem:[%s8 + $0x5a4] sm:$0xff]
      %v2706 = vld [vmem:[%s8 + $0x5ac] sm:$0xf]
      %v2707 = vld [vmem:[%s8 + $0x5b0] sm:$0xff]
      %v2708 = vld [vmem:[%s8 + $0x5b8] sm:$0xff]
      %v2709 = vld [vmem:[%s8 + $0x5c0] sm:$0xff]
      %v2710 = vld [vmem:[%s8 + $0x5c8] sm:$0xf]
      %v2711 = vld [vmem:[%s8 + $0x5cc] sm:$0xff]
      %v2712 = vld [vmem:[%s8 + $0x5d4] sm:$0xff]
      %v2713 = vld [vmem:[%s8 + $0x5dc] sm:$0xff]
      %v2714 = vld [vmem:[%s8 + $0x5e4] sm:$0xf]
      %v2715 = vld [vmem:[%s8 + $0x5e8] sm:$0xff]
      %v2716 = vld [vmem:[%s8 + $0x5f0] sm:$0xff]
      %v2717 = vld [vmem:[%s8 + $0x5f8] sm:$0xff]
      %v2718 = vld [vmem:[%s8 + $0x600] sm:$0xf]
      %v2719 = vld [vmem:[%s8 + $0x604] sm:$0xff]
      %v2720 = vld [vmem:[%s8 + $0x60c] sm:$0xff]
      %v2721 = vld [vmem:[%s8 + $0x614] sm:$0xff]
      %v2722 = vld [vmem:[%s8 + $0x61c] sm:$0xf]
      %v2723 = vld [vmem:[%s8 + $0x620] sm:$0xff]
      %v2724 = vld [vmem:[%s8 + $0x628] sm:$0xff]
      %v2725 = vld [vmem:[%s8 + $0x630] sm:$0xff]
      %v2726 = vld [vmem:[%s8 + $0x638] sm:$0xf]
      %v2727 = vld [vmem:[%s8 + $0x63c] sm:$0xff]
      %v2728 = vld [vmem:[%s8 + $0x644] sm:$0xff]
      %v2729 = vld [vmem:[%s8 + $0x64c] sm:$0xff]
      %v2730 = vld [vmem:[%s8 + $0x654] sm:$0xf]
      %v2731 = vld [vmem:[%s8 + $0x658] sm:$0xff]
      %v2732 = vld [vmem:[%s8 + $0x660] sm:$0xff]
      %v2733 = vld [vmem:[%s8 + $0x668] sm:$0xff]
      %v2734 = vld [vmem:[%s8 + $0x670] sm:$0xf]
      %v2735 = vld [vmem:[%s8 + $0x674] sm:$0xff]
      %v2736 = vld [vmem:[%s8 + $0x67c] sm:$0xff]
      %v2737 = vld [vmem:[%s8 + $0x684] sm:$0xff]
      %v2738 = vld [vmem:[%s8 + $0x68c] sm:$0xf]
      %v2739 = vld [vmem:[%s8 + $0x690] sm:$0xff]
      %v2740 = vld [vmem:[%s8 + $0x698] sm:$0xff]
      %v2741 = vld [vmem:[%s8 + $0x6a0] sm:$0xff]
      %v2742 = vld [vmem:[%s8 + $0x6a8] sm:$0xf]
      %v2743 = vld [vmem:[%s8 + $0x6ac] sm:$0xff]
      %v2744 = vld [vmem:[%s8 + $0x6b4] sm:$0xff]
      %v2745 = vld [vmem:[%s8 + $0x6bc] sm:$0xff]
      %v2746 = vld [vmem:[%s8 + $0x6c4] sm:$0xf]
      %v2747 = vld [vmem:[%s8 + $0x6c8] sm:$0xff]
      %v2748 = vld [vmem:[%s8 + $0x6d0] sm:$0xff]
      %v2749 = vld [vmem:[%s8 + $0x6d8] sm:$0xff]
      %v2750 = vld [vmem:[%s8 + $0x6e0] sm:$0xf]
      %v2751 = vld [vmem:[%s8 + $0x6e4] sm:$0xff]
      %v2752 = vld [vmem:[%s8 + $0x6ec] sm:$0xff]
      %v2753 = vld [vmem:[%s8 + $0x6f4] sm:$0xff]
      %v2754 = vld [vmem:[%s8 + $0x6fc] sm:$0xf]
      %v2755 = vld [vmem:[%s9] sm:$0x7f]
      %v2757 = vperm.slane %v2755, 0
      %v2758 = vperm.slane %v2755, 1
      %v2759 = vperm.slane %v2755, 2
      %v2760 = vperm.slane %v2755, 3
      %v2761 = vperm.slane %v2755, 4
      %v2762 = vperm.slane %v2755, 5
      %v2763 = vperm.slane %v2755, 6
      %v3027 = vunpack.c.l.b16 %v2499
      %v3028 = vunpack.c.h.b16 %v2499
      %v3029 = vunpack.c.l.b16 %v2500
      %v3030 = vunpack.c.h.b16 %v2500
      %v3031 = vunpack.c.l.b16 %v2501
      %v3032 = vunpack.c.h.b16 %v2501
      %v3033 = vunpack.c.l.b16 %v2502
      %v3034 = vunpack.c.l.b16 %v2503
      %v3035 = vunpack.c.h.b16 %v2503
      %v3036 = vunpack.c.l.b16 %v2504
      %v3037 = vunpack.c.h.b16 %v2504
      %v3038 = vunpack.c.l.b16 %v2505
      %v3039 = vunpack.c.h.b16 %v2505
      %v3040 = vunpack.c.l.b16 %v2506
      %v3041 = vunpack.c.l.b16 %v2507
      %v3042 = vunpack.c.h.b16 %v2507
      %v3043 = vunpack.c.l.b16 %v2508
      %v3044 = vunpack.c.h.b16 %v2508
      %v3045 = vunpack.c.l.b16 %v2509
      %v3046 = vunpack.c.h.b16 %v2509
      %v3047 = vunpack.c.l.b16 %v2510
      %v3048 = vunpack.c.l.b16 %v2511
      %v3049 = vunpack.c.h.b16 %v2511
      %v3050 = vunpack.c.l.b16 %v2512
      %v3051 = vunpack.c.h.b16 %v2512
      %v3052 = vunpack.c.l.b16 %v2513
      %v3053 = vunpack.c.h.b16 %v2513
      %v3054 = vunpack.c.l.b16 %v2514
      %v3055 = vunpack.c.l.b16 %v2515
      %v3056 = vunpack.c.h.b16 %v2515
      %v3057 = vunpack.c.l.b16 %v2516
      %v3058 = vunpack.c.h.b16 %v2516
      %v3059 = vunpack.c.l.b16 %v2517
      %v3060 = vunpack.c.h.b16 %v2517
      %v3061 = vunpack.c.l.b16 %v2518
      %v3062 = vunpack.c.l.b16 %v2519
      %v3063 = vunpack.c.h.b16 %v2519
      %v3064 = vunpack.c.l.b16 %v2520
      %v3065 = vunpack.c.h.b16 %v2520
      %v3066 = vunpack.c.l.b16 %v2521
      %v3067 = vunpack.c.h.b16 %v2521
      %v3068 = vunpack.c.l.b16 %v2522
      %v3069 = vunpack.c.l.b16 %v2523
      %v3070 = vunpack.c.h.b16 %v2523
      %v3071 = vunpack.c.l.b16 %v2524
      %v3072 = vunpack.c.h.b16 %v2524
      %v3073 = vunpack.c.l.b16 %v2525
      %v3074 = vunpack.c.h.b16 %v2525
      %v3075 = vunpack.c.l.b16 %v2526
      %v3076 = vunpack.c.l.b16 %v2527
      %v3077 = vunpack.c.h.b16 %v2527
      %v3078 = vunpack.c.l.b16 %v2528
      %v3079 = vunpack.c.h.b16 %v2528
      %v3080 = vunpack.c.l.b16 %v2529
      %v3081 = vunpack.c.h.b16 %v2529
      %v3082 = vunpack.c.l.b16 %v2530
      %v3083 = vunpack.c.l.b16 %v2531
      %v3084 = vunpack.c.h.b16 %v2531
      %v3085 = vunpack.c.l.b16 %v2532
      %v3086 = vunpack.c.h.b16 %v2532
      %v3087 = vunpack.c.l.b16 %v2533
      %v3088 = vunpack.c.h.b16 %v2533
      %v3089 = vunpack.c.l.b16 %v2534
      %v3090 = vunpack.c.l.b16 %v2535
      %v3091 = vunpack.c.h.b16 %v2535
      %v3092 = vunpack.c.l.b16 %v2536
      %v3093 = vunpack.c.h.b16 %v2536
      %v3094 = vunpack.c.l.b16 %v2537
      %v3095 = vunpack.c.h.b16 %v2537
      %v3096 = vunpack.c.l.b16 %v2538
      %v3097 = vunpack.c.l.b16 %v2539
      %v3098 = vunpack.c.h.b16 %v2539
      %v3099 = vunpack.c.l.b16 %v2540
      %v3100 = vunpack.c.h.b16 %v2540
      %v3101 = vunpack.c.l.b16 %v2541
      %v3102 = vunpack.c.h.b16 %v2541
      %v3103 = vunpack.c.l.b16 %v2542
      %v3104 = vunpack.c.l.b16 %v2543
      %v3105 = vunpack.c.h.b16 %v2543
      %v3106 = vunpack.c.l.b16 %v2544
      %v3107 = vunpack.c.h.b16 %v2544
      %v3108 = vunpack.c.l.b16 %v2545
      %v3109 = vunpack.c.h.b16 %v2545
      %v3110 = vunpack.c.l.b16 %v2546
      %v3111 = vunpack.c.l.b16 %v2547
      %v3112 = vunpack.c.h.b16 %v2547
      %v3113 = vunpack.c.l.b16 %v2548
      %v3114 = vunpack.c.h.b16 %v2548
      %v3115 = vunpack.c.l.b16 %v2549
      %v3116 = vunpack.c.h.b16 %v2549
      %v3117 = vunpack.c.l.b16 %v2550
      %v3118 = vunpack.c.l.b16 %v2551
      %v3119 = vunpack.c.h.b16 %v2551
      %v3120 = vunpack.c.l.b16 %v2552
      %v3121 = vunpack.c.h.b16 %v2552
      %v3122 = vunpack.c.l.b16 %v2553
      %v3123 = vunpack.c.h.b16 %v2553
      %v3124 = vunpack.c.l.b16 %v2554
      %v3125 = vunpack.c.l.b16 %v2555
      %v3126 = vunpack.c.h.b16 %v2555
      %v3127 = vunpack.c.l.b16 %v2556
      %v3128 = vunpack.c.h.b16 %v2556
      %v3129 = vunpack.c.l.b16 %v2557
      %v3130 = vunpack.c.h.b16 %v2557
      %v3131 = vunpack.c.l.b16 %v2558
      %v3132 = vunpack.c.l.b16 %v2559
      %v3133 = vunpack.c.h.b16 %v2559
      %v3134 = vunpack.c.l.b16 %v2560
      %v3135 = vunpack.c.h.b16 %v2560
      %v3136 = vunpack.c.l.b16 %v2561
      %v3137 = vunpack.c.h.b16 %v2561
      %v3138 = vunpack.c.l.b16 %v2562
      %v3139 = vunpack.c.l.b16 %v2563
      %v3140 = vunpack.c.h.b16 %v2563
      %v3141 = vunpack.c.l.b16 %v2564
      %v3142 = vunpack.c.h.b16 %v2564
      %v3143 = vunpack.c.l.b16 %v2565
      %v3144 = vunpack.c.h.b16 %v2565
      %v3145 = vunpack.c.l.b16 %v2566
      %v3146 = vunpack.c.l.b16 %v2567
      %v3147 = vunpack.c.h.b16 %v2567
      %v3148 = vunpack.c.l.b16 %v2568
      %v3149 = vunpack.c.h.b16 %v2568
      %v3150 = vunpack.c.l.b16 %v2569
      %v3151 = vunpack.c.h.b16 %v2569
      %v3152 = vunpack.c.l.b16 %v2570
      %v3153 = vunpack.c.l.b16 %v2571
      %v3154 = vunpack.c.h.b16 %v2571
      %v3155 = vunpack.c.l.b16 %v2572
      %v3156 = vunpack.c.h.b16 %v2572
      %v3157 = vunpack.c.l.b16 %v2573
      %v3158 = vunpack.c.h.b16 %v2573
      %v3159 = vunpack.c.l.b16 %v2574
      %v3160 = vunpack.c.l.b16 %v2575
      %v3161 = vunpack.c.h.b16 %v2575
      %v3162 = vunpack.c.l.b16 %v2576
      %v3163 = vunpack.c.h.b16 %v2576
      %v3164 = vunpack.c.l.b16 %v2577
      %v3165 = vunpack.c.h.b16 %v2577
      %v3166 = vunpack.c.l.b16 %v2578
      %v3167 = vunpack.c.l.b16 %v2579
      %v3168 = vunpack.c.h.b16 %v2579
      %v3169 = vunpack.c.l.b16 %v2580
      %v3170 = vunpack.c.h.b16 %v2580
      %v3171 = vunpack.c.l.b16 %v2581
      %v3172 = vunpack.c.h.b16 %v2581
      %v3173 = vunpack.c.l.b16 %v2582
      %v3174 = vunpack.c.l.b16 %v2583
      %v3175 = vunpack.c.h.b16 %v2583
      %v3176 = vunpack.c.l.b16 %v2584
      %v3177 = vunpack.c.h.b16 %v2584
      %v3178 = vunpack.c.l.b16 %v2585
      %v3179 = vunpack.c.h.b16 %v2585
      %v3180 = vunpack.c.l.b16 %v2586
      %v3181 = vunpack.c.l.b16 %v2587
      %v3182 = vunpack.c.h.b16 %v2587
      %v3183 = vunpack.c.l.b16 %v2588
      %v3184 = vunpack.c.h.b16 %v2588
      %v3185 = vunpack.c.l.b16 %v2589
      %v3186 = vunpack.c.h.b16 %v2589
      %v3187 = vunpack.c.l.b16 %v2590
      %v3188 = vunpack.c.l.b16 %v2591
      %v3189 = vunpack.c.h.b16 %v2591
      %v3190 = vunpack.c.l.b16 %v2592
      %v3191 = vunpack.c.h.b16 %v2592
      %v3192 = vunpack.c.l.b16 %v2593
      %v3193 = vunpack.c.h.b16 %v2593
      %v3194 = vunpack.c.l.b16 %v2594
      %v3195 = vunpack.c.l.b16 %v2595
      %v3196 = vunpack.c.h.b16 %v2595
      %v3197 = vunpack.c.l.b16 %v2596
      %v3198 = vunpack.c.h.b16 %v2596
      %v3199 = vunpack.c.l.b16 %v2597
      %v3200 = vunpack.c.h.b16 %v2597
      %v3201 = vunpack.c.l.b16 %v2598
      %v3202 = vunpack.c.l.b16 %v2599
      %v3203 = vunpack.c.h.b16 %v2599
      %v3204 = vunpack.c.l.b16 %v2600
      %v3205 = vunpack.c.h.b16 %v2600
      %v3206 = vunpack.c.l.b16 %v2601
      %v3207 = vunpack.c.h.b16 %v2601
      %v3208 = vunpack.c.l.b16 %v2602
      %v3209 = vunpack.c.l.b16 %v2603
      %v3210 = vunpack.c.h.b16 %v2603
      %v3211 = vunpack.c.l.b16 %v2604
      %v3212 = vunpack.c.h.b16 %v2604
      %v3213 = vunpack.c.l.b16 %v2605
      %v3214 = vunpack.c.h.b16 %v2605
      %v3215 = vunpack.c.l.b16 %v2606
      %v3216 = vunpack.c.l.b16 %v2607
      %v3217 = vunpack.c.h.b16 %v2607
      %v3218 = vunpack.c.l.b16 %v2608
      %v3219 = vunpack.c.h.b16 %v2608
      %v3220 = vunpack.c.l.b16 %v2609
      %v3221 = vunpack.c.h.b16 %v2609
      %v3222 = vunpack.c.l.b16 %v2610
      %v3223 = vunpack.c.l.b16 %v2611
      %v3224 = vunpack.c.h.b16 %v2611
      %v3225 = vunpack.c.l.b16 %v2612
      %v3226 = vunpack.c.h.b16 %v2612
      %v3227 = vunpack.c.l.b16 %v2613
      %v3228 = vunpack.c.h.b16 %v2613
      %v3229 = vunpack.c.l.b16 %v2614
      %v3230 = vunpack.c.l.b16 %v2615
      %v3231 = vunpack.c.h.b16 %v2615
      %v3232 = vunpack.c.l.b16 %v2616
      %v3233 = vunpack.c.h.b16 %v2616
      %v3234 = vunpack.c.l.b16 %v2617
      %v3235 = vunpack.c.h.b16 %v2617
      %v3236 = vunpack.c.l.b16 %v2618
      %v3237 = vunpack.c.l.b16 %v2619
      %v3238 = vunpack.c.h.b16 %v2619
      %v3239 = vunpack.c.l.b16 %v2620
      %v3240 = vunpack.c.h.b16 %v2620
      %v3241 = vunpack.c.l.b16 %v2621
      %v3242 = vunpack.c.h.b16 %v2621
      %v3243 = vunpack.c.l.b16 %v2622
      %v3244 = vunpack.c.l.b16 %v2623
      %v3245 = vunpack.c.h.b16 %v2623
      %v3246 = vunpack.c.l.b16 %v2624
      %v3247 = vunpack.c.h.b16 %v2624
      %v3248 = vunpack.c.l.b16 %v2625
      %v3249 = vunpack.c.h.b16 %v2625
      %v3250 = vunpack.c.l.b16 %v2626
      %v3251 = vunpack.c.l.b16 %v2627
      %v3252 = vunpack.c.h.b16 %v2627
      %v3253 = vunpack.c.l.b16 %v2628
      %v3254 = vunpack.c.h.b16 %v2628
      %v3255 = vunpack.c.l.b16 %v2629
      %v3256 = vunpack.c.h.b16 %v2629
      %v3257 = vunpack.c.l.b16 %v2630
      %v3258 = vunpack.c.l.b16 %v2631
      %v3259 = vunpack.c.h.b16 %v2631
      %v3260 = vunpack.c.l.b16 %v2632
      %v3261 = vunpack.c.h.b16 %v2632
      %v3262 = vunpack.c.l.b16 %v2633
      %v3263 = vunpack.c.h.b16 %v2633
      %v3264 = vunpack.c.l.b16 %v2634
      %v3265 = vunpack.c.l.b16 %v2635
      %v3266 = vunpack.c.h.b16 %v2635
      %v3267 = vunpack.c.l.b16 %v2636
      %v3268 = vunpack.c.h.b16 %v2636
      %v3269 = vunpack.c.l.b16 %v2637
      %v3270 = vunpack.c.h.b16 %v2637
      %v3271 = vunpack.c.l.b16 %v2638
      %v3272 = vunpack.c.l.b16 %v2639
      %v3273 = vunpack.c.h.b16 %v2639
      %v3274 = vunpack.c.l.b16 %v2640
      %v3275 = vunpack.c.h.b16 %v2640
      %v3276 = vunpack.c.l.b16 %v2641
      %v3277 = vunpack.c.h.b16 %v2641
      %v3278 = vunpack.c.l.b16 %v2642
      %v3279 = vunpack.c.l.b16 %v2643
      %v3280 = vunpack.c.h.b16 %v2643
      %v3281 = vunpack.c.l.b16 %v2644
      %v3282 = vunpack.c.h.b16 %v2644
      %v3283 = vunpack.c.l.b16 %v2645
      %v3284 = vunpack.c.h.b16 %v2645
      %v3285 = vunpack.c.l.b16 %v2646
      %v3286 = vunpack.c.l.b16 %v2647
      %v3287 = vunpack.c.h.b16 %v2647
      %v3288 = vunpack.c.l.b16 %v2648
      %v3289 = vunpack.c.h.b16 %v2648
      %v3290 = vunpack.c.l.b16 %v2649
      %v3291 = vunpack.c.h.b16 %v2649
      %v3292 = vunpack.c.l.b16 %v2650
      %v3293 = vunpack.c.l.b16 %v2651
      %v3294 = vunpack.c.h.b16 %v2651
      %v3295 = vunpack.c.l.b16 %v2652
      %v3296 = vunpack.c.h.b16 %v2652
      %v3297 = vunpack.c.l.b16 %v2653
      %v3298 = vunpack.c.h.b16 %v2653
      %v3299 = vunpack.c.l.b16 %v2654
      %v3300 = vunpack.c.l.b16 %v2655
      %v3301 = vunpack.c.h.b16 %v2655
      %v3302 = vunpack.c.l.b16 %v2656
      %v3303 = vunpack.c.h.b16 %v2656
      %v3304 = vunpack.c.l.b16 %v2657
      %v3305 = vunpack.c.h.b16 %v2657
      %v3306 = vunpack.c.l.b16 %v2658
      %v3307 = vunpack.c.l.b16 %v2659
      %v3308 = vunpack.c.h.b16 %v2659
      %v3309 = vunpack.c.l.b16 %v2660
      %v3310 = vunpack.c.h.b16 %v2660
      %v3311 = vunpack.c.l.b16 %v2661
      %v3312 = vunpack.c.h.b16 %v2661
      %v3313 = vunpack.c.l.b16 %v2662
      %v3314 = vunpack.c.l.b16 %v2663
      %v3315 = vunpack.c.h.b16 %v2663
      %v3316 = vunpack.c.l.b16 %v2664
      %v3317 = vunpack.c.h.b16 %v2664
      %v3318 = vunpack.c.l.b16 %v2665
      %v3319 = vunpack.c.h.b16 %v2665
      %v3320 = vunpack.c.l.b16 %v2666
      %v3321 = vunpack.c.l.b16 %v2667
      %v3322 = vunpack.c.h.b16 %v2667
      %v3323 = vunpack.c.l.b16 %v2668
      %v3324 = vunpack.c.h.b16 %v2668
      %v3325 = vunpack.c.l.b16 %v2669
      %v3326 = vunpack.c.h.b16 %v2669
      %v3327 = vunpack.c.l.b16 %v2670
      %v3328 = vunpack.c.l.b16 %v2671
      %v3329 = vunpack.c.h.b16 %v2671
      %v3330 = vunpack.c.l.b16 %v2672
      %v3331 = vunpack.c.h.b16 %v2672
      %v3332 = vunpack.c.l.b16 %v2673
      %v3333 = vunpack.c.h.b16 %v2673
      %v3334 = vunpack.c.l.b16 %v2674
      %v3335 = vunpack.c.l.b16 %v2675
      %v3336 = vunpack.c.h.b16 %v2675
      %v3337 = vunpack.c.l.b16 %v2676
      %v3338 = vunpack.c.h.b16 %v2676
      %v3339 = vunpack.c.l.b16 %v2677
      %v3340 = vunpack.c.h.b16 %v2677
      %v3341 = vunpack.c.l.b16 %v2678
      %v3342 = vunpack.c.l.b16 %v2679
      %v3343 = vunpack.c.h.b16 %v2679
      %v3344 = vunpack.c.l.b16 %v2680
      %v3345 = vunpack.c.h.b16 %v2680
      %v3346 = vunpack.c.l.b16 %v2681
      %v3347 = vunpack.c.h.b16 %v2681
      %v3348 = vunpack.c.l.b16 %v2682
      %v3349 = vunpack.c.l.b16 %v2683
      %v3350 = vunpack.c.h.b16 %v2683
      %v3351 = vunpack.c.l.b16 %v2684
      %v3352 = vunpack.c.h.b16 %v2684
      %v3353 = vunpack.c.l.b16 %v2685
      %v3354 = vunpack.c.h.b16 %v2685
      %v3355 = vunpack.c.l.b16 %v2686
      %v3356 = vunpack.c.l.b16 %v2687
      %v3357 = vunpack.c.h.b16 %v2687
      %v3358 = vunpack.c.l.b16 %v2688
      %v3359 = vunpack.c.h.b16 %v2688
      %v3360 = vunpack.c.l.b16 %v2689
      %v3361 = vunpack.c.h.b16 %v2689
      %v3362 = vunpack.c.l.b16 %v2690
      %v3363 = vunpack.c.l.b16 %v2691
      %v3364 = vunpack.c.h.b16 %v2691
      %v3365 = vunpack.c.l.b16 %v2692
      %v3366 = vunpack.c.h.b16 %v2692
      %v3367 = vunpack.c.l.b16 %v2693
      %v3368 = vunpack.c.h.b16 %v2693
      %v3369 = vunpack.c.l.b16 %v2694
      %v3370 = vunpack.c.l.b16 %v2695
      %v3371 = vunpack.c.h.b16 %v2695
      %v3372 = vunpack.c.l.b16 %v2696
      %v3373 = vunpack.c.h.b16 %v2696
      %v3374 = vunpack.c.l.b16 %v2697
      %v3375 = vunpack.c.h.b16 %v2697
      %v3376 = vunpack.c.l.b16 %v2698
      %v3377 = vunpack.c.l.b16 %v2699
      %v3378 = vunpack.c.h.b16 %v2699
      %v3379 = vunpack.c.l.b16 %v2700
      %v3380 = vunpack.c.h.b16 %v2700
      %v3381 = vunpack.c.l.b16 %v2701
      %v3382 = vunpack.c.h.b16 %v2701
      %v3383 = vunpack.c.l.b16 %v2702
      %v3384 = vunpack.c.l.b16 %v2703
      %v3385 = vunpack.c.h.b16 %v2703
      %v3386 = vunpack.c.l.b16 %v2704
      %v3387 = vunpack.c.h.b16 %v2704
      %v3388 = vunpack.c.l.b16 %v2705
      %v3389 = vunpack.c.h.b16 %v2705
      %v3390 = vunpack.c.l.b16 %v2706
      %v3391 = vunpack.c.l.b16 %v2707
      %v3392 = vunpack.c.h.b16 %v2707
      %v3393 = vunpack.c.l.b16 %v2708
      %v3394 = vunpack.c.h.b16 %v2708
      %v3395 = vunpack.c.l.b16 %v2709
      %v3396 = vunpack.c.h.b16 %v2709
      %v3397 = vunpack.c.l.b16 %v2710
      %v3398 = vunpack.c.l.b16 %v2711
      %v3399 = vunpack.c.h.b16 %v2711
      %v3400 = vunpack.c.l.b16 %v2712
      %v3401 = vunpack.c.h.b16 %v2712
      %v3402 = vunpack.c.l.b16 %v2713
      %v3403 = vunpack.c.h.b16 %v2713
      %v3404 = vunpack.c.l.b16 %v2714
      %v3405 = vunpack.c.l.b16 %v2715
      %v3406 = vunpack.c.h.b16 %v2715
      %v3407 = vunpack.c.l.b16 %v2716
      %v3408 = vunpack.c.h.b16 %v2716
      %v3409 = vunpack.c.l.b16 %v2717
      %v3410 = vunpack.c.h.b16 %v2717
      %v3411 = vunpack.c.l.b16 %v2718
      %v3412 = vunpack.c.l.b16 %v2719
      %v3413 = vunpack.c.h.b16 %v2719
      %v3414 = vunpack.c.l.b16 %v2720
      %v3415 = vunpack.c.h.b16 %v2720
      %v3416 = vunpack.c.l.b16 %v2721
      %v3417 = vunpack.c.h.b16 %v2721
      %v3418 = vunpack.c.l.b16 %v2722
      %v3419 = vunpack.c.l.b16 %v2723
      %v3420 = vunpack.c.h.b16 %v2723
      %v3421 = vunpack.c.l.b16 %v2724
      %v3422 = vunpack.c.h.b16 %v2724
      %v3423 = vunpack.c.l.b16 %v2725
      %v3424 = vunpack.c.h.b16 %v2725
      %v3425 = vunpack.c.l.b16 %v2726
      %v3426 = vunpack.c.l.b16 %v2727
      %v3427 = vunpack.c.h.b16 %v2727
      %v3428 = vunpack.c.l.b16 %v2728
      %v3429 = vunpack.c.h.b16 %v2728
      %v3430 = vunpack.c.l.b16 %v2729
      %v3431 = vunpack.c.h.b16 %v2729
      %v3432 = vunpack.c.l.b16 %v2730
      %v3433 = vunpack.c.l.b16 %v2731
      %v3434 = vunpack.c.h.b16 %v2731
      %v3435 = vunpack.c.l.b16 %v2732
      %v3436 = vunpack.c.h.b16 %v2732
      %v3437 = vunpack.c.l.b16 %v2733
      %v3438 = vunpack.c.h.b16 %v2733
      %v3439 = vunpack.c.l.b16 %v2734
      %v3440 = vunpack.c.l.b16 %v2735
      %v3441 = vunpack.c.h.b16 %v2735
      %v3442 = vunpack.c.l.b16 %v2736
      %v3443 = vunpack.c.h.b16 %v2736
      %v3444 = vunpack.c.l.b16 %v2737
      %v3445 = vunpack.c.h.b16 %v2737
      %v3446 = vunpack.c.l.b16 %v2738
      %v3447 = vunpack.c.l.b16 %v2739
      %v3448 = vunpack.c.h.b16 %v2739
      %v3449 = vunpack.c.l.b16 %v2740
      %v3450 = vunpack.c.h.b16 %v2740
      %v3451 = vunpack.c.l.b16 %v2741
      %v3452 = vunpack.c.h.b16 %v2741
      %v3453 = vunpack.c.l.b16 %v2742
      %v3454 = vunpack.c.l.b16 %v2743
      %v3455 = vunpack.c.h.b16 %v2743
      %v3456 = vunpack.c.l.b16 %v2744
      %v3457 = vunpack.c.h.b16 %v2744
      %v3458 = vunpack.c.l.b16 %v2745
      %v3459 = vunpack.c.h.b16 %v2745
      %v3460 = vunpack.c.l.b16 %v2746
      %v3461 = vunpack.c.l.b16 %v2747
      %v3462 = vunpack.c.h.b16 %v2747
      %v3463 = vunpack.c.l.b16 %v2748
      %v3464 = vunpack.c.h.b16 %v2748
      %v3465 = vunpack.c.l.b16 %v2749
      %v3466 = vunpack.c.h.b16 %v2749
      %v3467 = vunpack.c.l.b16 %v2750
      %v3468 = vunpack.c.l.b16 %v2751
      %v3469 = vunpack.c.h.b16 %v2751
      %v3470 = vunpack.c.l.b16 %v2752
      %v3471 = vunpack.c.h.b16 %v2752
      %v3472 = vunpack.c.l.b16 %v2753
      %v3473 = vunpack.c.h.b16 %v2753
      %v3474 = vunpack.c.l.b16 %v2754
      %v3475 = vpack.c.b16 %v3034, %v3027
      %v3476 = vpack.c.b16 %v3035, %v3028
      %v3477 = vpack.c.b16 %v3036, %v3029
      %v3478 = vpack.c.b16 %v3037, %v3030
      %v3479 = vpack.c.b16 %v3038, %v3031
      %v3480 = vpack.c.b16 %v3039, %v3032
      %v3481 = vpack.c.b16 %v3040, %v3033
      %v3482 = vpack.c.b16 %v3048, %v3041
      %v3483 = vpack.c.b16 %v3049, %v3042
      %v3484 = vpack.c.b16 %v3050, %v3043
      %v3485 = vpack.c.b16 %v3051, %v3044
      %v3486 = vpack.c.b16 %v3052, %v3045
      %v3487 = vpack.c.b16 %v3053, %v3046
      %v3488 = vpack.c.b16 %v3054, %v3047
      %v3489 = vpack.c.b16 %v3062, %v3055
      %v3490 = vpack.c.b16 %v3063, %v3056
      %v3491 = vpack.c.b16 %v3064, %v3057
      %v3492 = vpack.c.b16 %v3065, %v3058
      %v3493 = vpack.c.b16 %v3066, %v3059
      %v3494 = vpack.c.b16 %v3067, %v3060
      %v3495 = vpack.c.b16 %v3068, %v3061
      %v3496 = vpack.c.b16 %v3076, %v3069
      %v3497 = vpack.c.b16 %v3077, %v3070
      %v3498 = vpack.c.b16 %v3078, %v3071
      %v3499 = vpack.c.b16 %v3079, %v3072
      %v3500 = vpack.c.b16 %v3080, %v3073
      %v3501 = vpack.c.b16 %v3081, %v3074
      %v3502 = vpack.c.b16 %v3082, %v3075
      %v3503 = vpack.c.b16 %v3090, %v3083
      %v3504 = vpack.c.b16 %v3091, %v3084
      %v3505 = vpack.c.b16 %v3092, %v3085
      %v3506 = vpack.c.b16 %v3093, %v3086
      %v3507 = vpack.c.b16 %v3094, %v3087
      %v3508 = vpack.c.b16 %v3095, %v3088
      %v3509 = vpack.c.b16 %v3096, %v3089
      %v3510 = vpack.c.b16 %v3104, %v3097
      %v3511 = vpack.c.b16 %v3105, %v3098
      %v3512 = vpack.c.b16 %v3106, %v3099
      %v3513 = vpack.c.b16 %v3107, %v3100
      %v3514 = vpack.c.b16 %v3108, %v3101
      %v3515 = vpack.c.b16 %v3109, %v3102
      %v3516 = vpack.c.b16 %v3110, %v3103
      %v3517 = vpack.c.b16 %v3118, %v3111
      %v3518 = vpack.c.b16 %v3119, %v3112
      %v3519 = vpack.c.b16 %v3120, %v3113
      %v3520 = vpack.c.b16 %v3121, %v3114
      %v3521 = vpack.c.b16 %v3122, %v3115
      %v3522 = vpack.c.b16 %v3123, %v3116
      %v3523 = vpack.c.b16 %v3124, %v3117
      %v3524 = vpack.c.b16 %v3132, %v3125
      %v3525 = vpack.c.b16 %v3133, %v3126
      %v3526 = vpack.c.b16 %v3134, %v3127
      %v3527 = vpack.c.b16 %v3135, %v3128
      %v3528 = vpack.c.b16 %v3136, %v3129
      %v3529 = vpack.c.b16 %v3137, %v3130
      %v3530 = vpack.c.b16 %v3138, %v3131
      %v3531 = vpack.c.b16 %v3146, %v3139
      %v3532 = vpack.c.b16 %v3147, %v3140
      %v3533 = vpack.c.b16 %v3148, %v3141
      %v3534 = vpack.c.b16 %v3149, %v3142
      %v3535 = vpack.c.b16 %v3150, %v3143
      %v3536 = vpack.c.b16 %v3151, %v3144
      %v3537 = vpack.c.b16 %v3152, %v3145
      %v3538 = vpack.c.b16 %v3160, %v3153
      %v3539 = vpack.c.b16 %v3161, %v3154
      %v3540 = vpack.c.b16 %v3162, %v3155
      %v3541 = vpack.c.b16 %v3163, %v3156
      %v3542 = vpack.c.b16 %v3164, %v3157
      %v3543 = vpack.c.b16 %v3165, %v3158
      %v3544 = vpack.c.b16 %v3166, %v3159
      %v3545 = vpack.c.b16 %v3174, %v3167
      %v3546 = vpack.c.b16 %v3175, %v3168
      %v3547 = vpack.c.b16 %v3176, %v3169
      %v3548 = vpack.c.b16 %v3177, %v3170
      %v3549 = vpack.c.b16 %v3178, %v3171
      %v3550 = vpack.c.b16 %v3179, %v3172
      %v3551 = vpack.c.b16 %v3180, %v3173
      %v3552 = vpack.c.b16 %v3188, %v3181
      %v3553 = vpack.c.b16 %v3189, %v3182
      %v3554 = vpack.c.b16 %v3190, %v3183
      %v3555 = vpack.c.b16 %v3191, %v3184
      %v3556 = vpack.c.b16 %v3192, %v3185
      %v3557 = vpack.c.b16 %v3193, %v3186
      %v3558 = vpack.c.b16 %v3194, %v3187
      %v3559 = vpack.c.b16 %v3202, %v3195
      %v3560 = vpack.c.b16 %v3203, %v3196
      %v3561 = vpack.c.b16 %v3204, %v3197
      %v3562 = vpack.c.b16 %v3205, %v3198
      %v3563 = vpack.c.b16 %v3206, %v3199
      %v3564 = vpack.c.b16 %v3207, %v3200
      %v3565 = vpack.c.b16 %v3208, %v3201
      %v3566 = vpack.c.b16 %v3216, %v3209
      %v3567 = vpack.c.b16 %v3217, %v3210
      %v3568 = vpack.c.b16 %v3218, %v3211
      %v3569 = vpack.c.b16 %v3219, %v3212
      %v3570 = vpack.c.b16 %v3220, %v3213
      %v3571 = vpack.c.b16 %v3221, %v3214
      %v3572 = vpack.c.b16 %v3222, %v3215
      %v3573 = vpack.c.b16 %v3230, %v3223
      %v3574 = vpack.c.b16 %v3231, %v3224
      %v3575 = vpack.c.b16 %v3232, %v3225
      %v3576 = vpack.c.b16 %v3233, %v3226
      %v3577 = vpack.c.b16 %v3234, %v3227
      %v3578 = vpack.c.b16 %v3235, %v3228
      %v3579 = vpack.c.b16 %v3236, %v3229
      %v3580 = vpack.c.b16 %v3244, %v3237
      %v3581 = vpack.c.b16 %v3245, %v3238
      %v3582 = vpack.c.b16 %v3246, %v3239
      %v3583 = vpack.c.b16 %v3247, %v3240
      %v3584 = vpack.c.b16 %v3248, %v3241
      %v3585 = vpack.c.b16 %v3249, %v3242
      %v3586 = vpack.c.b16 %v3250, %v3243
      %v3587 = vpack.c.b16 %v3258, %v3251
      %v3588 = vpack.c.b16 %v3259, %v3252
      %v3589 = vpack.c.b16 %v3260, %v3253
      %v3590 = vpack.c.b16 %v3261, %v3254
      %v3591 = vpack.c.b16 %v3262, %v3255
      %v3592 = vpack.c.b16 %v3263, %v3256
      %v3593 = vpack.c.b16 %v3264, %v3257
      %v3594 = vpack.c.b16 %v3272, %v3265
      %v3595 = vpack.c.b16 %v3273, %v3266
      %v3596 = vpack.c.b16 %v3274, %v3267
      %v3597 = vpack.c.b16 %v3275, %v3268
      %v3598 = vpack.c.b16 %v3276, %v3269
      %v3599 = vpack.c.b16 %v3277, %v3270
      %v3600 = vpack.c.b16 %v3278, %v3271
      %v3601 = vpack.c.b16 %v3286, %v3279
      %v3602 = vpack.c.b16 %v3287, %v3280
      %v3603 = vpack.c.b16 %v3288, %v3281
      %v3604 = vpack.c.b16 %v3289, %v3282
      %v3605 = vpack.c.b16 %v3290, %v3283
      %v3606 = vpack.c.b16 %v3291, %v3284
      %v3607 = vpack.c.b16 %v3292, %v3285
      %v3608 = vpack.c.b16 %v3300, %v3293
      %v3609 = vpack.c.b16 %v3301, %v3294
      %v3610 = vpack.c.b16 %v3302, %v3295
      %v3611 = vpack.c.b16 %v3303, %v3296
      %v3612 = vpack.c.b16 %v3304, %v3297
      %v3613 = vpack.c.b16 %v3305, %v3298
      %v3614 = vpack.c.b16 %v3306, %v3299
      %v3615 = vpack.c.b16 %v3314, %v3307
      %v3616 = vpack.c.b16 %v3315, %v3308
      %v3617 = vpack.c.b16 %v3316, %v3309
      %v3618 = vpack.c.b16 %v3317, %v3310
      %v3619 = vpack.c.b16 %v3318, %v3311
      %v3620 = vpack.c.b16 %v3319, %v3312
      %v3621 = vpack.c.b16 %v3320, %v3313
      %v3622 = vpack.c.b16 %v3328, %v3321
      %v3623 = vpack.c.b16 %v3329, %v3322
      %v3624 = vpack.c.b16 %v3330, %v3323
      %v3625 = vpack.c.b16 %v3331, %v3324
      %v3626 = vpack.c.b16 %v3332, %v3325
      %v3627 = vpack.c.b16 %v3333, %v3326
      %v3628 = vpack.c.b16 %v3334, %v3327
      %v3629 = vpack.c.b16 %v3342, %v3335
      %v3630 = vpack.c.b16 %v3343, %v3336
      %v3631 = vpack.c.b16 %v3344, %v3337
      %v3632 = vpack.c.b16 %v3345, %v3338
      %v3633 = vpack.c.b16 %v3346, %v3339
      %v3634 = vpack.c.b16 %v3347, %v3340
      %v3635 = vpack.c.b16 %v3348, %v3341
      %v3636 = vpack.c.b16 %v3356, %v3349
      %v3637 = vpack.c.b16 %v3357, %v3350
      %v3638 = vpack.c.b16 %v3358, %v3351
      %v3639 = vpack.c.b16 %v3359, %v3352
      %v3640 = vpack.c.b16 %v3360, %v3353
      %v3641 = vpack.c.b16 %v3361, %v3354
      %v3642 = vpack.c.b16 %v3362, %v3355
      %v3643 = vpack.c.b16 %v3370, %v3363
      %v3644 = vpack.c.b16 %v3371, %v3364
      %v3645 = vpack.c.b16 %v3372, %v3365
      %v3646 = vpack.c.b16 %v3373, %v3366
      %v3647 = vpack.c.b16 %v3374, %v3367
      %v3648 = vpack.c.b16 %v3375, %v3368
      %v3649 = vpack.c.b16 %v3376, %v3369
      %v3650 = vpack.c.b16 %v3384, %v3377
      %v3651 = vpack.c.b16 %v3385, %v3378
      %v3652 = vpack.c.b16 %v3386, %v3379
      %v3653 = vpack.c.b16 %v3387, %v3380
      %v3654 = vpack.c.b16 %v3388, %v3381
      %v3655 = vpack.c.b16 %v3389, %v3382
      %v3656 = vpack.c.b16 %v3390, %v3383
      %v3657 = vpack.c.b16 %v3398, %v3391
      %v3658 = vpack.c.b16 %v3399, %v3392
      %v3659 = vpack.c.b16 %v3400, %v3393
      %v3660 = vpack.c.b16 %v3401, %v3394
      %v3661 = vpack.c.b16 %v3402, %v3395
      %v3662 = vpack.c.b16 %v3403, %v3396
      %v3663 = vpack.c.b16 %v3404, %v3397
      %v3664 = vpack.c.b16 %v3412, %v3405
      %v3665 = vpack.c.b16 %v3413, %v3406
      %v3666 = vpack.c.b16 %v3414, %v3407
      %v3667 = vpack.c.b16 %v3415, %v3408
      %v3668 = vpack.c.b16 %v3416, %v3409
      %v3669 = vpack.c.b16 %v3417, %v3410
      %v3670 = vpack.c.b16 %v3418, %v3411
      %v3671 = vpack.c.b16 %v3426, %v3419
      %v3672 = vpack.c.b16 %v3427, %v3420
      %v3673 = vpack.c.b16 %v3428, %v3421
      %v3674 = vpack.c.b16 %v3429, %v3422
      %v3675 = vpack.c.b16 %v3430, %v3423
      %v3676 = vpack.c.b16 %v3431, %v3424
      %v3677 = vpack.c.b16 %v3432, %v3425
      %v3678 = vpack.c.b16 %v3440, %v3433
      %v3679 = vpack.c.b16 %v3441, %v3434
      %v3680 = vpack.c.b16 %v3442, %v3435
      %v3681 = vpack.c.b16 %v3443, %v3436
      %v3682 = vpack.c.b16 %v3444, %v3437
      %v3683 = vpack.c.b16 %v3445, %v3438
      %v3684 = vpack.c.b16 %v3446, %v3439
      %v3685 = vpack.c.b16 %v3454, %v3447
      %v3686 = vpack.c.b16 %v3455, %v3448
      %v3687 = vpack.c.b16 %v3456, %v3449
      %v3688 = vpack.c.b16 %v3457, %v3450
      %v3689 = vpack.c.b16 %v3458, %v3451
      %v3690 = vpack.c.b16 %v3459, %v3452
      %v3691 = vpack.c.b16 %v3460, %v3453
      %v3692 = vpack.c.b16 %v3468, %v3461
      %v3693 = vpack.c.b16 %v3469, %v3462
      %v3694 = vpack.c.b16 %v3470, %v3463
      %v3695 = vpack.c.b16 %v3471, %v3464
      %v3696 = vpack.c.b16 %v3472, %v3465
      %v3697 = vpack.c.b16 %v3473, %v3466
      %v3698 = vpack.c.b16 %v3474, %v3467
      %3923 = vmatpush.bf16.msra.mxu0 %v3524
      %3924 = vmatpush.bf16.msra.mxu0 %v3517
      %3925 = vmatpush.bf16.msra.mxu0 %v3510
      %3926 = vmatpush.bf16.msra.mxu0 %v3503
      %3927 = vmatpush.bf16.msra.mxu0 %v3496
      %3928 = vmatpush.bf16.msra.mxu0 %v3489
      %3929 = vmatpush.bf16.msra.mxu0 %v3482
      %3930 = vmatpush.bf16.msra.mxu0 %v3475
      %3931 = vmatmul.bf16.gmra.mxu0 %v2495
      %v3932 = vpop.f32.mrf.mxu0
      %v3933 = vadd.f32 %v2757, %v3932
      %v3934 = vpop.f32.mrf.mxu0
      %3935 = vdwg.mxu0
      %3936 = vmatpush.bf16.msra.mxu0 %v3580
      %3937 = vmatpush.bf16.msra.mxu0 %v3573
      %3938 = vmatpush.bf16.msra.mxu0 %v3566
      %3939 = vmatpush.bf16.msra.mxu0 %v3559
      %3940 = vmatpush.bf16.msra.mxu0 %v3552
      %3941 = vmatpush.bf16.msra.mxu0 %v3545
      %3942 = vmatpush.bf16.msra.mxu0 %v3538
      %3943 = vmatpush.bf16.msra.mxu0 %v3531
      %3944 = vmatmul.bf16.gmra.mxu0 %v2496
      %v3945 = vpop.f32.mrf.mxu0
      %v3946 = vadd.f32 %v3933, %v3945
      %v3947 = vpop.f32.mrf.mxu0
      %3948 = vdwg.mxu0
      %3949 = vmatpush.bf16.msra.mxu0 %v3636
      %3950 = vmatpush.bf16.msra.mxu0 %v3629
      %3951 = vmatpush.bf16.msra.mxu0 %v3622
      %3952 = vmatpush.bf16.msra.mxu0 %v3615
      %3953 = vmatpush.bf16.msra.mxu0 %v3608
      %3954 = vmatpush.bf16.msra.mxu0 %v3601
      %3955 = vmatpush.bf16.msra.mxu0 %v3594
      %3956 = vmatpush.bf16.msra.mxu0 %v3587
      %3957 = vmatmul.bf16.gmra.mxu0 %v2497
      %v3958 = vpop.f32.mrf.mxu0
      %v3959 = vadd.f32 %v3946, %v3958
      %v3960 = vpop.f32.mrf.mxu0
      %3961 = vdwg.mxu0
      %3962 = vmatpush.bf16.msra.mxu0 %v3692
      %3963 = vmatpush.bf16.msra.mxu0 %v3685
      %3964 = vmatpush.bf16.msra.mxu0 %v3678
      %3965 = vmatpush.bf16.msra.mxu0 %v3671
      %3966 = vmatpush.bf16.msra.mxu0 %v3664
      %3967 = vmatpush.bf16.msra.mxu0 %v3657
      %3968 = vmatpush.bf16.msra.mxu0 %v3650
      %3969 = vmatpush.bf16.msra.mxu0 %v3643
      %3970 = vmatmul.bf16.gmra.mxu0 %v2498
      %v3971 = vpop.f32.mrf.mxu0
      %v3972 = vadd.f32 %v3959, %v3971
      %v3973 = vpop.f32.mrf.mxu0
      %3974 = vdwg.mxu0
      %3975 = vmatpush.bf16.msra.mxu0 %v3525
      %3976 = vmatpush.bf16.msra.mxu0 %v3518
      %3977 = vmatpush.bf16.msra.mxu0 %v3511
      %3978 = vmatpush.bf16.msra.mxu0 %v3504
      %3979 = vmatpush.bf16.msra.mxu0 %v3497
      %3980 = vmatpush.bf16.msra.mxu0 %v3490
      %3981 = vmatpush.bf16.msra.mxu0 %v3483
      %3982 = vmatpush.bf16.msra.mxu0 %v3476
      %3983 = vmatmul.bf16.gmra.mxu0 %v2495
      %v3984 = vpop.f32.mrf.mxu0
      %v3985 = vadd.f32 %v2758, %v3984
      %v3986 = vpop.f32.mrf.mxu0
      %3987 = vdwg.mxu0
      %3988 = vmatpush.bf16.msra.mxu0 %v3581
      %3989 = vmatpush.bf16.msra.mxu0 %v3574
      %3990 = vmatpush.bf16.msra.mxu0 %v3567
      %3991 = vmatpush.bf16.msra.mxu0 %v3560
      %3992 = vmatpush.bf16.msra.mxu0 %v3553
      %3993 = vmatpush.bf16.msra.mxu0 %v3546
      %3994 = vmatpush.bf16.msra.mxu0 %v3539
      %3995 = vmatpush.bf16.msra.mxu0 %v3532
      %3996 = vmatmul.bf16.gmra.mxu0 %v2496
      %v3997 = vpop.f32.mrf.mxu0
      %v3998 = vadd.f32 %v3985, %v3997
      %v3999 = vpop.f32.mrf.mxu0
      %4000 = vdwg.mxu0
      %4001 = vmatpush.bf16.msra.mxu0 %v3637
      %4002 = vmatpush.bf16.msra.mxu0 %v3630
      %4003 = vmatpush.bf16.msra.mxu0 %v3623
      %4004 = vmatpush.bf16.msra.mxu0 %v3616
      %4005 = vmatpush.bf16.msra.mxu0 %v3609
      %4006 = vmatpush.bf16.msra.mxu0 %v3602
      %4007 = vmatpush.bf16.msra.mxu0 %v3595
      %4008 = vmatpush.bf16.msra.mxu0 %v3588
      %4009 = vmatmul.bf16.gmra.mxu0 %v2497
      %v4010 = vpop.f32.mrf.mxu0
      %v4011 = vadd.f32 %v3998, %v4010
      %v4012 = vpop.f32.mrf.mxu0
      %4013 = vdwg.mxu0
      %4014 = vmatpush.bf16.msra.mxu0 %v3693
      %4015 = vmatpush.bf16.msra.mxu0 %v3686
      %4016 = vmatpush.bf16.msra.mxu0 %v3679
      %4017 = vmatpush.bf16.msra.mxu0 %v3672
      %4018 = vmatpush.bf16.msra.mxu0 %v3665
      %4019 = vmatpush.bf16.msra.mxu0 %v3658
      %4020 = vmatpush.bf16.msra.mxu0 %v3651
      %4021 = vmatpush.bf16.msra.mxu0 %v3644
      %4022 = vmatmul.bf16.gmra.mxu0 %v2498
      %v4023 = vpop.f32.mrf.mxu0
      %v4024 = vadd.f32 %v4011, %v4023
      %v4025 = vpop.f32.mrf.mxu0
      %4026 = vdwg.mxu0
      %4027 = vmatpush.bf16.msra.mxu0 %v3526
      %4028 = vmatpush.bf16.msra.mxu0 %v3519
      %4029 = vmatpush.bf16.msra.mxu0 %v3512
      %4030 = vmatpush.bf16.msra.mxu0 %v3505
      %4031 = vmatpush.bf16.msra.mxu0 %v3498
      %4032 = vmatpush.bf16.msra.mxu0 %v3491
      %4033 = vmatpush.bf16.msra.mxu0 %v3484
      %4034 = vmatpush.bf16.msra.mxu0 %v3477
      %4035 = vmatmul.bf16.gmra.mxu0 %v2495
      %v4036 = vpop.f32.mrf.mxu0
      %v4037 = vadd.f32 %v2759, %v4036
      %v4038 = vpop.f32.mrf.mxu0
      %4039 = vdwg.mxu0
      %4040 = vmatpush.bf16.msra.mxu0 %v3582
      %4041 = vmatpush.bf16.msra.mxu0 %v3575
      %4042 = vmatpush.bf16.msra.mxu0 %v3568
      %4043 = vmatpush.bf16.msra.mxu0 %v3561
      %4044 = vmatpush.bf16.msra.mxu0 %v3554
      %4045 = vmatpush.bf16.msra.mxu0 %v3547
      %4046 = vmatpush.bf16.msra.mxu0 %v3540
      %4047 = vmatpush.bf16.msra.mxu0 %v3533
      %4048 = vmatmul.bf16.gmra.mxu0 %v2496
      %v4049 = vpop.f32.mrf.mxu0
      %v4050 = vadd.f32 %v4037, %v4049
      %v4051 = vpop.f32.mrf.mxu0
      %4052 = vdwg.mxu0
      %4053 = vmatpush.bf16.msra.mxu0 %v3638
      %4054 = vmatpush.bf16.msra.mxu0 %v3631
      %4055 = vmatpush.bf16.msra.mxu0 %v3624
      %4056 = vmatpush.bf16.msra.mxu0 %v3617
      %4057 = vmatpush.bf16.msra.mxu0 %v3610
      %4058 = vmatpush.bf16.msra.mxu0 %v3603
      %4059 = vmatpush.bf16.msra.mxu0 %v3596
      %4060 = vmatpush.bf16.msra.mxu0 %v3589
      %4061 = vmatmul.bf16.gmra.mxu0 %v2497
      %v4062 = vpop.f32.mrf.mxu0
      %v4063 = vadd.f32 %v4050, %v4062
      %v4064 = vpop.f32.mrf.mxu0
      %4065 = vdwg.mxu0
      %4066 = vmatpush.bf16.msra.mxu0 %v3694
      %4067 = vmatpush.bf16.msra.mxu0 %v3687
      %4068 = vmatpush.bf16.msra.mxu0 %v3680
      %4069 = vmatpush.bf16.msra.mxu0 %v3673
      %4070 = vmatpush.bf16.msra.mxu0 %v3666
      %4071 = vmatpush.bf16.msra.mxu0 %v3659
      %4072 = vmatpush.bf16.msra.mxu0 %v3652
      %4073 = vmatpush.bf16.msra.mxu0 %v3645
      %4074 = vmatmul.bf16.gmra.mxu0 %v2498
      %v4075 = vpop.f32.mrf.mxu0
      %v4076 = vadd.f32 %v4063, %v4075
      %v4077 = vpop.f32.mrf.mxu0
      %4078 = vdwg.mxu0
      %4079 = vmatpush.bf16.msra.mxu0 %v3527
      %4080 = vmatpush.bf16.msra.mxu0 %v3520
      %4081 = vmatpush.bf16.msra.mxu0 %v3513
      %4082 = vmatpush.bf16.msra.mxu0 %v3506
      %4083 = vmatpush.bf16.msra.mxu0 %v3499
      %4084 = vmatpush.bf16.msra.mxu0 %v3492
      %4085 = vmatpush.bf16.msra.mxu0 %v3485
      %4086 = vmatpush.bf16.msra.mxu0 %v3478
      %4087 = vmatmul.bf16.gmra.mxu0 %v2495
      %v4088 = vpop.f32.mrf.mxu0
      %v4089 = vadd.f32 %v2760, %v4088
      %v4090 = vpop.f32.mrf.mxu0
      %4091 = vdwg.mxu0
      %4092 = vmatpush.bf16.msra.mxu0 %v3583
      %4093 = vmatpush.bf16.msra.mxu0 %v3576
      %4094 = vmatpush.bf16.msra.mxu0 %v3569
      %4095 = vmatpush.bf16.msra.mxu0 %v3562
      %4096 = vmatpush.bf16.msra.mxu0 %v3555
      %4097 = vmatpush.bf16.msra.mxu0 %v3548
      %4098 = vmatpush.bf16.msra.mxu0 %v3541
      %4099 = vmatpush.bf16.msra.mxu0 %v3534
      %4100 = vmatmul.bf16.gmra.mxu0 %v2496
      %v4101 = vpop.f32.mrf.mxu0
      %v4102 = vadd.f32 %v4089, %v4101
      %v4103 = vpop.f32.mrf.mxu0
      %4104 = vdwg.mxu0
      %4105 = vmatpush.bf16.msra.mxu0 %v3639
      %4106 = vmatpush.bf16.msra.mxu0 %v3632
      %4107 = vmatpush.bf16.msra.mxu0 %v3625
      %4108 = vmatpush.bf16.msra.mxu0 %v3618
      %4109 = vmatpush.bf16.msra.mxu0 %v3611
      %4110 = vmatpush.bf16.msra.mxu0 %v3604
      %4111 = vmatpush.bf16.msra.mxu0 %v3597
      %4112 = vmatpush.bf16.msra.mxu0 %v3590
      %4113 = vmatmul.bf16.gmra.mxu0 %v2497
      %v4114 = vpop.f32.mrf.mxu0
      %v4115 = vadd.f32 %v4102, %v4114
      %v4116 = vpop.f32.mrf.mxu0
      %4117 = vdwg.mxu0
      %4118 = vmatpush.bf16.msra.mxu0 %v3695
      %4119 = vmatpush.bf16.msra.mxu0 %v3688
      %4120 = vmatpush.bf16.msra.mxu0 %v3681
      %4121 = vmatpush.bf16.msra.mxu0 %v3674
      %4122 = vmatpush.bf16.msra.mxu0 %v3667
      %4123 = vmatpush.bf16.msra.mxu0 %v3660
      %4124 = vmatpush.bf16.msra.mxu0 %v3653
      %4125 = vmatpush.bf16.msra.mxu0 %v3646
      %4126 = vmatmul.bf16.gmra.mxu0 %v2498
      %v4127 = vpop.f32.mrf.mxu0
      %v4128 = vadd.f32 %v4115, %v4127
      %v4129 = vpop.f32.mrf.mxu0
      %4130 = vdwg.mxu0
      %4131 = vmatpush.bf16.msra.mxu0 %v3528
      %4132 = vmatpush.bf16.msra.mxu0 %v3521
      %4133 = vmatpush.bf16.msra.mxu0 %v3514
      %4134 = vmatpush.bf16.msra.mxu0 %v3507
      %4135 = vmatpush.bf16.msra.mxu0 %v3500
      %4136 = vmatpush.bf16.msra.mxu0 %v3493
      %4137 = vmatpush.bf16.msra.mxu0 %v3486
      %4138 = vmatpush.bf16.msra.mxu0 %v3479
      %4139 = vmatmul.bf16.gmra.mxu0 %v2495
      %v4140 = vpop.f32.mrf.mxu0
      %v4141 = vadd.f32 %v2761, %v4140
      %v4142 = vpop.f32.mrf.mxu0
      %4143 = vdwg.mxu0
      %4144 = vmatpush.bf16.msra.mxu0 %v3584
      %4145 = vmatpush.bf16.msra.mxu0 %v3577
      %4146 = vmatpush.bf16.msra.mxu0 %v3570
      %4147 = vmatpush.bf16.msra.mxu0 %v3563
      %4148 = vmatpush.bf16.msra.mxu0 %v3556
      %4149 = vmatpush.bf16.msra.mxu0 %v3549
      %4150 = vmatpush.bf16.msra.mxu0 %v3542
      %4151 = vmatpush.bf16.msra.mxu0 %v3535
      %4152 = vmatmul.bf16.gmra.mxu0 %v2496
      %v4153 = vpop.f32.mrf.mxu0
      %v4154 = vadd.f32 %v4141, %v4153
      %v4155 = vpop.f32.mrf.mxu0
      %4156 = vdwg.mxu0
      %4157 = vmatpush.bf16.msra.mxu0 %v3640
      %4158 = vmatpush.bf16.msra.mxu0 %v3633
      %4159 = vmatpush.bf16.msra.mxu0 %v3626
      %4160 = vmatpush.bf16.msra.mxu0 %v3619
      %4161 = vmatpush.bf16.msra.mxu0 %v3612
      %4162 = vmatpush.bf16.msra.mxu0 %v3605
      %4163 = vmatpush.bf16.msra.mxu0 %v3598
      %4164 = vmatpush.bf16.msra.mxu0 %v3591
      %4165 = vmatmul.bf16.gmra.mxu0 %v2497
      %v4166 = vpop.f32.mrf.mxu0
      %v4167 = vadd.f32 %v4154, %v4166
      %v4168 = vpop.f32.mrf.mxu0
      %4169 = vdwg.mxu0
      %4170 = vmatpush.bf16.msra.mxu0 %v3696
      %4171 = vmatpush.bf16.msra.mxu0 %v3689
      %4172 = vmatpush.bf16.msra.mxu0 %v3682
      %4173 = vmatpush.bf16.msra.mxu0 %v3675
      %4174 = vmatpush.bf16.msra.mxu0 %v3668
      %4175 = vmatpush.bf16.msra.mxu0 %v3661
      %4176 = vmatpush.bf16.msra.mxu0 %v3654
      %4177 = vmatpush.bf16.msra.mxu0 %v3647
      %4178 = vmatmul.bf16.gmra.mxu0 %v2498
      %v4179 = vpop.f32.mrf.mxu0
      %v4180 = vadd.f32 %v4167, %v4179
      %v4181 = vpop.f32.mrf.mxu0
      %4182 = vdwg.mxu0
      %4183 = vmatpush.bf16.msra.mxu0 %v3529
      %4184 = vmatpush.bf16.msra.mxu0 %v3522
      %4185 = vmatpush.bf16.msra.mxu0 %v3515
      %4186 = vmatpush.bf16.msra.mxu0 %v3508
      %4187 = vmatpush.bf16.msra.mxu0 %v3501
      %4188 = vmatpush.bf16.msra.mxu0 %v3494
      %4189 = vmatpush.bf16.msra.mxu0 %v3487
      %4190 = vmatpush.bf16.msra.mxu0 %v3480
      %4191 = vmatmul.bf16.gmra.mxu0 %v2495
      %v4192 = vpop.f32.mrf.mxu0
      %v4193 = vadd.f32 %v2762, %v4192
      %v4194 = vpop.f32.mrf.mxu0
      %4195 = vdwg.mxu0
      %4196 = vmatpush.bf16.msra.mxu0 %v3585
      %4197 = vmatpush.bf16.msra.mxu0 %v3578
      %4198 = vmatpush.bf16.msra.mxu0 %v3571
      %4199 = vmatpush.bf16.msra.mxu0 %v3564
      %4200 = vmatpush.bf16.msra.mxu0 %v3557
      %4201 = vmatpush.bf16.msra.mxu0 %v3550
      %4202 = vmatpush.bf16.msra.mxu0 %v3543
      %4203 = vmatpush.bf16.msra.mxu0 %v3536
      %4204 = vmatmul.bf16.gmra.mxu0 %v2496
      %v4205 = vpop.f32.mrf.mxu0
      %v4206 = vadd.f32 %v4193, %v4205
      %v4207 = vpop.f32.mrf.mxu0
      %4208 = vdwg.mxu0
      %4209 = vmatpush.bf16.msra.mxu0 %v3641
      %4210 = vmatpush.bf16.msra.mxu0 %v3634
      %4211 = vmatpush.bf16.msra.mxu0 %v3627
      %4212 = vmatpush.bf16.msra.mxu0 %v3620
      %4213 = vmatpush.bf16.msra.mxu0 %v3613
      %4214 = vmatpush.bf16.msra.mxu0 %v3606
      %4215 = vmatpush.bf16.msra.mxu0 %v3599
      %4216 = vmatpush.bf16.msra.mxu0 %v3592
      %4217 = vmatmul.bf16.gmra.mxu0 %v2497
      %v4218 = vpop.f32.mrf.mxu0
      %v4219 = vadd.f32 %v4206, %v4218
      %v4220 = vpop.f32.mrf.mxu0
      %4221 = vdwg.mxu0
      %4222 = vmatpush.bf16.msra.mxu0 %v3697
      %4223 = vmatpush.bf16.msra.mxu0 %v3690
      %4224 = vmatpush.bf16.msra.mxu0 %v3683
      %4225 = vmatpush.bf16.msra.mxu0 %v3676
      %4226 = vmatpush.bf16.msra.mxu0 %v3669
      %4227 = vmatpush.bf16.msra.mxu0 %v3662
      %4228 = vmatpush.bf16.msra.mxu0 %v3655
      %4229 = vmatpush.bf16.msra.mxu0 %v3648
      %4230 = vmatmul.bf16.gmra.mxu0 %v2498
      %v4231 = vpop.f32.mrf.mxu0
      %v4232 = vadd.f32 %v4219, %v4231
      %v4233 = vpop.f32.mrf.mxu0
      %4234 = vdwg.mxu0
      %4235 = vmatpush.bf16.msra.mxu0 %v3530
      %4236 = vmatpush.bf16.msra.mxu0 %v3523
      %4237 = vmatpush.bf16.msra.mxu0 %v3516
      %4238 = vmatpush.bf16.msra.mxu0 %v3509
      %4239 = vmatpush.bf16.msra.mxu0 %v3502
      %4240 = vmatpush.bf16.msra.mxu0 %v3495
      %4241 = vmatpush.bf16.msra.mxu0 %v3488
      %4242 = vmatpush.bf16.msra.mxu0 %v3481
      %4243 = vmatmul.bf16.gmra.mxu0 %v2495
      %v4244 = vpop.f32.mrf.mxu0
      %v4245 = vadd.f32 %v2763, %v4244
      %v4246 = vpop.f32.mrf.mxu0
      %4247 = vdwg.mxu0
      %4248 = vmatpush.bf16.msra.mxu0 %v3586
      %4249 = vmatpush.bf16.msra.mxu0 %v3579
      %4250 = vmatpush.bf16.msra.mxu0 %v3572
      %4251 = vmatpush.bf16.msra.mxu0 %v3565
      %4252 = vmatpush.bf16.msra.mxu0 %v3558
      %4253 = vmatpush.bf16.msra.mxu0 %v3551
      %4254 = vmatpush.bf16.msra.mxu0 %v3544
      %4255 = vmatpush.bf16.msra.mxu0 %v3537
      %4256 = vmatmul.bf16.gmra.mxu0 %v2496
      %v4257 = vpop.f32.mrf.mxu0
      %v4258 = vadd.f32 %v4245, %v4257
      %v4259 = vpop.f32.mrf.mxu0
      %4260 = vdwg.mxu0
      %4261 = vmatpush.bf16.msra.mxu0 %v3642
      %4262 = vmatpush.bf16.msra.mxu0 %v3635
      %4263 = vmatpush.bf16.msra.mxu0 %v3628
      %4264 = vmatpush.bf16.msra.mxu0 %v3621
      %4265 = vmatpush.bf16.msra.mxu0 %v3614
      %4266 = vmatpush.bf16.msra.mxu0 %v3607
      %4267 = vmatpush.bf16.msra.mxu0 %v3600
      %4268 = vmatpush.bf16.msra.mxu0 %v3593
      %4269 = vmatmul.bf16.gmra.mxu0 %v2497
      %v4270 = vpop.f32.mrf.mxu0
      %v4271 = vadd.f32 %v4258, %v4270
      %v4272 = vpop.f32.mrf.mxu0
      %4273 = vdwg.mxu0
      %4274 = vmatpush.bf16.msra.mxu0 %v3698
      %4275 = vmatpush.bf16.msra.mxu0 %v3691
      %4276 = vmatpush.bf16.msra.mxu0 %v3684
      %4277 = vmatpush.bf16.msra.mxu0 %v3677
      %4278 = vmatpush.bf16.msra.mxu0 %v3670
      %4279 = vmatpush.bf16.msra.mxu0 %v3663
      %4280 = vmatpush.bf16.msra.mxu0 %v3656
      %4281 = vmatpush.bf16.msra.mxu0 %v3649
      %4282 = vmatmul.bf16.gmra.mxu0 %v2498
      %v4283 = vpop.f32.mrf.mxu0
      %v4284 = vadd.f32 %v4271, %v4283
      %v4285 = vpop.f32.mrf.mxu0
      %4286 = vdwg.mxu0
      %v4287 = vsub.f32 0.0, %v3972
      %v4288 = vsub.f32 0.0, %v4024
      %v4289 = vsub.f32 0.0, %v4076
      %v4290 = vsub.f32 0.0, %v4128
      %v4291 = vsub.f32 0.0, %v4180
      %v4292 = vsub.f32 0.0, %v4232
      %v4293 = vsub.f32 0.0, %v4284
      %v4294 = vmul.f32 %v4287, 1.442695
      %v4295 = vpow.pop %v4294
      %v4296 = vmul.f32 %v4288, 1.442695
      %v4297 = vpow.pop %v4296
      %v4298 = vmul.f32 %v4289, 1.442695
      %v4299 = vpow.pop %v4298
      %v4300 = vmul.f32 %v4290, 1.442695
      %v4301 = vpow.pop %v4300
      %v4302 = vmul.f32 %v4291, 1.442695
      %v4303 = vpow.pop %v4302
      %v4304 = vmul.f32 %v4292, 1.442695
      %v4305 = vpow.pop %v4304
      %v4306 = vmul.f32 %v4293, 1.442695
      %v4307 = vpow.pop %v4306
      %v4308 = vadd.f32 %v4295, 1.0
      %v4309 = vadd.f32 %v4297, 1.0
      %v4310 = vadd.f32 %v4299, 1.0
      %v4311 = vadd.f32 %v4301, 1.0
      %v4312 = vadd.f32 %v4303, 1.0
      %v4313 = vadd.f32 %v4305, 1.0
      %v4314 = vadd.f32 %v4307, 1.0
      %v4315 = vrcp.pop %v4308
      %v4316 = vmul.f32 %v4308, %v4315
      %v4317 = vsub.f32 1.0, %v4316
      %v4318 = vmul.f32 %v4315, %v4317
      %v4319 = vadd.f32 %v4315, %v4318
      %vm4320 = vweird.f32 %v4308
      %vm4321 = vweird.f32 %v4315
      %vm4322 = vmor %vm4320, %vm4321
      %v4323 = vsel %vm4322, %v4315, %v4319
      %v4324 = vand.u32 2147483647, %v4308
      %vm4325 = vcmp.eq.f32.partialorder %v4324, 8.507059e+37
      %v4326 = vand.u32 %v4308, 2147483648
      %v4327 = vor.u32 1.1754944e-38, %v4326
      %v4328 = vsel %vm4325, %v4327, %v4323
      %v4329 = vmul.f32 1.0, %v4328
      %v4330 = vrcp.pop %v4309
      %v4331 = vmul.f32 %v4309, %v4330
      %v4332 = vsub.f32 1.0, %v4331
      %v4333 = vmul.f32 %v4330, %v4332
      %v4334 = vadd.f32 %v4330, %v4333
      %vm4335 = vweird.f32 %v4309
      %vm4336 = vweird.f32 %v4330
      %vm4337 = vmor %vm4335, %vm4336
      %v4338 = vsel %vm4337, %v4330, %v4334
      %v4339 = vand.u32 2147483647, %v4309
      %vm4340 = vcmp.eq.f32.partialorder %v4339, 8.507059e+37
      %v4341 = vand.u32 %v4309, 2147483648
      %v4342 = vor.u32 1.1754944e-38, %v4341
      %v4343 = vsel %vm4340, %v4342, %v4338
      %v4344 = vmul.f32 1.0, %v4343
      %v4345 = vrcp.pop %v4310
      %v4346 = vmul.f32 %v4310, %v4345
      %v4347 = vsub.f32 1.0, %v4346
      %v4348 = vmul.f32 %v4345, %v4347
      %v4349 = vadd.f32 %v4345, %v4348
      %vm4350 = vweird.f32 %v4310
      %vm4351 = vweird.f32 %v4345
      %vm4352 = vmor %vm4350, %vm4351
      %v4353 = vsel %vm4352, %v4345, %v4349
      %v4354 = vand.u32 2147483647, %v4310
      %vm4355 = vcmp.eq.f32.partialorder %v4354, 8.507059e+37
      %v4356 = vand.u32 %v4310, 2147483648
      %v4357 = vor.u32 1.1754944e-38, %v4356
      %v4358 = vsel %vm4355, %v4357, %v4353
      %v4359 = vmul.f32 1.0, %v4358
      %v4360 = vrcp.pop %v4311
      %v4361 = vmul.f32 %v4311, %v4360
      %v4362 = vsub.f32 1.0, %v4361
      %v4363 = vmul.f32 %v4360, %v4362
      %v4364 = vadd.f32 %v4360, %v4363
      %vm4365 = vweird.f32 %v4311
      %vm4366 = vweird.f32 %v4360
      %vm4367 = vmor %vm4365, %vm4366
      %v4368 = vsel %vm4367, %v4360, %v4364
      %v4369 = vand.u32 2147483647, %v4311
      %vm4370 = vcmp.eq.f32.partialorder %v4369, 8.507059e+37
      %v4371 = vand.u32 %v4311, 2147483648
      %v4372 = vor.u32 1.1754944e-38, %v4371
      %v4373 = vsel %vm4370, %v4372, %v4368
      %v4374 = vmul.f32 1.0, %v4373
      %v4375 = vrcp.pop %v4312
      %v4376 = vmul.f32 %v4312, %v4375
      %v4377 = vsub.f32 1.0, %v4376
      %v4378 = vmul.f32 %v4375, %v4377
      %v4379 = vadd.f32 %v4375, %v4378
      %vm4380 = vweird.f32 %v4312
      %vm4381 = vweird.f32 %v4375
      %vm4382 = vmor %vm4380, %vm4381
      %v4383 = vsel %vm4382, %v4375, %v4379
      %v4384 = vand.u32 2147483647, %v4312
      %vm4385 = vcmp.eq.f32.partialorder %v4384, 8.507059e+37
      %v4386 = vand.u32 %v4312, 2147483648
      %v4387 = vor.u32 1.1754944e-38, %v4386
      %v4388 = vsel %vm4385, %v4387, %v4383
      %v4389 = vmul.f32 1.0, %v4388
      %v4390 = vrcp.pop %v4313
      %v4391 = vmul.f32 %v4313, %v4390
      %v4392 = vsub.f32 1.0, %v4391
      %v4393 = vmul.f32 %v4390, %v4392
      %v4394 = vadd.f32 %v4390, %v4393
      %vm4395 = vweird.f32 %v4313
      %vm4396 = vweird.f32 %v4390
      %vm4397 = vmor %vm4395, %vm4396
      %v4398 = vsel %vm4397, %v4390, %v4394
      %v4399 = vand.u32 2147483647, %v4313
      %vm4400 = vcmp.eq.f32.partialorder %v4399, 8.507059e+37
      %v4401 = vand.u32 %v4313, 2147483648
      %v4402 = vor.u32 1.1754944e-38, %v4401
      %v4403 = vsel %vm4400, %v4402, %v4398
      %v4404 = vmul.f32 1.0, %v4403
      %v4405 = vrcp.pop %v4314
      %v4406 = vmul.f32 %v4314, %v4405
      %v4407 = vsub.f32 1.0, %v4406
      %v4408 = vmul.f32 %v4405, %v4407
      %v4409 = vadd.f32 %v4405, %v4408
      %vm4410 = vweird.f32 %v4314
      %vm4411 = vweird.f32 %v4405
      %vm4412 = vmor %vm4410, %vm4411
      %v4413 = vsel %vm4412, %v4405, %v4409
      %v4414 = vand.u32 2147483647, %v4314
      %vm4415 = vcmp.eq.f32.partialorder %v4414, 8.507059e+37
      %v4416 = vand.u32 %v4314, 2147483648
      %v4417 = vor.u32 1.1754944e-38, %v4416
      %v4418 = vsel %vm4415, %v4417, %v4413
      %v4419 = vmul.f32 1.0, %v4418
      %v4420 = vpack.c.bf16 %v4344, %v4329
      %v4421 = vpack.c.bf16 %v4374, %v4359
      %v4422 = vpack.c.bf16 %v4404, %v4389
      %v4423 = vpack.c.bf16 %v4419, %v4419
      %4424 = vst [vmem:[%s410] sm:$0xff] %v4420
      %4425 = vst [vmem:[%s410 + $0x8] sm:$0xff] %v4421
      %4426 = vst [vmem:[%s410 + $0x10] sm:$0xff] %v4422
      %vm4427 = vcmask 125952
      %4428 = vst.msk [vmem:[%s410 + $0x18] sm:$0xf] %vm4427, %v4423
      %4429 = vst [vmem:[%s414] sm:$0xff] %v2315
      %p4430 = scmp.lt.s32.totalorder %s23, 1
      %s4431 = scalar_select %p4430, %s23, 1
      %s4432 = smul.addr %s4431, 7
      %s4433 = smul.addr %s4432, 4
      %s4434 = scalar_lea.vmem %s10, %s4433
      %p4435 = scmp.lt.s32.totalorder %s23, 1
      %s4436 = scalar_select %p4435, %s23, 1
      %s4437 = smul.addr %s4436, 8
      %s4438 = scalar_lea.vmem %s11, %s4437
      // Predicated region
      $region61: #{vae_forward.1} parent=59 // pred_check
        %p4439 = pneg %p261
      $region62: #{vae_forward.1} parent=59 // pred_check_branch
        %4441 = sbr.rel (%p4439) target = $region64
      $region63: #{vae_forward.1} parent=59 // pred_region
        _
      $region64: #{vae_forward.1} parent=59 // pred_fallthru
        _
      // Predicated region
      $region65: #{vae_forward.1} parent=59 // pred_check
        %p4442 = pneg %p287
      $region66: #{vae_forward.1} parent=59 // pred_check_branch
        %4444 = sbr.rel (%p4442) target = $region68
      $region67: #{vae_forward.1} parent=59 // pred_region
        _
      $region68: #{vae_forward.1} parent=59 // pred_fallthru
        _
    $region60: #{vae_forward.1} parent=5 // pred_fallthru
      _
    %p4445 = scmp.le.s32.totalorder 2, %s18
    // Predicated region
    $region69: #{vae_forward.1} parent=5 // pred_check
      %p4446 = pneg %p4445
    $region70: #{vae_forward.1} parent=5 // pred_check_branch
      %4448 = sbr.rel (%p4446) target = $region72
    $region71: #{vae_forward.1} parent=5 // pred_region
      %s4449 = ssub.s32 %s18, 2
      // Predicated region
      $region73: #{vae_forward.1} parent=71 // pred_check
        %p4450 = pneg %p267
      $region74: #{vae_forward.1} parent=71 // pred_check_branch
        %4452 = sbr.rel (%p4450) target = $region76
      $region75: #{vae_forward.1} parent=71 // pred_region
        %p4453 = scmp.lt.s32.totalorder %s24, 1
        %s4454 = scalar_select %p4453, %s24, 1
        %s4455 = smul.addr %s4454, 7
        %s4456 = smul.addr %s4455, 4
        %s4457 = scalar_lea.vmem %s10, %s4456
      $region76: #{vae_forward.1} parent=71 // pred_fallthru
        _
      // Predicated region
      $region77: #{vae_forward.1} parent=71 // pred_check
        %p4458 = pneg %p293
      $region78: #{vae_forward.1} parent=71 // pred_check_branch
        %4460 = sbr.rel (%p4458) target = $region80
      $region79: #{vae_forward.1} parent=71 // pred_region
        %p4461 = scmp.lt.s32.totalorder %s24, 1
        %s4462 = scalar_select %p4461, %s24, 1
        %s4463 = smul.addr %s4462, 8
        %s4464 = scalar_lea.vmem %s11, %s4463
      $region80: #{vae_forward.1} parent=71 // pred_fallthru
        _
    $region72: #{vae_forward.1} parent=5 // pred_fallthru
      _
  $region6: #{vae_forward.1} parent=0 // loop_footer
    %s22 = sadd.s32 1, %s18
  $region7: #{vae_forward.1} parent=0 // loop_footer_branch
    %17 = sbr.rel target = $region3
  $region8: #{vae_forward.1} parent=0 // loop_exit
    _

</llo_original>
